<compile_context>
chip_gen: v7x
topology: tpu7x:2x2x1
jax: 0.10.0
libtpu: 0.0.40
codegen_flags: <defaults>
</compile_context>

<pallas_src>
import jax
import jax.numpy as jnp
from jax.experimental import pallas as pl
from jax.experimental.pallas import tpu as pltpu

LANE = 128


def _round_up(x, m):
    return ((x + m - 1) // m) * m


def _vmem_budget():
    # Per-generation scoped VMEM limit (v5e/v6e: 128 MiB physical, v7x: 64 MiB), with headroom
    # for compiler-internal scratch and double-buffered blocks.
    try:
        cap = pltpu.get_tpu_info().vmem_capacity_bytes
    except Exception:
        cap = 64 * 1024 * 1024
    return int(cap * 3 // 4)


def _make_kernel(H, W, packed_l1):
    """Build the fused kernel for one batch element: ReLU(conv2(ReLU(conv1(x)+b1))+b2)."""
    taps = [(kh, kw) for kh in range(3) for kw in range(3)]  # t = kh*3 + kw

    def zero_halo(ref):
        # Only the 1-pixel halo is (re)zeroed each step; the interior is fully overwritten.
        wp, c = ref.shape[1], ref.shape[2]
        row = jnp.zeros((1, wp, c), ref.dtype)
        col = jnp.zeros((H, 1, c), ref.dtype)
        ref[0:1, :, :] = row
        ref[H + 1:H + 2, :, :] = row
        ref[1:H + 1, 0:1, :] = col
        ref[1:H + 1, W + 1:W + 2, :] = col

    def conv_taps_from_padded(pad_ref, w_ref, acc_ref):
        # 9 per-tap MXU matmuls accumulated into the shared f32 VMEM scratch (no im2col buffer).
        # NOTE(v6e/v7x): with c2 == 128 each pass only half-fills the 256-wide MXU; a wider
        # output-channel group per pass would lift MXU utilization once the kernel is MXU-bound.
        c = pad_ref.shape[2]
        for t, (kh, kw) in enumerate(taps):
            x_t = pad_ref[kh:kh + H, kw:kw + W, :].reshape(H * W, c)
            partial = jnp.dot(x_t, w_ref[t], preferred_element_type=jnp.float32)
            if t == 0:
                acc_ref[...] = partial
            else:
                acc_ref[...] += partial

    if packed_l1:
        def kernel(x_ref, w1_ref, b1_ref, w2_ref, b2_ref, o_ref, mid_ref, acc_ref):
            # x_ref : (1, H, W, K1)  taps pre-packed into K on the host (K1 = rup(9*Cin, 128))
            # w1_ref: (K1, C2)       b1_ref/b2_ref: (1, C2) f32
            # w2_ref: (9, C2, C2)    mid_ref: (H+2, Wp, C2)   acc_ref: (H*W, C2) f32
            k1 = x_ref.shape[3]
            c2 = o_ref.shape[3]
            # ---- layer 1: single MXU matmul, no halo staging / no input VMEM->VMEM copy ----
            acc_ref[...] = jnp.dot(x_ref[0].reshape(H * W, k1), w1_ref[...],
                                   preferred_element_type=jnp.float32)
            y1 = jnp.maximum(acc_ref[...] + b1_ref[...], 0.0)          # f32 bias + ReLU
            # ---- layer 2: intermediate never leaves VMEM (stored in compute dtype) ----
            zero_halo(mid_ref)
            mid_ref[1:H + 1, 1:W + 1, :] = y1.reshape(H, W, c2).astype(mid_ref.dtype)
            conv_taps_from_padded(mid_ref, w2_ref, acc_ref)
            y2 = jnp.maximum(acc_ref[...] + b2_ref[...], 0.0)
            o_ref[...] = y2.reshape(1, H, W, c2).astype(o_ref.dtype)
        return kernel

    def kernel(x_ref, w1_ref, b1_ref, w2_ref, b2_ref, o_ref, xp_ref, mid_ref, acc_ref):
        # x_ref : (1, H, W, C1)   w1_ref: (9, C1, C2)   w2_ref: (9, C2, C2)
        # xp_ref: (H+2, Wp, C1)   mid_ref: (H+2, Wp, C2)   acc_ref: (H*W, C2) f32
        c2 = o_ref.shape[3]
        # TODO(synk): DMA x straight into xp_ref's interior (memory_space=pl.ANY +
        # pltpu.make_async_copy) to remove this VMEM->VMEM copy and the double-buffered x block.
        zero_halo(xp_ref)
        xp_ref[1:H + 1, 1:W + 1, :] = x_ref[0]
        conv_taps_from_padded(xp_ref, w1_ref, acc_ref)
        y1 = jnp.maximum(acc_ref[...] + b1_ref[...], 0.0)
        zero_halo(mid_ref)
        mid_ref[1:H + 1, 1:W + 1, :] = y1.reshape(H, W, c2).astype(mid_ref.dtype)
        conv_taps_from_padded(mid_ref, w2_ref, acc_ref)
        y2 = jnp.maximum(acc_ref[...] + b2_ref[...], 0.0)
        o_ref[...] = y2.reshape(1, H, W, c2).astype(o_ref.dtype)
    return kernel


def _prep_w_taps(w, ci_pad, co_pad, dtype):
    # PyTorch OIHW -> (tap, cin_pad, cout_pad), tap index = kh*3 + kw.
    co, ci = w.shape[0], w.shape[1]
    w = jnp.transpose(w, (2, 3, 1, 0))                                    # (kh, kw, ci, co)
    w = jnp.pad(w, ((0, 0), (0, 0), (0, ci_pad - ci), (0, co_pad - co)))
    return w.reshape(9, ci_pad, co_pad).astype(dtype)


def _prep_w_packed(w, k_pad, co_pad, dtype):
    # PyTorch OIHW -> (9*cin -> padded K, cout_pad); row index = (kh*3+kw)*cin + ci.
    co, ci = w.shape[0], w.shape[1]
    w = jnp.transpose(w, (2, 3, 1, 0)).reshape(9 * ci, co)
    w = jnp.pad(w, ((0, k_pad - 9 * ci), (0, co_pad - co)))
    return w.astype(dtype)


def _prep_b(b, co_pad):
    return jnp.pad(b, (0, co_pad - b.shape[0])).reshape(1, co_pad).astype(jnp.float32)


def unet_conv2_forward(x_nchw, params, compute_dtype=jnp.bfloat16):
    """Forward of unetConv2 with norm_layer=None, need_bias=True, pad='zero'.

    params: (w1, b1, w2, b2) in PyTorch Conv2d layout: w (Cout, Cin, 3, 3), b (Cout,).
    compute_dtype: dtype fed to the MXU (bf16 default, f32 opt-in); accumulation/epilogue are f32.
    NOTE: with bf16 the intermediate activation is also stored in bf16 (errors compound slightly
    across the two convs); use compute_dtype=jnp.float32 for reference-matching numerics.
    """
    w1, b1, w2, b2 = params
    N, cin, H, W = x_nchw.shape
    cout = w1.shape[0]

    c2 = _round_up(cout, LANE)       # lane-dense output channels
    wp = _round_up(W + 2, 8)         # sublane-aligned padded scratch width
    packed_l1 = (9 * cin) <= LANE    # tiny-Cin first block: pack taps into K instead of padding Cin

    # NCHW -> NHWC.
    # TODO(synk): keep the whole U-Net in NHWC with lane-padded channels between fused blocks so
    # these per-block transpose/pad/slice HBM passes disappear.
    x = jnp.transpose(x_nchw, (0, 2, 3, 1))

    if packed_l1:
        k1 = _round_up(9 * cin, LANE)
        xpad = jnp.pad(x, ((0, 0), (1, 1), (1, 1), (0, 0)))
        cols = [xpad[:, kh:kh + H, kw:kw + W, :] for kh in range(3) for kw in range(3)]
        x_in = jnp.concatenate(cols, axis=-1)                              # (N, H, W, 9*cin)
        x_in = jnp.pad(x_in, ((0, 0), (0, 0), (0, 0), (0, k1 - 9 * cin))).astype(compute_dtype)
        w1p = _prep_w_packed(w1, k1, c2, compute_dtype)
        x_spec = pl.BlockSpec((1, H, W, k1), lambda n: (n, 0, 0, 0))
        w1_spec = pl.BlockSpec((k1, c2), lambda n: (0, 0))
        scratch = [pltpu.VMEM((H + 2, wp, c2), compute_dtype),             # mid (padded interm.)
                   pltpu.VMEM((H * W, c2), jnp.float32)]                   # shared f32 accumulator
    else:
        c1 = _round_up(cin, LANE)
        x_in = jnp.pad(x, ((0, 0), (0, 0), (0, 0), (0, c1 - cin))).astype(compute_dtype)
        w1p = _prep_w_taps(w1, c1, c2, compute_dtype)
        x_spec = pl.BlockSpec((1, H, W, c1), lambda n: (n, 0, 0, 0))
        w1_spec = pl.BlockSpec((9, c1, c2), lambda n: (0, 0, 0))
        scratch = [pltpu.VMEM((H + 2, wp, c1), compute_dtype),             # xp (padded input)
                   pltpu.VMEM((H + 2, wp, c2), compute_dtype),             # mid (padded interm.)
                   pltpu.VMEM((H * W, c2), jnp.float32)]                   # shared f32 accumulator

    w2p = _prep_w_taps(w2, c2, c2, compute_dtype)
    b1p, b2p = _prep_b(b1, c2), _prep_b(b2, c2)

    kernel = _make_kernel(H, W, packed_l1)

    # TODO(synk): for production feature maps (>=64x64 on v7x's 64 MiB VMEM) add a second
    # "parallel" grid axis over row tiles (TH rows + 1-row recompute halo for layer 2) so the
    # per-step block fits ~48 MiB, the DMA pipeline has enough steps, and both v7x cores get
    # work even at N==1. Whole-image blocks are only appropriate for small feature maps.
    out = pl.pallas_call(
        kernel,
        out_shape=jax.ShapeDtypeStruct((N, H, W, c2), compute_dtype),
        grid=(N,),
        in_specs=[
            x_spec,
            w1_spec,
            pl.BlockSpec((1, c2), lambda n: (0, 0)),
            pl.BlockSpec((9, c2, c2), lambda n: (0, 0, 0)),
            pl.BlockSpec((1, c2), lambda n: (0, 0)),
        ],
        out_specs=pl.BlockSpec((1, H, W, c2), lambda n: (n, 0, 0, 0)),
        scratch_shapes=scratch,
        compiler_params=pltpu.CompilerParams(
            dimension_semantics=("parallel",),
            vmem_limit_bytes=_vmem_budget(),
        ),
    )(x_in, w1p, b1p, w2p, b2p)

    out = out[:, :, :, :cout]                                       # drop lane padding
    return jnp.transpose(out, (0, 3, 1, 2)).astype(x_nchw.dtype)    # NHWC -> NCHW


def reference_forward(x_nchw, params):
    w1, b1, w2, b2 = params

    def block(x, w, b):
        y = jax.lax.conv_general_dilated(
            x, w, window_strides=(1, 1), padding=((1, 1), (1, 1)),
            dimension_numbers=("NCHW", "OIHW", "NCHW"))
        return jnp.maximum(y + b[None, :, None, None], 0.0)

    return block(block(x_nchw, w1, b1), w2, b2)


def _make_case(key, N, Cin, Cout, H, W):
    kx, kw1, kb1, kw2, kb2 = jax.random.split(key, 5)
    x = jax.random.normal(kx, (N, Cin, H, W), jnp.float32)
    w1 = jax.random.normal(kw1, (Cout, Cin, 3, 3), jnp.float32) * 0.1
    b1 = jax.random.normal(kb1, (Cout,), jnp.float32) * 0.1
    w2 = jax.random.normal(kw2, (Cout, Cout, 3, 3), jnp.float32) * 0.1
    b2 = jax.random.normal(kb2, (Cout,), jnp.float32) * 0.1
    return x, (w1, b1, w2, b2)


if __name__ == "__main__":
    key = jax.random.PRNGKey(0)
    k1, k2 = jax.random.split(key, 2)

    # Case 1: tiny-Cin first block (packed-K layer-1 path): batch=2, in=4, out=8, spatial=16.
    N, Cin, Cout, H, W = 2, 4, 8, 16, 16
    x, params = _make_case(k1, N, Cin, Cout, H, W)
    ref = jax.block_until_ready(reference_forward(x, params))

    out_f32 = jax.block_until_ready(unet_conv2_forward(x, params, compute_dtype=jnp.float32))
    assert out_f32.shape == (N, Cout, H, W), out_f32.shape
    assert jnp.allclose(out_f32, ref, atol=1e-4, rtol=1e-4), \
        float(jnp.max(jnp.abs(out_f32 - ref)))

    out_bf16 = jax.block_until_ready(unet_conv2_forward(x, params))   # bf16 default path
    assert out_bf16.shape == (N, Cout, H, W), out_bf16.shape
    assert jnp.allclose(out_bf16, ref, atol=5e-2, rtol=5e-2), \
        float(jnp.max(jnp.abs(out_bf16 - ref)))

    # Case 2: wider Cin (per-tap layer-1 path), still small shapes.
    N2, Cin2, Cout2, H2, W2 = 2, 16, 8, 16, 16
    x2, params2 = _make_case(k2, N2, Cin2, Cout2, H2, W2)
    ref2 = jax.block_until_ready(reference_forward(x2, params2))
    out2 = jax.block_until_ready(unet_conv2_forward(x2, params2, compute_dtype=jnp.float32))
    assert out2.shape == (N2, Cout2, H2, W2), out2.shape
    assert jnp.allclose(out2, ref2, atol=1e-4, rtol=1e-4), \
        float(jnp.max(jnp.abs(out2 - ref2)))

    print("KERNEL_OK")
</pallas_src>

<mosaic_0001>
module attributes {stable_mosaic.version = 11 : i64} {
  func.func @kernel(%arg0: i32, %arg1: memref<1x16x16x128xf32, #tpu.memory_space<vmem>>, %arg2: memref<128x128xf32, #tpu.memory_space<vmem>>, %arg3: memref<1x128xf32, #tpu.memory_space<vmem>>, %arg4: memref<9x128x128xf32, #tpu.memory_space<vmem>>, %arg5: memref<1x128xf32, #tpu.memory_space<vmem>>, %arg6: memref<1x16x16x128xf32, #tpu.memory_space<vmem>>, %arg7: memref<18x24x128xf32, #tpu.memory_space<vmem>>, %arg8: memref<256x128xf32, #tpu.memory_space<vmem>>) attributes {dimension_semantics = [#tpu.dimension_semantics<parallel>], iteration_bounds = array<i64: 2>, scalar_prefetch = 0 : i64, scratch_operands = 2 : i64, tpu.core_type = #tpu.core_type<tc>, window_params = [{transform_indices = @transform_0, window_bounds = array<i64: 1, 16, 16, 128>}, {pipeline_mode = #tpu.pipeline_mode<synchronous>, transform_indices = @transform_1, window_bounds = array<i64: 128, 128>}, {pipeline_mode = #tpu.pipeline_mode<synchronous>, transform_indices = @transform_2, window_bounds = array<i64: 1, 128>}, {pipeline_mode = #tpu.pipeline_mode<synchronous>, transform_indices = @transform_3, window_bounds = array<i64: 9, 128, 128>}, {pipeline_mode = #tpu.pipeline_mode<synchronous>, transform_indices = @transform_4, window_bounds = array<i64: 1, 128>}, {transform_indices = @transform_5, window_bounds = array<i64: 1, 16, 16, 128>}]} {
    %c0 = arith.constant 0 : index
    %c0_0 = arith.constant 0 : index
    %c0_1 = arith.constant 0 : index
    %c0_2 = arith.constant 0 : index
    %0 = vector.load %arg1[%c0, %c0_0, %c0_1, %c0_2] : memref<1x16x16x128xf32, #tpu.memory_space<vmem>>, vector<1x16x16x128xf32>
    %1 = vector.shape_cast %0 : vector<1x16x16x128xf32> to vector<16x16x128xf32>
    %2 = vector.shape_cast %1 : vector<16x16x128xf32> to vector<256x128xf32>
    %c0_3 = arith.constant 0 : index
    %c0_4 = arith.constant 0 : index
    %3 = vector.load %arg2[%c0_3, %c0_4] : memref<128x128xf32, #tpu.memory_space<vmem>>, vector<128x128xf32>
    %cst = arith.constant dense<0.000000e+00> : vector<256x128xf32>
    %4 = tpu.matmul %2, %3, %cst {dimension_numbers = #tpu.dot_dimension_numbers<[1], [0], [0], [1], [0, 0, 1, 1], [], []>} : vector<256x128xf32>, vector<128x128xf32>, vector<256x128xf32> -> vector<256x128xf32>
    %c0_5 = arith.constant 0 : index
    %c0_6 = arith.constant 0 : index
    %5 = vector.load %arg8[%c0_5, %c0_6] : memref<256x128xf32, #tpu.memory_space<vmem>>, vector<256x128xf32>
    tpu.vector_store %arg8[%c0_5, %c0_6], %4 {strides = array<i32>} : memref<256x128xf32, #tpu.memory_space<vmem>>, vector<256x128xf32>,
    %c0_7 = arith.constant 0 : index
    %c0_8 = arith.constant 0 : index
    %6 = vector.load %arg8[%c0_7, %c0_8] : memref<256x128xf32, #tpu.memory_space<vmem>>, vector<256x128xf32>
    %c0_9 = arith.constant 0 : index
    %c0_10 = arith.constant 0 : index
    %7 = vector.load %arg3[%c0_9, %c0_10] : memref<1x128xf32, #tpu.memory_space<vmem>>, vector<1x128xf32>
    %8 = vector.broadcast %7 : vector<1x128xf32> to vector<256x128xf32>
    %9 = arith.addf %6, %8 : vector<256x128xf32>
    %cst_11 = arith.constant 0.000000e+00 : f32
    %10 = vector.broadcast %cst_11 : f32 to vector<256x128xf32>
    %11 = arith.maximumf %9, %10 : vector<256x128xf32>
    %cst_12 = arith.constant 0.000000e+00 : f32
    %12 = vector.broadcast %cst_12 : f32 to vector<1x24x128xf32>
    %cst_13 = arith.constant 0.000000e+00 : f32
    %13 = vector.broadcast %cst_13 : f32 to vector<16x1x128xf32>
    %c0_14 = arith.constant 0 : index
    %c0_15 = arith.constant 0 : index
    %c0_16 = arith.constant 0 : index
    %14 = vector.load %arg7[%c0_14, %c0_15, %c0_16] : memref<18x24x128xf32, #tpu.memory_space<vmem>>, vector<1x24x128xf32>
    tpu.vector_store %arg7[%c0_14, %c0_15, %c0_16], %12 {strides = array<i32>} : memref<18x24x128xf32, #tpu.memory_space<vmem>>, vector<1x24x128xf32>,
    %c17 = arith.constant 17 : index
    %c0_17 = arith.constant 0 : index
    %c0_18 = arith.constant 0 : index
    %15 = vector.load %arg7[%c17, %c0_17, %c0_18] : memref<18x24x128xf32, #tpu.memory_space<vmem>>, vector<1x24x128xf32>
    tpu.vector_store %arg7[%c17, %c0_17, %c0_18], %12 {strides = array<i32>} : memref<18x24x128xf32, #tpu.memory_space<vmem>>, vector<1x24x128xf32>,
    %c1 = arith.constant 1 : index
    %c0_19 = arith.constant 0 : index
    %c0_20 = arith.constant 0 : index
    %16 = vector.load %arg7[%c1, %c0_19, %c0_20] : memref<18x24x128xf32, #tpu.memory_space<vmem>>, vector<16x1x128xf32>
    tpu.vector_store %arg7[%c1, %c0_19, %c0_20], %13 {strides = array<i32>} : memref<18x24x128xf32, #tpu.memory_space<vmem>>, vector<16x1x128xf32>,
    %c1_21 = arith.constant 1 : index
    %c17_22 = arith.constant 17 : index
    %c0_23 = arith.constant 0 : index
    %17 = vector.load %arg7[%c1_21, %c17_22, %c0_23] : memref<18x24x128xf32, #tpu.memory_space<vmem>>, vector<16x1x128xf32>
    tpu.vector_store %arg7[%c1_21, %c17_22, %c0_23], %13 {strides = array<i32>} : memref<18x24x128xf32, #tpu.memory_space<vmem>>, vector<16x1x128xf32>,
    %18 = vector.shape_cast %11 : vector<256x128xf32> to vector<16x16x128xf32>
    %c1_24 = arith.constant 1 : index
    %c1_25 = arith.constant 1 : index
    %c0_26 = arith.constant 0 : index
    %19 = vector.load %arg7[%c1_24, %c1_25, %c0_26] : memref<18x24x128xf32, #tpu.memory_space<vmem>>, vector<16x16x128xf32>
    tpu.vector_store %arg7[%c1_24, %c1_25, %c0_26], %18 {strides = array<i32>} : memref<18x24x128xf32, #tpu.memory_space<vmem>>, vector<16x16x128xf32>,
    %c0_27 = arith.constant 0 : index
    %c0_28 = arith.constant 0 : index
    %c0_29 = arith.constant 0 : index
    %20 = vector.load %arg7[%c0_27, %c0_28, %c0_29] : memref<18x24x128xf32, #tpu.memory_space<vmem>>, vector<16x16x128xf32>
    %21 = vector.shape_cast %20 : vector<16x16x128xf32> to vector<256x128xf32>
    %c0_30 = arith.constant 0 : index
    %c0_31 = arith.constant 0 : index
    %c0_32 = arith.constant 0 : index
    %22 = vector.load %arg4[%c0_30, %c0_31, %c0_32] : memref<9x128x128xf32, #tpu.memory_space<vmem>>, vector<1x128x128xf32>
    %23 = vector.shape_cast %22 : vector<1x128x128xf32> to vector<128x128xf32>
    %cst_33 = arith.constant dense<0.000000e+00> : vector<256x128xf32>
    %24 = tpu.matmul %21, %23, %cst_33 {dimension_numbers = #tpu.dot_dimension_numbers<[1], [0], [0], [1], [0, 0, 1, 1], [], []>} : vector<256x128xf32>, vector<128x128xf32>, vector<256x128xf32> -> vector<256x128xf32>
    %c0_34 = arith.constant 0 : index
    %c0_35 = arith.constant 0 : index
    %25 = vector.load %arg8[%c0_34, %c0_35] : memref<256x128xf32, #tpu.memory_space<vmem>>, vector<256x128xf32>
    tpu.vector_store %arg8[%c0_34, %c0_35], %24 {strides = array<i32>} : memref<256x128xf32, #tpu.memory_space<vmem>>, vector<256x128xf32>,
    %c0_36 = arith.constant 0 : index
    %c1_37 = arith.constant 1 : index
    %c0_38 = arith.constant 0 : index
    %26 = vector.load %arg7[%c0_36, %c1_37, %c0_38] : memref<18x24x128xf32, #tpu.memory_space<vmem>>, vector<16x16x128xf32>
    %27 = vector.shape_cast %26 : vector<16x16x128xf32> to vector<256x128xf32>
    %c1_39 = arith.constant 1 : index
    %c0_40 = arith.constant 0 : index
    %c0_41 = arith.constant 0 : index
    %28 = vector.load %arg4[%c1_39, %c0_40, %c0_41] : memref<9x128x128xf32, #tpu.memory_space<vmem>>, vector<1x128x128xf32>
    %29 = vector.shape_cast %28 : vector<1x128x128xf32> to vector<128x128xf32>
    %cst_42 = arith.constant dense<0.000000e+00> : vector<256x128xf32>
    %30 = tpu.matmul %27, %29, %cst_42 {dimension_numbers = #tpu.dot_dimension_numbers<[1], [0], [0], [1], [0, 0, 1, 1], [], []>} : vector<256x128xf32>, vector<128x128xf32>, vector<256x128xf32> -> vector<256x128xf32>
    %c0_43 = arith.constant 0 : index
    %c0_44 = arith.constant 0 : index
    %31 = vector.load %arg8[%c0_43, %c0_44] : memref<256x128xf32, #tpu.memory_space<vmem>>, vector<256x128xf32>
    %32 = arith.addf %31, %30 : vector<256x128xf32>
    %c0_45 = arith.constant 0 : index
    %c0_46 = arith.constant 0 : index
    %33 = vector.load %arg8[%c0_45, %c0_46] : memref<256x128xf32, #tpu.memory_space<vmem>>, vector<256x128xf32>
    tpu.vector_store %arg8[%c0_45, %c0_46], %32 {strides = array<i32>} : memref<256x128xf32, #tpu.memory_space<vmem>>, vector<256x128xf32>,
    %c0_47 = arith.constant 0 : index
    %c2 = arith.constant 2 : index
    %c0_48 = arith.constant 0 : index
    %34 = vector.load %arg7[%c0_47, %c2, %c0_48] : memref<18x24x128xf32, #tpu.memory_space<vmem>>, vector<16x16x128xf32>
    %35 = vector.shape_cast %34 : vector<16x16x128xf32> to vector<256x128xf32>
    %c2_49 = arith.constant 2 : index
    %c0_50 = arith.constant 0 : index
    %c0_51 = arith.constant 0 : index
    %36 = vector.load %arg4[%c2_49, %c0_50, %c0_51] : memref<9x128x128xf32, #tpu.memory_space<vmem>>, vector<1x128x128xf32>
    %37 = vector.shape_cast %36 : vector<1x128x128xf32> to vector<128x128xf32>
    %cst_52 = arith.constant dense<0.000000e+00> : vector<256x128xf32>
    %38 = tpu.matmul %35, %37, %cst_52 {dimension_numbers = #tpu.dot_dimension_numbers<[1], [0], [0], [1], [0, 0, 1, 1], [], []>} : vector<256x128xf32>, vector<128x128xf32>, vector<256x128xf32> -> vector<256x128xf32>
    %c0_53 = arith.constant 0 : index
    %c0_54 = arith.constant 0 : index
    %39 = vector.load %arg8[%c0_53, %c0_54] : memref<256x128xf32, #tpu.memory_space<vmem>>, vector<256x128xf32>
    %40 = arith.addf %39, %38 : vector<256x128xf32>
    %c0_55 = arith.constant 0 : index
    %c0_56 = arith.constant 0 : index
    %41 = vector.load %arg8[%c0_55, %c0_56] : memref<256x128xf32, #tpu.memory_space<vmem>>, vector<256x128xf32>
    tpu.vector_store %arg8[%c0_55, %c0_56], %40 {strides = array<i32>} : memref<256x128xf32, #tpu.memory_space<vmem>>, vector<256x128xf32>,
    %c1_57 = arith.constant 1 : index
    %c0_58 = arith.constant 0 : index
    %c0_59 = arith.constant 0 : index
    %42 = vector.load %arg7[%c1_57, %c0_58, %c0_59] : memref<18x24x128xf32, #tpu.memory_space<vmem>>, vector<16x16x128xf32>
    %43 = vector.shape_cast %42 : vector<16x16x128xf32> to vector<256x128xf32>
    %c3 = arith.constant 3 : index
    %c0_60 = arith.constant 0 : index
    %c0_61 = arith.constant 0 : index
    %44 = vector.load %arg4[%c3, %c0_60, %c0_61] : memref<9x128x128xf32, #tpu.memory_space<vmem>>, vector<1x128x128xf32>
    %45 = vector.shape_cast %44 : vector<1x128x128xf32> to vector<128x128xf32>
    %cst_62 = arith.constant dense<0.000000e+00> : vector<256x128xf32>
    %46 = tpu.matmul %43, %45, %cst_62 {dimension_numbers = #tpu.dot_dimension_numbers<[1], [0], [0], [1], [0, 0, 1, 1], [], []>} : vector<256x128xf32>, vector<128x128xf32>, vector<256x128xf32> -> vector<256x128xf32>
    %c0_63 = arith.constant 0 : index
    %c0_64 = arith.constant 0 : index
    %47 = vector.load %arg8[%c0_63, %c0_64] : memref<256x128xf32, #tpu.memory_space<vmem>>, vector<256x128xf32>
    %48 = arith.addf %47, %46 : vector<256x128xf32>
    %c0_65 = arith.constant 0 : index
    %c0_66 = arith.constant 0 : index
    %49 = vector.load %arg8[%c0_65, %c0_66] : memref<256x128xf32, #tpu.memory_space<vmem>>, vector<256x128xf32>
    tpu.vector_store %arg8[%c0_65, %c0_66], %48 {strides = array<i32>} : memref<256x128xf32, #tpu.memory_space<vmem>>, vector<256x128xf32>,
    %c1_67 = arith.constant 1 : index
    %c1_68 = arith.constant 1 : index
    %c0_69 = arith.constant 0 : index
    %50 = vector.load %arg7[%c1_67, %c1_68, %c0_69] : memref<18x24x128xf32, #tpu.memory_space<vmem>>, vector<16x16x128xf32>
    %51 = vector.shape_cast %50 : vector<16x16x128xf32> to vector<256x128xf32>
    %c4 = arith.constant 4 : index
    %c0_70 = arith.constant 0 : index
    %c0_71 = arith.constant 0 : index
    %52 = vector.load %arg4[%c4, %c0_70, %c0_71] : memref<9x128x128xf32, #tpu.memory_space<vmem>>, vector<1x128x128xf32>
    %53 = vector.shape_cast %52 : vector<1x128x128xf32> to vector<128x128xf32>
    %cst_72 = arith.constant dense<0.000000e+00> : vector<256x128xf32>
    %54 = tpu.matmul %51, %53, %cst_72 {dimension_numbers = #tpu.dot_dimension_numbers<[1], [0], [0], [1], [0, 0, 1, 1], [], []>} : vector<256x128xf32>, vector<128x128xf32>, vector<256x128xf32> -> vector<256x128xf32>
    %c0_73 = arith.constant 0 : index
    %c0_74 = arith.constant 0 : index
    %55 = vector.load %arg8[%c0_73, %c0_74] : memref<256x128xf32, #tpu.memory_space<vmem>>, vector<256x128xf32>
    %56 = arith.addf %55, %54 : vector<256x128xf32>
    %c0_75 = arith.constant 0 : index
    %c0_76 = arith.constant 0 : index
    %57 = vector.load %arg8[%c0_75, %c0_76] : memref<256x128xf32, #tpu.memory_space<vmem>>, vector<256x128xf32>
    tpu.vector_store %arg8[%c0_75, %c0_76], %56 {strides = array<i32>} : memref<256x128xf32, #tpu.memory_space<vmem>>, vector<256x128xf32>,
    %c1_77 = arith.constant 1 : index
    %c2_78 = arith.constant 2 : index
    %c0_79 = arith.constant 0 : index
    %58 = vector.load %arg7[%c1_77, %c2_78, %c0_79] : memref<18x24x128xf32, #tpu.memory_space<vmem>>, vector<16x16x128xf32>
    %59 = vector.shape_cast %58 : vector<16x16x128xf32> to vector<256x128xf32>
    %c5 = arith.constant 5 : index
    %c0_80 = arith.constant 0 : index
    %c0_81 = arith.constant 0 : index
    %60 = vector.load %arg4[%c5, %c0_80, %c0_81] : memref<9x128x128xf32, #tpu.memory_space<vmem>>, vector<1x128x128xf32>
    %61 = vector.shape_cast %60 : vector<1x128x128xf32> to vector<128x128xf32>
    %cst_82 = arith.constant dense<0.000000e+00> : vector<256x128xf32>
    %62 = tpu.matmul %59, %61, %cst_82 {dimension_numbers = #tpu.dot_dimension_numbers<[1], [0], [0], [1], [0, 0, 1, 1], [], []>} : vector<256x128xf32>, vector<128x128xf32>, vector<256x128xf32> -> vector<256x128xf32>
    %c0_83 = arith.constant 0 : index
    %c0_84 = arith.constant 0 : index
    %63 = vector.load %arg8[%c0_83, %c0_84] : memref<256x128xf32, #tpu.memory_space<vmem>>, vector<256x128xf32>
    %64 = arith.addf %63, %62 : vector<256x128xf32>
    %c0_85 = arith.constant 0 : index
    %c0_86 = arith.constant 0 : index
    %65 = vector.load %arg8[%c0_85, %c0_86] : memref<256x128xf32, #tpu.memory_space<vmem>>, vector<256x128xf32>
    tpu.vector_store %arg8[%c0_85, %c0_86], %64 {strides = array<i32>} : memref<256x128xf32, #tpu.memory_space<vmem>>, vector<256x128xf32>,
    %c2_87 = arith.constant 2 : index
    %c0_88 = arith.constant 0 : index
    %c0_89 = arith.constant 0 : index
    %66 = vector.load %arg7[%c2_87, %c0_88, %c0_89] : memref<18x24x128xf32, #tpu.memory_space<vmem>>, vector<16x16x128xf32>
    %67 = vector.shape_cast %66 : vector<16x16x128xf32> to vector<256x128xf32>
    %c6 = arith.constant 6 : index
    %c0_90 = arith.constant 0 : index
    %c0_91 = arith.constant 0 : index
    %68 = vector.load %arg4[%c6, %c0_90, %c0_91] : memref<9x128x128xf32, #tpu.memory_space<vmem>>, vector<1x128x128xf32>
    %69 = vector.shape_cast %68 : vector<1x128x128xf32> to vector<128x128xf32>
    %cst_92 = arith.constant dense<0.000000e+00> : vector<256x128xf32>
    %70 = tpu.matmul %67, %69, %cst_92 {dimension_numbers = #tpu.dot_dimension_numbers<[1], [0], [0], [1], [0, 0, 1, 1], [], []>} : vector<256x128xf32>, vector<128x128xf32>, vector<256x128xf32> -> vector<256x128xf32>
    %c0_93 = arith.constant 0 : index
    %c0_94 = arith.constant 0 : index
    %71 = vector.load %arg8[%c0_93, %c0_94] : memref<256x128xf32, #tpu.memory_space<vmem>>, vector<256x128xf32>
    %72 = arith.addf %71, %70 : vector<256x128xf32>
    %c0_95 = arith.constant 0 : index
    %c0_96 = arith.constant 0 : index
    %73 = vector.load %arg8[%c0_95, %c0_96] : memref<256x128xf32, #tpu.memory_space<vmem>>, vector<256x128xf32>
    tpu.vector_store %arg8[%c0_95, %c0_96], %72 {strides = array<i32>} : memref<256x128xf32, #tpu.memory_space<vmem>>, vector<256x128xf32>,
    %c2_97 = arith.constant 2 : index
    %c1_98 = arith.constant 1 : index
    %c0_99 = arith.constant 0 : index
    %74 = vector.load %arg7[%c2_97, %c1_98, %c0_99] : memref<18x24x128xf32, #tpu.memory_space<vmem>>, vector<16x16x128xf32>
    %75 = vector.shape_cast %74 : vector<16x16x128xf32> to vector<256x128xf32>
    %c7 = arith.constant 7 : index
    %c0_100 = arith.constant 0 : index
    %c0_101 = arith.constant 0 : index
    %76 = vector.load %arg4[%c7, %c0_100, %c0_101] : memref<9x128x128xf32, #tpu.memory_space<vmem>>, vector<1x128x128xf32>
    %77 = vector.shape_cast %76 : vector<1x128x128xf32> to vector<128x128xf32>
    %cst_102 = arith.constant dense<0.000000e+00> : vector<256x128xf32>
    %78 = tpu.matmul %75, %77, %cst_102 {dimension_numbers = #tpu.dot_dimension_numbers<[1], [0], [0], [1], [0, 0, 1, 1], [], []>} : vector<256x128xf32>, vector<128x128xf32>, vector<256x128xf32> -> vector<256x128xf32>
    %c0_103 = arith.constant 0 : index
    %c0_104 = arith.constant 0 : index
    %79 = vector.load %arg8[%c0_103, %c0_104] : memref<256x128xf32, #tpu.memory_space<vmem>>, vector<256x128xf32>
    %80 = arith.addf %79, %78 : vector<256x128xf32>
    %c0_105 = arith.constant 0 : index
    %c0_106 = arith.constant 0 : index
    %81 = vector.load %arg8[%c0_105, %c0_106] : memref<256x128xf32, #tpu.memory_space<vmem>>, vector<256x128xf32>
    tpu.vector_store %arg8[%c0_105, %c0_106], %80 {strides = array<i32>} : memref<256x128xf32, #tpu.memory_space<vmem>>, vector<256x128xf32>,
    %c2_107 = arith.constant 2 : index
    %c2_108 = arith.constant 2 : index
    %c0_109 = arith.constant 0 : index
    %82 = vector.load %arg7[%c2_107, %c2_108, %c0_109] : memref<18x24x128xf32, #tpu.memory_space<vmem>>, vector<16x16x128xf32>
    %83 = vector.shape_cast %82 : vector<16x16x128xf32> to vector<256x128xf32>
    %c8 = arith.constant 8 : index
    %c0_110 = arith.constant 0 : index
    %c0_111 = arith.constant 0 : index
    %84 = vector.load %arg4[%c8, %c0_110, %c0_111] : memref<9x128x128xf32, #tpu.memory_space<vmem>>, vector<1x128x128xf32>
    %85 = vector.shape_cast %84 : vector<1x128x128xf32> to vector<128x128xf32>
    %cst_112 = arith.constant dense<0.000000e+00> : vector<256x128xf32>
    %86 = tpu.matmul %83, %85, %cst_112 {dimension_numbers = #tpu.dot_dimension_numbers<[1], [0], [0], [1], [0, 0, 1, 1], [], []>} : vector<256x128xf32>, vector<128x128xf32>, vector<256x128xf32> -> vector<256x128xf32>
    %c0_113 = arith.constant 0 : index
    %c0_114 = arith.constant 0 : index
    %87 = vector.load %arg8[%c0_113, %c0_114] : memref<256x128xf32, #tpu.memory_space<vmem>>, vector<256x128xf32>
    %88 = arith.addf %87, %86 : vector<256x128xf32>
    %c0_115 = arith.constant 0 : index
    %c0_116 = arith.constant 0 : index
    %89 = vector.load %arg8[%c0_115, %c0_116] : memref<256x128xf32, #tpu.memory_space<vmem>>, vector<256x128xf32>
    tpu.vector_store %arg8[%c0_115, %c0_116], %88 {strides = array<i32>} : memref<256x128xf32, #tpu.memory_space<vmem>>, vector<256x128xf32>,
    %c0_117 = arith.constant 0 : index
    %c0_118 = arith.constant 0 : index
    %90 = vector.load %arg8[%c0_117, %c0_118] : memref<256x128xf32, #tpu.memory_space<vmem>>, vector<256x128xf32>
    %c0_119 = arith.constant 0 : index
    %c0_120 = arith.constant 0 : index
    %91 = vector.load %arg5[%c0_119, %c0_120] : memref<1x128xf32, #tpu.memory_space<vmem>>, vector<1x128xf32>
    %92 = vector.broadcast %91 : vector<1x128xf32> to vector<256x128xf32>
    %93 = arith.addf %90, %92 : vector<256x128xf32>
    %cst_121 = arith.constant 0.000000e+00 : f32
    %94 = vector.broadcast %cst_121 : f32 to vector<256x128xf32>
    %95 = arith.maximumf %93, %94 : vector<256x128xf32>
    %96 = vector.shape_cast %95 : vector<256x128xf32> to vector<1x16x16x128xf32>
    %c0_122 = arith.constant 0 : index
    %c0_123 = arith.constant 0 : index
    %c0_124 = arith.constant 0 : index
    %c0_125 = arith.constant 0 : index
    %97 = vector.load %arg6[%c0_122, %c0_123, %c0_124, %c0_125] : memref<1x16x16x128xf32, #tpu.memory_space<vmem>>, vector<1x16x16x128xf32>
    tpu.vector_store %arg6[%c0_122, %c0_123, %c0_124, %c0_125], %96 {strides = array<i32>} : memref<1x16x16x128xf32, #tpu.memory_space<vmem>>, vector<1x16x16x128xf32>,
    return
  }
  func.func @transform_0(%arg0: i32) -> (i32, i32, i32, i32) {
    %c0_i32 = arith.constant 0 : i32
    %c0_i32_0 = arith.constant 0 : i32
    %c0_i32_1 = arith.constant 0 : i32
    %c0_i32_2 = arith.constant 0 : i32
    return %arg0, %c0_i32, %c0_i32_0, %c0_i32_1 : i32, i32, i32, i32
  }
  func.func @transform_1(%arg0: i32) -> (i32, i32) {
    %c0_i32 = arith.constant 0 : i32
    %c0_i32_0 = arith.constant 0 : i32
    %c0_i32_1 = arith.constant 0 : i32
    return %c0_i32, %c0_i32_0 : i32, i32
  }
  func.func @transform_2(%arg0: i32) -> (i32, i32) {
    %c0_i32 = arith.constant 0 : i32
    %c0_i32_0 = arith.constant 0 : i32
    %c0_i32_1 = arith.constant 0 : i32
    return %c0_i32, %c0_i32_0 : i32, i32
  }
  func.func @transform_3(%arg0: i32) -> (i32, i32, i32) {
    %c0_i32 = arith.constant 0 : i32
    %c0_i32_0 = arith.constant 0 : i32
    %c0_i32_1 = arith.constant 0 : i32
    %c0_i32_2 = arith.constant 0 : i32
    return %c0_i32, %c0_i32_0, %c0_i32_1 : i32, i32, i32
  }
  func.func @transform_4(%arg0: i32) -> (i32, i32) {
    %c0_i32 = arith.constant 0 : i32
    %c0_i32_0 = arith.constant 0 : i32
    %c0_i32_1 = arith.constant 0 : i32
    return %c0_i32, %c0_i32_0 : i32, i32
  }
  func.func @transform_5(%arg0: i32) -> (i32, i32, i32, i32) {
    %c0_i32 = arith.constant 0 : i32
    %c0_i32_0 = arith.constant 0 : i32
    %c0_i32_1 = arith.constant 0 : i32
    %c0_i32_2 = arith.constant 0 : i32
    return %arg0, %c0_i32, %c0_i32_0, %c0_i32_1 : i32, i32, i32, i32
  }
}

</mosaic_0001>

<llo_original>
// kernel: tpu_custom_call.1
$region0: #{tpu_custom_call.1}
  #allocation0 [shape = 'u32[]', space=smem, size = 0x4, offset = 0x4, fixed_abs, tag = 'smem constant byte address 0x4 - core index']
  #allocation1 [shape = 'u32[144,128]{1,0:T(1,128)}', space=vmem, size = 0x12000, scoped, tag = 'internal scratch']
  #allocation2 [shape = 'f32[18,24,128]{2,1,0:T(8,128)}', space=vmem, size = 0x36000, scoped, tag = 'scratch operand']
  #allocation3 [shape = 'f32[256,128]{1,0:T(8,128)}', space=vmem, size = 0x20000, scoped, tag = 'scratch operand']
  %s0 = inlined_call_operand.hbm [shape: f32[2,16,16,128], index: 0, kind: input, shape index: {}]
  %s1 = inlined_call_operand.hbm [shape: f32[128,128], index: 1, kind: input, shape index: {}]
  %s2 = inlined_call_operand.vmem [shape: f32[1,128], index: 2, kind: input, shape index: {}]
  %s3 = inlined_call_operand.hbm [shape: f32[9,128,128], index: 3, kind: input, shape index: {}]
  %s4 = inlined_call_operand.vmem [shape: f32[1,128], index: 4, kind: input, shape index: {}]
  %s5 = inlined_call_operand.hbm [shape: f32[2,16,16,128], index: 5, kind: output, shape index: {}]
  %s6 = sld [smem:[#allocation0]]
  $region65: #{tpu_custom_call.1} parent=0
    _
  %s8 = ssub.s32 1, %s6
  %s9 = scalar_select 0, %s8, %s6
  $region1: #{tpu_custom_call.1} parent=0
    #allocation4 [shape = 'u8[262144]{0}', space=vmem, size = 0x40000, scoped, tag = 'input window, operand 0']
    #allocation5 [shape = 's32[2]{0}', space=sflag, size = 0x8, scoped, tag = 'scoped memory for tpu_custom_call.1']
    #allocation6 [shape = 's32[2]{0}', space=sflag, size = 0x8, scoped, tag = 'scoped memory for tpu_custom_call.1']
    #allocation7 [shape = 'u8[65536]{0}', space=vmem, size = 0x10000, scoped, tag = 'input window, operand 1, single buffered']
    #allocation8 [shape = 's32[1]{0}', space=sflag, size = 0x4, scoped, tag = 'scoped memory for tpu_custom_call.1']
    #allocation9 [shape = 'u8[589824]{0}', space=vmem, size = 0x90000, scoped, tag = 'input window, operand 3, single buffered']
    #allocation10 [shape = 'u8[262144]{0}', space=vmem, size = 0x40000, scoped, tag = 'output window, operand 0']
    %10 = vsyncpa [#allocation5], 0
    %s11 = scalar_lea.sflag [#allocation5], 1
    %12 = vsyncpa %s11, 0
    %13 = vsyncpa [#allocation8], 0
    %14 = vsyncpa [#allocation6], 0
    %s15 = scalar_lea.sflag [#allocation6], 1
    %16 = vsyncpa %s15, 0
    loop: start=0, step=1, limit=4
    $region2: #{tpu_custom_call.1} parent=1 // loop_pre_header
      _
    $region3: #{tpu_custom_call.1} parent=1 // loop_header
      %s18 = sphi 0, %s22
      %p19 = scmp.ge.s32.totalorder %s18, 4
      %s28 = sphi 0, %s30
      %s31 = sphi 0, %s28
      %s32 = sphi 0, %s31
      %s48 = sphi 0, %s32
      %s52 = sphi 0, %s52
      %s54 = sphi 0, %s52
      %s55 = sphi 0, %s54
      %s69 = sphi 0, %s55
      %s73 = sphi 0, %s73
      %s75 = sphi 0, %s73
      %s76 = sphi 0, %s75
      %s90 = sphi 0, %s76
      %s94 = sphi 0, %s94
      %s96 = sphi 0, %s94
      %s97 = sphi 0, %s96
      %s111 = sphi 0, %s97
      %s115 = sphi 0, %s115
      %s117 = sphi 0, %s115
      %s118 = sphi 0, %s117
      %s132 = sphi 0, %s118
      %s138 = sphi 0, %s140
      %s141 = sphi 0, %s138
      %s142 = sphi 0, %s141
      %s158 = sphi 0, %s142
    $region4: #{tpu_custom_call.1} parent=1 // loop_header_branch
      %21 = sbr.rel (%p19) target = $region8
    $region5: #{tpu_custom_call.1} parent=1 // loop_body
      %s23 = ssub.s32 %s18, 1
      %s24 = ssub.s32 %s18, 2
      %s25 = sadd.s32 %s18, 1
      %s26 = ssub.s32 %s18, %s25
      %p27 = scmp.eq.s32.totalorder %s26, 0
      %s29 = sadd.s32 %s28, 1
      %s30 = scalar_select %p27, %s28, %s29
      %p33 = pneg %p27
      %p34 = scmp.eq.s32.totalorder %s18, 1
      %p35 = por %p33, %p34
      %p36 = scmp.ne.s32.totalorder %s28, %s31
      %p37 = scmp.eq.s32.totalorder %s18, 0
      %p38 = por %p36, %p37
      %p39 = scmp.ne.s32.totalorder %s28, %s31
      %p40 = scmp.eq.s32.totalorder %s23, 1
      %p41 = por %p39, %p40
      %p42 = scmp.ne.s32.totalorder %s31, %s32
      %p43 = scmp.eq.s32.totalorder %s23, 0
      %p44 = por %p42, %p43
      %p45 = scmp.ne.s32.totalorder %s31, %s32
      %p46 = scmp.eq.s32.totalorder %s24, 1
      %p47 = por %p45, %p46
      %p49 = scmp.ne.s32.totalorder %s32, %s48
      %p50 = scmp.eq.s32.totalorder %s24, 0
      %p51 = por %p49, %p50
      %s53 = sadd.s32 %s52, 1
      %p56 = scmp.eq.s32.totalorder %s18, 1
      %p57 = scmp.ne.s32.totalorder %s52, %s54
      %p58 = scmp.eq.s32.totalorder %s18, 0
      %p59 = por %p57, %p58
      %p60 = scmp.ne.s32.totalorder %s52, %s54
      %p61 = scmp.eq.s32.totalorder %s23, 1
      %p62 = por %p60, %p61
      %p63 = scmp.ne.s32.totalorder %s54, %s55
      %p64 = scmp.eq.s32.totalorder %s23, 0
      %p65 = por %p63, %p64
      %p66 = scmp.ne.s32.totalorder %s54, %s55
      %p67 = scmp.eq.s32.totalorder %s24, 1
      %p68 = por %p66, %p67
      %p70 = scmp.ne.s32.totalorder %s55, %s69
      %p71 = scmp.eq.s32.totalorder %s24, 0
      %p72 = por %p70, %p71
      %s74 = sadd.s32 %s73, 1
      %p77 = scmp.eq.s32.totalorder %s18, 1
      %p78 = scmp.ne.s32.totalorder %s73, %s75
      %p79 = scmp.eq.s32.totalorder %s18, 0
      %p80 = por %p78, %p79
      %p81 = scmp.ne.s32.totalorder %s73, %s75
      %p82 = scmp.eq.s32.totalorder %s23, 1
      %p83 = por %p81, %p82
      %p84 = scmp.ne.s32.totalorder %s75, %s76
      %p85 = scmp.eq.s32.totalorder %s23, 0
      %p86 = por %p84, %p85
      %p87 = scmp.ne.s32.totalorder %s75, %s76
      %p88 = scmp.eq.s32.totalorder %s24, 1
      %p89 = por %p87, %p88
      %p91 = scmp.ne.s32.totalorder %s76, %s90
      %p92 = scmp.eq.s32.totalorder %s24, 0
      %p93 = por %p91, %p92
      %s95 = sadd.s32 %s94, 1
      %p98 = scmp.eq.s32.totalorder %s18, 1
      %p99 = scmp.ne.s32.totalorder %s94, %s96
      %p100 = scmp.eq.s32.totalorder %s18, 0
      %p101 = por %p99, %p100
      %p102 = scmp.ne.s32.totalorder %s94, %s96
      %p103 = scmp.eq.s32.totalorder %s23, 1
      %p104 = por %p102, %p103
      %p105 = scmp.ne.s32.totalorder %s96, %s97
      %p106 = scmp.eq.s32.totalorder %s23, 0
      %p107 = por %p105, %p106
      %p108 = scmp.ne.s32.totalorder %s96, %s97
      %p109 = scmp.eq.s32.totalorder %s24, 1
      %p110 = por %p108, %p109
      %p112 = scmp.ne.s32.totalorder %s97, %s111
      %p113 = scmp.eq.s32.totalorder %s24, 0
      %p114 = por %p112, %p113
      %s116 = sadd.s32 %s115, 1
      %p119 = scmp.eq.s32.totalorder %s18, 1
      %p120 = scmp.ne.s32.totalorder %s115, %s117
      %p121 = scmp.eq.s32.totalorder %s18, 0
      %p122 = por %p120, %p121
      %p123 = scmp.ne.s32.totalorder %s115, %s117
      %p124 = scmp.eq.s32.totalorder %s23, 1
      %p125 = por %p123, %p124
      %p126 = scmp.ne.s32.totalorder %s117, %s118
      %p127 = scmp.eq.s32.totalorder %s23, 0
      %p128 = por %p126, %p127
      %p129 = scmp.ne.s32.totalorder %s117, %s118
      %p130 = scmp.eq.s32.totalorder %s24, 1
      %p131 = por %p129, %p130
      %p133 = scmp.ne.s32.totalorder %s118, %s132
      %p134 = scmp.eq.s32.totalorder %s24, 0
      %p135 = por %p133, %p134
      %s136 = ssub.s32 %s18, %s25
      %p137 = scmp.eq.s32.totalorder %s136, 0
      %s139 = sadd.s32 %s138, 1
      %s140 = scalar_select %p137, %s138, %s139
      %p143 = pneg %p137
      %p144 = scmp.eq.s32.totalorder %s18, 1
      %p145 = por %p143, %p144
      %p146 = scmp.ne.s32.totalorder %s138, %s141
      %p147 = scmp.eq.s32.totalorder %s18, 0
      %p148 = por %p146, %p147
      %p149 = scmp.ne.s32.totalorder %s138, %s141
      %p150 = scmp.eq.s32.totalorder %s23, 1
      %p151 = por %p149, %p150
      %p152 = scmp.ne.s32.totalorder %s141, %s142
      %p153 = scmp.eq.s32.totalorder %s23, 0
      %p154 = por %p152, %p153
      %p155 = scmp.ne.s32.totalorder %s141, %s142
      %p156 = scmp.eq.s32.totalorder %s24, 1
      %p157 = por %p155, %p156
      %p159 = scmp.ne.s32.totalorder %s142, %s158
      %p160 = scmp.eq.s32.totalorder %s24, 0
      %p161 = por %p159, %p160
      %p162 = scmp.le.s32.totalorder 1, %s18
      %p163 = scmp.lt.s32.totalorder %s18, 3
      %p164 = pnand %p162, %p163
      %p165 = pneg %p164
      // Predicated region
      $region9: #{tpu_custom_call.1} parent=5 // pred_check
        _
      $region10: #{tpu_custom_call.1} parent=5 // pred_check_branch
        %167 = sbr.rel (%p164) target = $region12
      $region11: #{tpu_custom_call.1} parent=5 // pred_region
        %s168 = ssub.s32 %s18, 1
        // Predicated region
        $region13: #{tpu_custom_call.1} parent=11 // pred_check
          %p169 = pneg %p65
        $region14: #{tpu_custom_call.1} parent=11 // pred_check_branch
          %171 = sbr.rel (%p169) target = $region16
        $region15: #{tpu_custom_call.1} parent=11 // pred_region
          %s173 = ssub.s32 2048, 2048
          %174 = vsyncadd [#allocation8], %s173
          %s175 = sshll.u32 [#allocation7], 4
          %s176 = int_to_ptr.vmem [resolvable:$true] %s175
          %181 = dma.hbm_to_vmem [thread:$0]  %s1, 2048, %s176, [#allocation8], 128, 128, 8
        $region16: #{tpu_custom_call.1} parent=11 // pred_fallthru
          _
        // Predicated region
        $region17: #{tpu_custom_call.1} parent=11 // pred_check
          %p182 = pneg %p86
        $region18: #{tpu_custom_call.1} parent=11 // pred_check_branch
          %184 = sbr.rel (%p182) target = $region20
        $region19: #{tpu_custom_call.1} parent=11 // pred_region
          _
        $region20: #{tpu_custom_call.1} parent=11 // pred_fallthru
          _
        // Predicated region
        $region21: #{tpu_custom_call.1} parent=11 // pred_check
          %p185 = pneg %p107
        $region22: #{tpu_custom_call.1} parent=11 // pred_check_branch
          %187 = sbr.rel (%p185) target = $region24
        $region23: #{tpu_custom_call.1} parent=11 // pred_region
          %s189 = ssub.s32 18432, 18432
          %190 = vsyncadd [#allocation8], %s189
          %s191 = sshll.u32 [#allocation9], 4
          %s192 = int_to_ptr.vmem [resolvable:$true] %s191
          %197 = dma.hbm_to_vmem [thread:$0]  %s3, 18432, %s192, [#allocation8], 128, 128, 8
        $region24: #{tpu_custom_call.1} parent=11 // pred_fallthru
          _
        // Predicated region
        $region25: #{tpu_custom_call.1} parent=11 // pred_check
          %p198 = pneg %p128
        $region26: #{tpu_custom_call.1} parent=11 // pred_check_branch
          %200 = sbr.rel (%p198) target = $region28
        $region27: #{tpu_custom_call.1} parent=11 // pred_region
          _
        $region28: #{tpu_custom_call.1} parent=11 // pred_fallthru
          _
      $region12: #{tpu_custom_call.1} parent=5 // pred_fallthru
        _
      %p201 = scmp.lt.s32.totalorder %s18, 2
      // Predicated region
      $region29: #{tpu_custom_call.1} parent=5 // pred_check
        %p202 = pneg %p201
      $region30: #{tpu_custom_call.1} parent=5 // pred_check_branch
        %204 = sbr.rel (%p202) target = $region32
      $region31: #{tpu_custom_call.1} parent=5 // pred_region
        // Predicated region
        $region33: #{tpu_custom_call.1} parent=31 // pred_check
          %p205 = pneg %p38
        $region34: #{tpu_custom_call.1} parent=31 // pred_check_branch
          %207 = sbr.rel (%p205) target = $region36
        $region35: #{tpu_custom_call.1} parent=31 // pred_region
          %s208 = sand.u32 %s28, 1
          %s209 = scalar_lea.sflag [#allocation5], %s208
          %s210 = sand.u32 %s28, 1
          %s211 = smul.addr %s210, 256
          %s212 = scalar_lea.vmem [#allocation4], %s211
          %s214 = ssub.s32 4096, 4096
          %215 = vsyncadd %s209, %s214
          %s216 = smul.addr %s18, 32
          %s217 = smul.addr %s216, 128
          %s218 = scalar_lea.hbm %s0, %s217
          %s219 = sshll.u32 %s212, 4
          %s220 = int_to_ptr.vmem [resolvable:$true] %s219
          %225 = dma.hbm_to_vmem [thread:$0]  %s218, 4096, %s220, %s209, 128, 128, 8
        $region36: #{tpu_custom_call.1} parent=31 // pred_fallthru
          _
      $region32: #{tpu_custom_call.1} parent=5 // pred_fallthru
        _
      %p226 = scmp.le.s32.totalorder 1, %s18
      %p227 = scmp.lt.s32.totalorder %s18, 3
      %p228 = pnand %p226, %p227
      %p229 = pneg %p228
      // Predicated region
      $region37: #{tpu_custom_call.1} parent=5 // pred_check
        _
      $region38: #{tpu_custom_call.1} parent=5 // pred_check_branch
        %231 = sbr.rel (%p228) target = $region40
      $region39: #{tpu_custom_call.1} parent=5 // pred_region
        %s232 = ssub.s32 %s18, 1
        %s233 = sand.u32 %s31, 1
        %s234 = scalar_lea.sflag [#allocation5], %s233
        %s235 = sand.u32 %s31, 1
        %s236 = smul.addr %s235, 256
        %s237 = scalar_lea.vmem [#allocation4], %s236
        // Predicated region
        $region41: #{tpu_custom_call.1} parent=39 // pred_check
          %p238 = pneg %p44
        $region42: #{tpu_custom_call.1} parent=39 // pred_check_branch
          %240 = sbr.rel (%p238) target = $region44
        $region43: #{tpu_custom_call.1} parent=39 // pred_region
          %241 = dma.done %s234, 4096
        $region44: #{tpu_custom_call.1} parent=39 // pred_fallthru
          _
        // Predicated region
        $region45: #{tpu_custom_call.1} parent=39 // pred_check
          %p242 = pneg %p65
        $region46: #{tpu_custom_call.1} parent=39 // pred_check_branch
          %244 = sbr.rel (%p242) target = $region48
        $region47: #{tpu_custom_call.1} parent=39 // pred_region
          %245 = dma.done [#allocation8], 2048
        $region48: #{tpu_custom_call.1} parent=39 // pred_fallthru
          _
        // Predicated region
        $region49: #{tpu_custom_call.1} parent=39 // pred_check
          %p246 = pneg %p107
        $region50: #{tpu_custom_call.1} parent=39 // pred_check_branch
          %248 = sbr.rel (%p246) target = $region52
        $region51: #{tpu_custom_call.1} parent=39 // pred_region
          %249 = dma.done [#allocation8], 18432
        $region52: #{tpu_custom_call.1} parent=39 // pred_fallthru
          _
        %s250 = sand.u32 %s31, 1
        %s251 = scalar_lea.sflag [#allocation5], %s250
        %s252 = sand.u32 %s31, 1
        %s253 = smul.addr %s252, 256
        %s254 = scalar_lea.vmem [#allocation4], %s253
        %p255 = pneg %p44
        %p256 = pneg %p41
        %p257 = pneg %p65
        %p258 = pneg %p62
        %p259 = pneg %p86
        %p260 = pneg %p83
        %p261 = pneg %p107
        %p262 = pneg %p104
        %p263 = pneg %p128
        %p264 = pneg %p125
        %p265 = pneg %p154
        %p266 = pneg %p151
        %s267 = sand.u32 %s141, 1
        %s268 = scalar_lea.sflag [#allocation6], %s267
        %s269 = sand.u32 %s141, 1
        %s270 = smul.addr %s269, 256
        %s271 = scalar_lea.vmem [#allocation10], %s270
        %v272 = vld [vmem:[%s237] sm:$0xff]
        %v273 = vld [vmem:[%s237 + $0x8] sm:$0xff]
        %v274 = vld [vmem:[%s237 + $0x10] sm:$0xff]
        %v275 = vld [vmem:[%s237 + $0x18] sm:$0xff]
        %v276 = vld [vmem:[%s237 + $0x20] sm:$0xff]
        %v277 = vld [vmem:[%s237 + $0x28] sm:$0xff]
        %v278 = vld [vmem:[%s237 + $0x30] sm:$0xff]
        %v279 = vld [vmem:[%s237 + $0x38] sm:$0xff]
        %v280 = vld [vmem:[%s237 + $0x40] sm:$0xff]
        %v281 = vld [vmem:[%s237 + $0x48] sm:$0xff]
        %v282 = vld [vmem:[%s237 + $0x50] sm:$0xff]
        %v283 = vld [vmem:[%s237 + $0x58] sm:$0xff]
        %v284 = vld [vmem:[%s237 + $0x60] sm:$0xff]
        %v285 = vld [vmem:[%s237 + $0x68] sm:$0xff]
        %v286 = vld [vmem:[%s237 + $0x70] sm:$0xff]
        %v287 = vld [vmem:[%s237 + $0x78] sm:$0xff]
        %v288 = vld [vmem:[%s237 + $0x80] sm:$0xff]
        %v289 = vld [vmem:[%s237 + $0x88] sm:$0xff]
        %v290 = vld [vmem:[%s237 + $0x90] sm:$0xff]
        %v291 = vld [vmem:[%s237 + $0x98] sm:$0xff]
        %v292 = vld [vmem:[%s237 + $0xa0] sm:$0xff]
        %v293 = vld [vmem:[%s237 + $0xa8] sm:$0xff]
        %v294 = vld [vmem:[%s237 + $0xb0] sm:$0xff]
        %v295 = vld [vmem:[%s237 + $0xb8] sm:$0xff]
        %v296 = vld [vmem:[%s237 + $0xc0] sm:$0xff]
        %v297 = vld [vmem:[%s237 + $0xc8] sm:$0xff]
        %v298 = vld [vmem:[%s237 + $0xd0] sm:$0xff]
        %v299 = vld [vmem:[%s237 + $0xd8] sm:$0xff]
        %v300 = vld [vmem:[%s237 + $0xe0] sm:$0xff]
        %v301 = vld [vmem:[%s237 + $0xe8] sm:$0xff]
        %v302 = vld [vmem:[%s237 + $0xf0] sm:$0xff]
        %v303 = vld [vmem:[%s237 + $0xf8] sm:$0xff]
        %v304 = vld [vmem:[#allocation7] sm:$0xff]
        %v305 = vld [vmem:[#allocation7 + $0x8] sm:$0xff]
        %v306 = vld [vmem:[#allocation7 + $0x10] sm:$0xff]
        %v307 = vld [vmem:[#allocation7 + $0x18] sm:$0xff]
        %v308 = vld [vmem:[#allocation7 + $0x20] sm:$0xff]
        %v309 = vld [vmem:[#allocation7 + $0x28] sm:$0xff]
        %v310 = vld [vmem:[#allocation7 + $0x30] sm:$0xff]
        %v311 = vld [vmem:[#allocation7 + $0x38] sm:$0xff]
        %v312 = vld [vmem:[#allocation7 + $0x40] sm:$0xff]
        %v313 = vld [vmem:[#allocation7 + $0x48] sm:$0xff]
        %v314 = vld [vmem:[#allocation7 + $0x50] sm:$0xff]
        %v315 = vld [vmem:[#allocation7 + $0x58] sm:$0xff]
        %v316 = vld [vmem:[#allocation7 + $0x60] sm:$0xff]
        %v317 = vld [vmem:[#allocation7 + $0x68] sm:$0xff]
        %v318 = vld [vmem:[#allocation7 + $0x70] sm:$0xff]
        %v319 = vld [vmem:[#allocation7 + $0x78] sm:$0xff]
        %320 = vmatprep.subr.mxu0 0.0
        %321 = vmatpush1.msra.mxu0 %v304
        %322 = vmatprep.subr.mxu0 0.0
        %323 = vmatpush1.msra.mxu0 %v305
        %324 = vmatprep.subr.mxu0 0.0
        %325 = vmatpush1.msra.mxu0 %v306
        %326 = vmatprep.subr.mxu0 0.0
        %327 = vmatpush1.msra.mxu0 %v307
        %328 = vmatprep.subr.mxu0 0.0
        %329 = vmatpush1.msra.mxu0 %v308
        %330 = vmatprep.subr.mxu0 0.0
        %331 = vmatpush1.msra.mxu0 %v309
        %332 = vmatprep.subr.mxu0 0.0
        %333 = vmatpush1.msra.mxu0 %v310
        %334 = vmatprep.subr.mxu0 0.0
        %335 = vmatpush1.msra.mxu0 %v311
        %336 = vmatprep.subr.mxu0 0.0
        %337 = vmatpush1.msra.mxu0 %v312
        %338 = vmatprep.subr.mxu0 0.0
        %339 = vmatpush1.msra.mxu0 %v313
        %340 = vmatprep.subr.mxu0 0.0
        %341 = vmatpush1.msra.mxu0 %v314
        %342 = vmatprep.subr.mxu0 0.0
        %343 = vmatpush1.msra.mxu0 %v315
        %344 = vmatprep.subr.mxu0 0.0
        %345 = vmatpush1.msra.mxu0 %v316
        %346 = vmatprep.subr.mxu0 0.0
        %347 = vmatpush1.msra.mxu0 %v317
        %348 = vmatprep.subr.mxu0 0.0
        %349 = vmatpush1.msra.mxu0 %v318
        %350 = vmatprep.subr.mxu0 0.0
        %351 = vmatpush1.msra.mxu0 %v319
        %352 = vmatprep.subr.mxu0 0.0
        %353 = vmatpush1.msra.mxu0 0.0
        %354 = vmatprep.subr.mxu0 0.0
        %355 = vmatpush1.msra.mxu0 0.0
        %356 = vmatprep.subr.mxu0 0.0
        %357 = vmatpush1.msra.mxu0 0.0
        %358 = vmatprep.subr.mxu0 0.0
        %359 = vmatpush1.msra.mxu0 0.0
        %360 = vmatprep.subr.mxu0 0.0
        %361 = vmatpush1.msra.mxu0 0.0
        %362 = vmatprep.subr.mxu0 0.0
        %363 = vmatpush1.msra.mxu0 0.0
        %364 = vmatprep.subr.mxu0 0.0
        %365 = vmatpush1.msra.mxu0 0.0
        %366 = vmatprep.subr.mxu0 0.0
        %367 = vmatpush1.msra.mxu0 0.0
        %368 = vmatprep.subr.mxu0 0.0
        %369 = vmatpush1.msra.mxu0 0.0
        %370 = vmatprep.subr.mxu0 0.0
        %371 = vmatpush1.msra.mxu0 0.0
        %372 = vmatprep.subr.mxu0 0.0
        %373 = vmatpush1.msra.mxu0 0.0
        %374 = vmatprep.subr.mxu0 0.0
        %375 = vmatpush1.msra.mxu0 0.0
        %376 = vmatprep.subr.mxu0 0.0
        %377 = vmatpush1.msra.mxu0 0.0
        %378 = vmatprep.subr.mxu0 0.0
        %379 = vmatpush1.msra.mxu0 0.0
        %380 = vmatprep.subr.mxu0 0.0
        %381 = vmatpush1.msra.mxu0 0.0
        %382 = vmatprep.subr.mxu0 0.0
        %383 = vmatpush1.msra.mxu0 0.0
        %384 = vmatprep.mubr.f32.mxu0 0.0
        %385 = vmatmul.mubr.f32.gmra.mrb[0].mxu0 %v272
        %v386 = vpop.f32.mrb[0].mxu0
        %v387 = vadd.f32 0.0, %v386
        %v388 = vpop.f32.mrb[0].mxu0
        %389 = vmatprep.mubr.f32.mxu0 0.0
        %390 = vmatmul.mubr.f32.gmra.mrb[0].mxu0 %v273
        %v391 = vpop.f32.mrb[0].mxu0
        %v392 = vadd.f32 0.0, %v391
        %v393 = vpop.f32.mrb[0].mxu0
        %394 = vmatprep.mubr.f32.mxu0 0.0
        %395 = vmatmul.mubr.f32.gmra.mrb[0].mxu0 %v274
        %v396 = vpop.f32.mrb[0].mxu0
        %v397 = vadd.f32 0.0, %v396
        %v398 = vpop.f32.mrb[0].mxu0
        %399 = vmatprep.mubr.f32.mxu0 0.0
        %400 = vmatmul.mubr.f32.gmra.mrb[0].mxu0 %v275
        %v401 = vpop.f32.mrb[0].mxu0
        %v402 = vadd.f32 0.0, %v401
        %v403 = vpop.f32.mrb[0].mxu0
        %404 = vmatprep.mubr.f32.mxu0 0.0
        %405 = vmatmul.mubr.f32.gmra.mrb[0].mxu0 %v276
        %v406 = vpop.f32.mrb[0].mxu0
        %v407 = vadd.f32 0.0, %v406
        %v408 = vpop.f32.mrb[0].mxu0
        %409 = vmatprep.mubr.f32.mxu0 0.0
        %410 = vmatmul.mubr.f32.gmra.mrb[0].mxu0 %v277
        %v411 = vpop.f32.mrb[0].mxu0
        %v412 = vadd.f32 0.0, %v411
        %v413 = vpop.f32.mrb[0].mxu0
        %414 = vmatprep.mubr.f32.mxu0 0.0
        %415 = vmatmul.mubr.f32.gmra.mrb[0].mxu0 %v278
        %v416 = vpop.f32.mrb[0].mxu0
        %v417 = vadd.f32 0.0, %v416
        %v418 = vpop.f32.mrb[0].mxu0
        %419 = vmatprep.mubr.f32.mxu0 0.0
        %420 = vmatmul.mubr.f32.gmra.mrb[0].mxu0 %v279
        %v421 = vpop.f32.mrb[0].mxu0
        %v422 = vadd.f32 0.0, %v421
        %v423 = vpop.f32.mrb[0].mxu0
        %424 = vmatprep.mubr.f32.mxu0 0.0
        %425 = vmatmul.mubr.f32.gmra.mrb[0].mxu0 %v280
        %v426 = vpop.f32.mrb[0].mxu0
        %v427 = vadd.f32 0.0, %v426
        %v428 = vpop.f32.mrb[0].mxu0
        %429 = vmatprep.mubr.f32.mxu0 0.0
        %430 = vmatmul.mubr.f32.gmra.mrb[0].mxu0 %v281
        %v431 = vpop.f32.mrb[0].mxu0
        %v432 = vadd.f32 0.0, %v431
        %v433 = vpop.f32.mrb[0].mxu0
        %434 = vmatprep.mubr.f32.mxu0 0.0
        %435 = vmatmul.mubr.f32.gmra.mrb[0].mxu0 %v282
        %v436 = vpop.f32.mrb[0].mxu0
        %v437 = vadd.f32 0.0, %v436
        %v438 = vpop.f32.mrb[0].mxu0
        %439 = vmatprep.mubr.f32.mxu0 0.0
        %440 = vmatmul.mubr.f32.gmra.mrb[0].mxu0 %v283
        %v441 = vpop.f32.mrb[0].mxu0
        %v442 = vadd.f32 0.0, %v441
        %v443 = vpop.f32.mrb[0].mxu0
        %444 = vmatprep.mubr.f32.mxu0 0.0
        %445 = vmatmul.mubr.f32.gmra.mrb[0].mxu0 %v284
        %v446 = vpop.f32.mrb[0].mxu0
        %v447 = vadd.f32 0.0, %v446
        %v448 = vpop.f32.mrb[0].mxu0
        %449 = vmatprep.mubr.f32.mxu0 0.0
        %450 = vmatmul.mubr.f32.gmra.mrb[0].mxu0 %v285
        %v451 = vpop.f32.mrb[0].mxu0
        %v452 = vadd.f32 0.0, %v451
        %v453 = vpop.f32.mrb[0].mxu0
        %454 = vmatprep.mubr.f32.mxu0 0.0
        %455 = vmatmul.mubr.f32.gmra.mrb[0].mxu0 %v286
        %v456 = vpop.f32.mrb[0].mxu0
        %v457 = vadd.f32 0.0, %v456
        %v458 = vpop.f32.mrb[0].mxu0
        %459 = vmatprep.mubr.f32.mxu0 0.0
        %460 = vmatmul.mubr.f32.gmra.mrb[0].mxu0 %v287
        %v461 = vpop.f32.mrb[0].mxu0
        %v462 = vadd.f32 0.0, %v461
        %v463 = vpop.f32.mrb[0].mxu0
        %464 = vmatprep.mubr.f32.mxu0 0.0
        %465 = vmatmul.mubr.f32.gmra.mrb[0].mxu0 %v288
        %v466 = vpop.f32.mrb[0].mxu0
        %v467 = vadd.f32 0.0, %v466
        %v468 = vpop.f32.mrb[0].mxu0
        %469 = vmatprep.mubr.f32.mxu0 0.0
        %470 = vmatmul.mubr.f32.gmra.mrb[0].mxu0 %v289
        %v471 = vpop.f32.mrb[0].mxu0
        %v472 = vadd.f32 0.0, %v471
        %v473 = vpop.f32.mrb[0].mxu0
        %474 = vmatprep.mubr.f32.mxu0 0.0
        %475 = vmatmul.mubr.f32.gmra.mrb[0].mxu0 %v290
        %v476 = vpop.f32.mrb[0].mxu0
        %v477 = vadd.f32 0.0, %v476
        %v478 = vpop.f32.mrb[0].mxu0
        %479 = vmatprep.mubr.f32.mxu0 0.0
        %480 = vmatmul.mubr.f32.gmra.mrb[0].mxu0 %v291
        %v481 = vpop.f32.mrb[0].mxu0
        %v482 = vadd.f32 0.0, %v481
        %v483 = vpop.f32.mrb[0].mxu0
        %484 = vmatprep.mubr.f32.mxu0 0.0
        %485 = vmatmul.mubr.f32.gmra.mrb[0].mxu0 %v292
        %v486 = vpop.f32.mrb[0].mxu0
        %v487 = vadd.f32 0.0, %v486
        %v488 = vpop.f32.mrb[0].mxu0
        %489 = vmatprep.mubr.f32.mxu0 0.0
        %490 = vmatmul.mubr.f32.gmra.mrb[0].mxu0 %v293
        %v491 = vpop.f32.mrb[0].mxu0
        %v492 = vadd.f32 0.0, %v491
        %v493 = vpop.f32.mrb[0].mxu0
        %494 = vmatprep.mubr.f32.mxu0 0.0
        %495 = vmatmul.mubr.f32.gmra.mrb[0].mxu0 %v294
        %v496 = vpop.f32.mrb[0].mxu0
        %v497 = vadd.f32 0.0, %v496
        %v498 = vpop.f32.mrb[0].mxu0
        %499 = vmatprep.mubr.f32.mxu0 0.0
        %500 = vmatmul.mubr.f32.gmra.mrb[0].mxu0 %v295
        %v501 = vpop.f32.mrb[0].mxu0
        %v502 = vadd.f32 0.0, %v501
        %v503 = vpop.f32.mrb[0].mxu0
        %504 = vmatprep.mubr.f32.mxu0 0.0
        %505 = vmatmul.mubr.f32.gmra.mrb[0].mxu0 %v296
        %v506 = vpop.f32.mrb[0].mxu0
        %v507 = vadd.f32 0.0, %v506
        %v508 = vpop.f32.mrb[0].mxu0
        %509 = vmatprep.mubr.f32.mxu0 0.0
        %510 = vmatmul.mubr.f32.gmra.mrb[0].mxu0 %v297
        %v511 = vpop.f32.mrb[0].mxu0
        %v512 = vadd.f32 0.0, %v511
        %v513 = vpop.f32.mrb[0].mxu0
        %514 = vmatprep.mubr.f32.mxu0 0.0
        %515 = vmatmul.mubr.f32.gmra.mrb[0].mxu0 %v298
        %v516 = vpop.f32.mrb[0].mxu0
        %v517 = vadd.f32 0.0, %v516
        %v518 = vpop.f32.mrb[0].mxu0
        %519 = vmatprep.mubr.f32.mxu0 0.0
        %520 = vmatmul.mubr.f32.gmra.mrb[0].mxu0 %v299
        %v521 = vpop.f32.mrb[0].mxu0
        %v522 = vadd.f32 0.0, %v521
        %v523 = vpop.f32.mrb[0].mxu0
        %524 = vmatprep.mubr.f32.mxu0 0.0
        %525 = vmatmul.mubr.f32.gmra.mrb[0].mxu0 %v300
        %v526 = vpop.f32.mrb[0].mxu0
        %v527 = vadd.f32 0.0, %v526
        %v528 = vpop.f32.mrb[0].mxu0
        %529 = vmatprep.mubr.f32.mxu0 0.0
        %530 = vmatmul.mubr.f32.gmra.mrb[0].mxu0 %v301
        %v531 = vpop.f32.mrb[0].mxu0
        %v532 = vadd.f32 0.0, %v531
        %v533 = vpop.f32.mrb[0].mxu0
        %534 = vmatprep.mubr.f32.mxu0 0.0
        %535 = vmatmul.mubr.f32.gmra.mrb[0].mxu0 %v302
        %v536 = vpop.f32.mrb[0].mxu0
        %v537 = vadd.f32 0.0, %v536
        %v538 = vpop.f32.mrb[0].mxu0
        %539 = vmatprep.mubr.f32.mxu0 0.0
        %540 = vmatmul.mubr.f32.gmra.mrb[0].mxu0 %v303
        %v541 = vpop.f32.mrb[0].mxu0
        %v542 = vadd.f32 0.0, %v541
        %v543 = vpop.f32.mrb[0].mxu0
        %544 = vdwg.mxu0
        %545 = vst [vmem:[#allocation3] sm:$0xff] %v387
        %546 = vst [vmem:[#allocation3 + $0x8] sm:$0xff] %v392
        %547 = vst [vmem:[#allocation3 + $0x10] sm:$0xff] %v397
        %548 = vst [vmem:[#allocation3 + $0x18] sm:$0xff] %v402
        %549 = vst [vmem:[#allocation3 + $0x20] sm:$0xff] %v407
        %550 = vst [vmem:[#allocation3 + $0x28] sm:$0xff] %v412
        %551 = vst [vmem:[#allocation3 + $0x30] sm:$0xff] %v417
        %552 = vst [vmem:[#allocation3 + $0x38] sm:$0xff] %v422
        %553 = vst [vmem:[#allocation3 + $0x40] sm:$0xff] %v427
        %554 = vst [vmem:[#allocation3 + $0x48] sm:$0xff] %v432
        %555 = vst [vmem:[#allocation3 + $0x50] sm:$0xff] %v437
        %556 = vst [vmem:[#allocation3 + $0x58] sm:$0xff] %v442
        %557 = vst [vmem:[#allocation3 + $0x60] sm:$0xff] %v447
        %558 = vst [vmem:[#allocation3 + $0x68] sm:$0xff] %v452
        %559 = vst [vmem:[#allocation3 + $0x70] sm:$0xff] %v457
        %560 = vst [vmem:[#allocation3 + $0x78] sm:$0xff] %v462
        %561 = vst [vmem:[#allocation3 + $0x80] sm:$0xff] %v467
        %562 = vst [vmem:[#allocation3 + $0x88] sm:$0xff] %v472
        %563 = vst [vmem:[#allocation3 + $0x90] sm:$0xff] %v477
        %564 = vst [vmem:[#allocation3 + $0x98] sm:$0xff] %v482
        %565 = vst [vmem:[#allocation3 + $0xa0] sm:$0xff] %v487
        %566 = vst [vmem:[#allocation3 + $0xa8] sm:$0xff] %v492
        %567 = vst [vmem:[#allocation3 + $0xb0] sm:$0xff] %v497
        %568 = vst [vmem:[#allocation3 + $0xb8] sm:$0xff] %v502
        %569 = vst [vmem:[#allocation3 + $0xc0] sm:$0xff] %v507
        %570 = vst [vmem:[#allocation3 + $0xc8] sm:$0xff] %v512
        %571 = vst [vmem:[#allocation3 + $0xd0] sm:$0xff] %v517
        %572 = vst [vmem:[#allocation3 + $0xd8] sm:$0xff] %v522
        %573 = vst [vmem:[#allocation3 + $0xe0] sm:$0xff] %v527
        %574 = vst [vmem:[#allocation3 + $0xe8] sm:$0xff] %v532
        %575 = vst [vmem:[#allocation3 + $0xf0] sm:$0xff] %v537
        %576 = vst [vmem:[#allocation3 + $0xf8] sm:$0xff] %v542
        %v577 = vld [vmem:[#allocation3] sm:$0xff]
        %v578 = vld [vmem:[#allocation3 + $0x8] sm:$0xff]
        %v579 = vld [vmem:[#allocation3 + $0x10] sm:$0xff]
        %v580 = vld [vmem:[#allocation3 + $0x18] sm:$0xff]
        %v581 = vld [vmem:[#allocation3 + $0x20] sm:$0xff]
        %v582 = vld [vmem:[#allocation3 + $0x28] sm:$0xff]
        %v583 = vld [vmem:[#allocation3 + $0x30] sm:$0xff]
        %v584 = vld [vmem:[#allocation3 + $0x38] sm:$0xff]
        %v585 = vld [vmem:[#allocation3 + $0x40] sm:$0xff]
        %v586 = vld [vmem:[#allocation3 + $0x48] sm:$0xff]
        %v587 = vld [vmem:[#allocation3 + $0x50] sm:$0xff]
        %v588 = vld [vmem:[#allocation3 + $0x58] sm:$0xff]
        %v589 = vld [vmem:[#allocation3 + $0x60] sm:$0xff]
        %v590 = vld [vmem:[#allocation3 + $0x68] sm:$0xff]
        %v591 = vld [vmem:[#allocation3 + $0x70] sm:$0xff]
        %v592 = vld [vmem:[#allocation3 + $0x78] sm:$0xff]
        %v593 = vld [vmem:[#allocation3 + $0x80] sm:$0xff]
        %v594 = vld [vmem:[#allocation3 + $0x88] sm:$0xff]
        %v595 = vld [vmem:[#allocation3 + $0x90] sm:$0xff]
        %v596 = vld [vmem:[#allocation3 + $0x98] sm:$0xff]
        %v597 = vld [vmem:[#allocation3 + $0xa0] sm:$0xff]
        %v598 = vld [vmem:[#allocation3 + $0xa8] sm:$0xff]
        %v599 = vld [vmem:[#allocation3 + $0xb0] sm:$0xff]
        %v600 = vld [vmem:[#allocation3 + $0xb8] sm:$0xff]
        %v601 = vld [vmem:[#allocation3 + $0xc0] sm:$0xff]
        %v602 = vld [vmem:[#allocation3 + $0xc8] sm:$0xff]
        %v603 = vld [vmem:[#allocation3 + $0xd0] sm:$0xff]
        %v604 = vld [vmem:[#allocation3 + $0xd8] sm:$0xff]
        %v605 = vld [vmem:[#allocation3 + $0xe0] sm:$0xff]
        %v606 = vld [vmem:[#allocation3 + $0xe8] sm:$0xff]
        %v607 = vld [vmem:[#allocation3 + $0xf0] sm:$0xff]
        %v608 = vld [vmem:[#allocation3 + $0xf8] sm:$0xff]
        %v609 = vld [vmem:[%s2] sm:$0x1]
        %v611 = vlaneseq
        %v612 = vshrl.u32 %v611, 7
        %v613 = vsub.s32 0, %v612
        %v614 = vrot.slane %v609, %v613
        %v616 = vadd.f32 %v577, %v614
        %v617 = vadd.f32 %v578, %v614
        %v618 = vadd.f32 %v579, %v614
        %v619 = vadd.f32 %v580, %v614
        %v620 = vadd.f32 %v581, %v614
        %v621 = vadd.f32 %v582, %v614
        %v622 = vadd.f32 %v583, %v614
        %v623 = vadd.f32 %v584, %v614
        %v624 = vadd.f32 %v585, %v614
        %v625 = vadd.f32 %v586, %v614
        %v626 = vadd.f32 %v587, %v614
        %v627 = vadd.f32 %v588, %v614
        %v628 = vadd.f32 %v589, %v614
        %v629 = vadd.f32 %v590, %v614
        %v630 = vadd.f32 %v591, %v614
        %v631 = vadd.f32 %v592, %v614
        %v632 = vadd.f32 %v593, %v614
        %v633 = vadd.f32 %v594, %v614
        %v634 = vadd.f32 %v595, %v614
        %v635 = vadd.f32 %v596, %v614
        %v636 = vadd.f32 %v597, %v614
        %v637 = vadd.f32 %v598, %v614
        %v638 = vadd.f32 %v599, %v614
        %v639 = vadd.f32 %v600, %v614
        %v640 = vadd.f32 %v601, %v614
        %v641 = vadd.f32 %v602, %v614
        %v642 = vadd.f32 %v603, %v614
        %v643 = vadd.f32 %v604, %v614
        %v644 = vadd.f32 %v605, %v614
        %v645 = vadd.f32 %v606, %v614
        %v646 = vadd.f32 %v607, %v614
        %v647 = vadd.f32 %v608, %v614
        %v648 = vmax.f32 %v616, 0.0
        %v649 = vmax.f32 %v617, 0.0
        %v650 = vmax.f32 %v618, 0.0
        %v651 = vmax.f32 %v619, 0.0
        %v652 = vmax.f32 %v620, 0.0
        %v653 = vmax.f32 %v621, 0.0
        %v654 = vmax.f32 %v622, 0.0
        %v655 = vmax.f32 %v623, 0.0
        %v656 = vmax.f32 %v624, 0.0
        %v657 = vmax.f32 %v625, 0.0
        %v658 = vmax.f32 %v626, 0.0
        %v659 = vmax.f32 %v627, 0.0
        %v660 = vmax.f32 %v628, 0.0
        %v661 = vmax.f32 %v629, 0.0
        %v662 = vmax.f32 %v630, 0.0
        %v663 = vmax.f32 %v631, 0.0
        %v664 = vmax.f32 %v632, 0.0
        %v665 = vmax.f32 %v633, 0.0
        %v666 = vmax.f32 %v634, 0.0
        %v667 = vmax.f32 %v635, 0.0
        %v668 = vmax.f32 %v636, 0.0
        %v669 = vmax.f32 %v637, 0.0
        %v670 = vmax.f32 %v638, 0.0
        %v671 = vmax.f32 %v639, 0.0
        %v672 = vmax.f32 %v640, 0.0
        %v673 = vmax.f32 %v641, 0.0
        %v674 = vmax.f32 %v642, 0.0
        %v675 = vmax.f32 %v643, 0.0
        %v676 = vmax.f32 %v644, 0.0
        %v677 = vmax.f32 %v645, 0.0
        %v678 = vmax.f32 %v646, 0.0
        %v679 = vmax.f32 %v647, 0.0
        %680 = vst [vmem:[#allocation2] sm:$0xff] 0.0
        %681 = vst [vmem:[#allocation2 + $0x8] sm:$0xff] 0.0
        %682 = vst [vmem:[#allocation2 + $0x10] sm:$0xff] 0.0
        %s683 = scalar_lea.vmem [#allocation2], 408
        %684 = vst [vmem:[%s683] sm:$0xff] 0.0
        %685 = vst [vmem:[%s683 + $0x8] sm:$0xff] 0.0
        %686 = vst [vmem:[%s683 + $0x10] sm:$0xff] 0.0
        %s687 = scalar_lea.vmem [#allocation2], 24
        %688 = vst [vmem:[%s687] sm:$0x1] 0.0
        %689 = vst [vmem:[%s687 + $0x18] sm:$0x1] 0.0
        %690 = vst [vmem:[%s687 + $0x30] sm:$0x1] 0.0
        %691 = vst [vmem:[%s687 + $0x48] sm:$0x1] 0.0
        %692 = vst [vmem:[%s687 + $0x60] sm:$0x1] 0.0
        %693 = vst [vmem:[%s687 + $0x78] sm:$0x1] 0.0
        %694 = vst [vmem:[%s687 + $0x90] sm:$0x1] 0.0
        %695 = vst [vmem:[%s687 + $0xa8] sm:$0x1] 0.0
        %696 = vst [vmem:[%s687 + $0xc0] sm:$0x1] 0.0
        %697 = vst [vmem:[%s687 + $0xd8] sm:$0x1] 0.0
        %698 = vst [vmem:[%s687 + $0xf0] sm:$0x1] 0.0
        %699 = vst [vmem:[%s687 + $0x108] sm:$0x1] 0.0
        %700 = vst [vmem:[%s687 + $0x120] sm:$0x1] 0.0
        %701 = vst [vmem:[%s687 + $0x138] sm:$0x1] 0.0
        %702 = vst [vmem:[%s687 + $0x150] sm:$0x1] 0.0
        %703 = vst [vmem:[%s687 + $0x168] sm:$0x1] 0.0
        %704 = vst [vmem:[%s687 + $0x11] sm:$0x1] 0.0
        %705 = vst [vmem:[%s687 + $0x29] sm:$0x1] 0.0
        %706 = vst [vmem:[%s687 + $0x41] sm:$0x1] 0.0
        %707 = vst [vmem:[%s687 + $0x59] sm:$0x1] 0.0
        %708 = vst [vmem:[%s687 + $0x71] sm:$0x1] 0.0
        %709 = vst [vmem:[%s687 + $0x89] sm:$0x1] 0.0
        %710 = vst [vmem:[%s687 + $0xa1] sm:$0x1] 0.0
        %711 = vst [vmem:[%s687 + $0xb9] sm:$0x1] 0.0
        %712 = vst [vmem:[%s687 + $0xd1] sm:$0x1] 0.0
        %713 = vst [vmem:[%s687 + $0xe9] sm:$0x1] 0.0
        %714 = vst [vmem:[%s687 + $0x101] sm:$0x1] 0.0
        %715 = vst [vmem:[%s687 + $0x119] sm:$0x1] 0.0
        %716 = vst [vmem:[%s687 + $0x131] sm:$0x1] 0.0
        %717 = vst [vmem:[%s687 + $0x149] sm:$0x1] 0.0
        %718 = vst [vmem:[%s687 + $0x161] sm:$0x1] 0.0
        %719 = vst [vmem:[%s687 + $0x179] sm:$0x1] 0.0
        %720 = vst [vmem:[%s687 + $0x1] sm:$0xff] %v648
        %721 = vst [vmem:[%s687 + $0x9] sm:$0xff] %v649
        %722 = vst [vmem:[%s687 + $0x19] sm:$0xff] %v650
        %723 = vst [vmem:[%s687 + $0x21] sm:$0xff] %v651
        %724 = vst [vmem:[%s687 + $0x31] sm:$0xff] %v652
        %725 = vst [vmem:[%s687 + $0x39] sm:$0xff] %v653
        %726 = vst [vmem:[%s687 + $0x49] sm:$0xff] %v654
        %727 = vst [vmem:[%s687 + $0x51] sm:$0xff] %v655
        %728 = vst [vmem:[%s687 + $0x61] sm:$0xff] %v656
        %729 = vst [vmem:[%s687 + $0x69] sm:$0xff] %v657
        %730 = vst [vmem:[%s687 + $0x79] sm:$0xff] %v658
        %731 = vst [vmem:[%s687 + $0x81] sm:$0xff] %v659
        %732 = vst [vmem:[%s687 + $0x91] sm:$0xff] %v660
        %733 = vst [vmem:[%s687 + $0x99] sm:$0xff] %v661
        %734 = vst [vmem:[%s687 + $0xa9] sm:$0xff] %v662
        %735 = vst [vmem:[%s687 + $0xb1] sm:$0xff] %v663
        %736 = vst [vmem:[%s687 + $0xc1] sm:$0xff] %v664
        %737 = vst [vmem:[%s687 + $0xc9] sm:$0xff] %v665
        %738 = vst [vmem:[%s687 + $0xd9] sm:$0xff] %v666
        %739 = vst [vmem:[%s687 + $0xe1] sm:$0xff] %v667
        %740 = vst [vmem:[%s687 + $0xf1] sm:$0xff] %v668
        %741 = vst [vmem:[%s687 + $0xf9] sm:$0xff] %v669
        %742 = vst [vmem:[%s687 + $0x109] sm:$0xff] %v670
        %743 = vst [vmem:[%s687 + $0x111] sm:$0xff] %v671
        %744 = vst [vmem:[%s687 + $0x121] sm:$0xff] %v672
        %745 = vst [vmem:[%s687 + $0x129] sm:$0xff] %v673
        %746 = vst [vmem:[%s687 + $0x139] sm:$0xff] %v674
        %747 = vst [vmem:[%s687 + $0x141] sm:$0xff] %v675
        %748 = vst [vmem:[%s687 + $0x151] sm:$0xff] %v676
        %749 = vst [vmem:[%s687 + $0x159] sm:$0xff] %v677
        %750 = vst [vmem:[%s687 + $0x169] sm:$0xff] %v678
        %751 = vst [vmem:[%s687 + $0x171] sm:$0xff] %v679
        %v752 = vld [vmem:[#allocation2] sm:$0xff]
        %v753 = vld [vmem:[#allocation2 + $0x8] sm:$0xff]
        %v754 = vld [vmem:[#allocation2 + $0x18] sm:$0xff]
        %v755 = vld [vmem:[#allocation2 + $0x20] sm:$0xff]
        %v756 = vld [vmem:[#allocation2 + $0x30] sm:$0xff]
        %v757 = vld [vmem:[#allocation2 + $0x38] sm:$0xff]
        %v758 = vld [vmem:[#allocation2 + $0x48] sm:$0xff]
        %v759 = vld [vmem:[#allocation2 + $0x50] sm:$0xff]
        %v760 = vld [vmem:[#allocation2 + $0x60] sm:$0xff]
        %v761 = vld [vmem:[#allocation2 + $0x68] sm:$0xff]
        %v762 = vld [vmem:[#allocation2 + $0x78] sm:$0xff]
        %v763 = vld [vmem:[#allocation2 + $0x80] sm:$0xff]
        %v764 = vld [vmem:[#allocation2 + $0x90] sm:$0xff]
        %v765 = vld [vmem:[#allocation2 + $0x98] sm:$0xff]
        %v766 = vld [vmem:[#allocation2 + $0xa8] sm:$0xff]
        %v767 = vld [vmem:[#allocation2 + $0xb0] sm:$0xff]
        %v768 = vld [vmem:[#allocation2 + $0xc0] sm:$0xff]
        %v769 = vld [vmem:[#allocation2 + $0xc8] sm:$0xff]
        %v770 = vld [vmem:[#allocation2 + $0xd8] sm:$0xff]
        %v771 = vld [vmem:[#allocation2 + $0xe0] sm:$0xff]
        %v772 = vld [vmem:[#allocation2 + $0xf0] sm:$0xff]
        %v773 = vld [vmem:[#allocation2 + $0xf8] sm:$0xff]
        %v774 = vld [vmem:[#allocation2 + $0x108] sm:$0xff]
        %v775 = vld [vmem:[#allocation2 + $0x110] sm:$0xff]
        %v776 = vld [vmem:[#allocation2 + $0x120] sm:$0xff]
        %v777 = vld [vmem:[#allocation2 + $0x128] sm:$0xff]
        %v778 = vld [vmem:[#allocation2 + $0x138] sm:$0xff]
        %v779 = vld [vmem:[#allocation2 + $0x140] sm:$0xff]
        %v780 = vld [vmem:[#allocation2 + $0x150] sm:$0xff]
        %v781 = vld [vmem:[#allocation2 + $0x158] sm:$0xff]
        %v782 = vld [vmem:[#allocation2 + $0x168] sm:$0xff]
        %v783 = vld [vmem:[#allocation2 + $0x170] sm:$0xff]
        %v784 = vld [vmem:[#allocation9] sm:$0xff]
        %v785 = vld [vmem:[#allocation9 + $0x8] sm:$0xff]
        %v786 = vld [vmem:[#allocation9 + $0x10] sm:$0xff]
        %v787 = vld [vmem:[#allocation9 + $0x18] sm:$0xff]
        %v788 = vld [vmem:[#allocation9 + $0x20] sm:$0xff]
        %v789 = vld [vmem:[#allocation9 + $0x28] sm:$0xff]
        %v790 = vld [vmem:[#allocation9 + $0x30] sm:$0xff]
        %v791 = vld [vmem:[#allocation9 + $0x38] sm:$0xff]
        %v792 = vld [vmem:[#allocation9 + $0x40] sm:$0xff]
        %v793 = vld [vmem:[#allocation9 + $0x48] sm:$0xff]
        %v794 = vld [vmem:[#allocation9 + $0x50] sm:$0xff]
        %v795 = vld [vmem:[#allocation9 + $0x58] sm:$0xff]
        %v796 = vld [vmem:[#allocation9 + $0x60] sm:$0xff]
        %v797 = vld [vmem:[#allocation9 + $0x68] sm:$0xff]
        %v798 = vld [vmem:[#allocation9 + $0x70] sm:$0xff]
        %v799 = vld [vmem:[#allocation9 + $0x78] sm:$0xff]
        %800 = vmatprep.subr.mxu0 0.0
        %801 = vmatpush1.msra.mxu0 %v784
        %802 = vmatprep.subr.mxu0 0.0
        %803 = vmatpush1.msra.mxu0 %v785
        %804 = vmatprep.subr.mxu0 0.0
        %805 = vmatpush1.msra.mxu0 %v786
        %806 = vmatprep.subr.mxu0 0.0
        %807 = vmatpush1.msra.mxu0 %v787
        %808 = vmatprep.subr.mxu0 0.0
        %809 = vmatpush1.msra.mxu0 %v788
        %810 = vmatprep.subr.mxu0 0.0
        %811 = vmatpush1.msra.mxu0 %v789
        %812 = vmatprep.subr.mxu0 0.0
        %813 = vmatpush1.msra.mxu0 %v790
        %814 = vmatprep.subr.mxu0 0.0
        %815 = vmatpush1.msra.mxu0 %v791
        %816 = vmatprep.subr.mxu0 0.0
        %817 = vmatpush1.msra.mxu0 %v792
        %818 = vmatprep.subr.mxu0 0.0
        %819 = vmatpush1.msra.mxu0 %v793
        %820 = vmatprep.subr.mxu0 0.0
        %821 = vmatpush1.msra.mxu0 %v794
        %822 = vmatprep.subr.mxu0 0.0
        %823 = vmatpush1.msra.mxu0 %v795
        %824 = vmatprep.subr.mxu0 0.0
        %825 = vmatpush1.msra.mxu0 %v796
        %826 = vmatprep.subr.mxu0 0.0
        %827 = vmatpush1.msra.mxu0 %v797
        %828 = vmatprep.subr.mxu0 0.0
        %829 = vmatpush1.msra.mxu0 %v798
        %830 = vmatprep.subr.mxu0 0.0
        %831 = vmatpush1.msra.mxu0 %v799
        %832 = vmatprep.subr.mxu0 0.0
        %833 = vmatpush1.msra.mxu0 0.0
        %834 = vmatprep.subr.mxu0 0.0
        %835 = vmatpush1.msra.mxu0 0.0
        %836 = vmatprep.subr.mxu0 0.0
        %837 = vmatpush1.msra.mxu0 0.0
        %838 = vmatprep.subr.mxu0 0.0
        %839 = vmatpush1.msra.mxu0 0.0
        %840 = vmatprep.subr.mxu0 0.0
        %841 = vmatpush1.msra.mxu0 0.0
        %842 = vmatprep.subr.mxu0 0.0
        %843 = vmatpush1.msra.mxu0 0.0
        %844 = vmatprep.subr.mxu0 0.0
        %845 = vmatpush1.msra.mxu0 0.0
        %846 = vmatprep.subr.mxu0 0.0
        %847 = vmatpush1.msra.mxu0 0.0
        %848 = vmatprep.subr.mxu0 0.0
        %849 = vmatpush1.msra.mxu0 0.0
        %850 = vmatprep.subr.mxu0 0.0
        %851 = vmatpush1.msra.mxu0 0.0
        %852 = vmatprep.subr.mxu0 0.0
        %853 = vmatpush1.msra.mxu0 0.0
        %854 = vmatprep.subr.mxu0 0.0
        %855 = vmatpush1.msra.mxu0 0.0
        %856 = vmatprep.subr.mxu0 0.0
        %857 = vmatpush1.msra.mxu0 0.0
        %858 = vmatprep.subr.mxu0 0.0
        %859 = vmatpush1.msra.mxu0 0.0
        %860 = vmatprep.subr.mxu0 0.0
        %861 = vmatpush1.msra.mxu0 0.0
        %862 = vmatprep.subr.mxu0 0.0
        %863 = vmatpush1.msra.mxu0 0.0
        %864 = vmatprep.mubr.f32.mxu0 0.0
        %865 = vmatmul.mubr.f32.gmra.mrb[0].mxu0 %v752
        %v866 = vpop.f32.mrb[0].mxu0
        %v867 = vadd.f32 0.0, %v866
        %v868 = vpop.f32.mrb[0].mxu0
        %869 = vmatprep.mubr.f32.mxu0 0.0
        %870 = vmatmul.mubr.f32.gmra.mrb[0].mxu0 %v753
        %v871 = vpop.f32.mrb[0].mxu0
        %v872 = vadd.f32 0.0, %v871
        %v873 = vpop.f32.mrb[0].mxu0
        %874 = vmatprep.mubr.f32.mxu0 0.0
        %875 = vmatmul.mubr.f32.gmra.mrb[0].mxu0 %v754
        %v876 = vpop.f32.mrb[0].mxu0
        %v877 = vadd.f32 0.0, %v876
        %v878 = vpop.f32.mrb[0].mxu0
        %879 = vmatprep.mubr.f32.mxu0 0.0
        %880 = vmatmul.mubr.f32.gmra.mrb[0].mxu0 %v755
        %v881 = vpop.f32.mrb[0].mxu0
        %v882 = vadd.f32 0.0, %v881
        %v883 = vpop.f32.mrb[0].mxu0
        %884 = vmatprep.mubr.f32.mxu0 0.0
        %885 = vmatmul.mubr.f32.gmra.mrb[0].mxu0 %v756
        %v886 = vpop.f32.mrb[0].mxu0
        %v887 = vadd.f32 0.0, %v886
        %v888 = vpop.f32.mrb[0].mxu0
        %889 = vmatprep.mubr.f32.mxu0 0.0
        %890 = vmatmul.mubr.f32.gmra.mrb[0].mxu0 %v757
        %v891 = vpop.f32.mrb[0].mxu0
        %v892 = vadd.f32 0.0, %v891
        %v893 = vpop.f32.mrb[0].mxu0
        %894 = vmatprep.mubr.f32.mxu0 0.0
        %895 = vmatmul.mubr.f32.gmra.mrb[0].mxu0 %v758
        %v896 = vpop.f32.mrb[0].mxu0
        %v897 = vadd.f32 0.0, %v896
        %v898 = vpop.f32.mrb[0].mxu0
        %899 = vmatprep.mubr.f32.mxu0 0.0
        %900 = vmatmul.mubr.f32.gmra.mrb[0].mxu0 %v759
        %v901 = vpop.f32.mrb[0].mxu0
        %v902 = vadd.f32 0.0, %v901
        %v903 = vpop.f32.mrb[0].mxu0
        %904 = vmatprep.mubr.f32.mxu0 0.0
        %905 = vmatmul.mubr.f32.gmra.mrb[0].mxu0 %v760
        %v906 = vpop.f32.mrb[0].mxu0
        %v907 = vadd.f32 0.0, %v906
        %v908 = vpop.f32.mrb[0].mxu0
        %909 = vmatprep.mubr.f32.mxu0 0.0
        %910 = vmatmul.mubr.f32.gmra.mrb[0].mxu0 %v761
        %v911 = vpop.f32.mrb[0].mxu0
        %v912 = vadd.f32 0.0, %v911
        %v913 = vpop.f32.mrb[0].mxu0
        %914 = vmatprep.mubr.f32.mxu0 0.0
        %915 = vmatmul.mubr.f32.gmra.mrb[0].mxu0 %v762
        %v916 = vpop.f32.mrb[0].mxu0
        %v917 = vadd.f32 0.0, %v916
        %v918 = vpop.f32.mrb[0].mxu0
        %919 = vmatprep.mubr.f32.mxu0 0.0
        %920 = vmatmul.mubr.f32.gmra.mrb[0].mxu0 %v763
        %v921 = vpop.f32.mrb[0].mxu0
        %v922 = vadd.f32 0.0, %v921
        %v923 = vpop.f32.mrb[0].mxu0
        %924 = vmatprep.mubr.f32.mxu0 0.0
        %925 = vmatmul.mubr.f32.gmra.mrb[0].mxu0 %v764
        %v926 = vpop.f32.mrb[0].mxu0
        %v927 = vadd.f32 0.0, %v926
        %v928 = vpop.f32.mrb[0].mxu0
        %929 = vmatprep.mubr.f32.mxu0 0.0
        %930 = vmatmul.mubr.f32.gmra.mrb[0].mxu0 %v765
        %v931 = vpop.f32.mrb[0].mxu0
        %v932 = vadd.f32 0.0, %v931
        %v933 = vpop.f32.mrb[0].mxu0
        %934 = vmatprep.mubr.f32.mxu0 0.0
        %935 = vmatmul.mubr.f32.gmra.mrb[0].mxu0 %v766
        %v936 = vpop.f32.mrb[0].mxu0
        %v937 = vadd.f32 0.0, %v936
        %v938 = vpop.f32.mrb[0].mxu0
        %939 = vmatprep.mubr.f32.mxu0 0.0
        %940 = vmatmul.mubr.f32.gmra.mrb[0].mxu0 %v767
        %v941 = vpop.f32.mrb[0].mxu0
        %v942 = vadd.f32 0.0, %v941
        %v943 = vpop.f32.mrb[0].mxu0
        %944 = vmatprep.mubr.f32.mxu0 0.0
        %945 = vmatmul.mubr.f32.gmra.mrb[0].mxu0 %v768
        %v946 = vpop.f32.mrb[0].mxu0
        %v947 = vadd.f32 0.0, %v946
        %v948 = vpop.f32.mrb[0].mxu0
        %949 = vmatprep.mubr.f32.mxu0 0.0
        %950 = vmatmul.mubr.f32.gmra.mrb[0].mxu0 %v769
        %v951 = vpop.f32.mrb[0].mxu0
        %v952 = vadd.f32 0.0, %v951
        %v953 = vpop.f32.mrb[0].mxu0
        %954 = vmatprep.mubr.f32.mxu0 0.0
        %955 = vmatmul.mubr.f32.gmra.mrb[0].mxu0 %v770
        %v956 = vpop.f32.mrb[0].mxu0
        %v957 = vadd.f32 0.0, %v956
        %v958 = vpop.f32.mrb[0].mxu0
        %959 = vmatprep.mubr.f32.mxu0 0.0
        %960 = vmatmul.mubr.f32.gmra.mrb[0].mxu0 %v771
        %v961 = vpop.f32.mrb[0].mxu0
        %v962 = vadd.f32 0.0, %v961
        %v963 = vpop.f32.mrb[0].mxu0
        %964 = vmatprep.mubr.f32.mxu0 0.0
        %965 = vmatmul.mubr.f32.gmra.mrb[0].mxu0 %v772
        %v966 = vpop.f32.mrb[0].mxu0
        %v967 = vadd.f32 0.0, %v966
        %v968 = vpop.f32.mrb[0].mxu0
        %969 = vmatprep.mubr.f32.mxu0 0.0
        %970 = vmatmul.mubr.f32.gmra.mrb[0].mxu0 %v773
        %v971 = vpop.f32.mrb[0].mxu0
        %v972 = vadd.f32 0.0, %v971
        %v973 = vpop.f32.mrb[0].mxu0
        %974 = vmatprep.mubr.f32.mxu0 0.0
        %975 = vmatmul.mubr.f32.gmra.mrb[0].mxu0 %v774
        %v976 = vpop.f32.mrb[0].mxu0
        %v977 = vadd.f32 0.0, %v976
        %v978 = vpop.f32.mrb[0].mxu0
        %979 = vmatprep.mubr.f32.mxu0 0.0
        %980 = vmatmul.mubr.f32.gmra.mrb[0].mxu0 %v775
        %v981 = vpop.f32.mrb[0].mxu0
        %v982 = vadd.f32 0.0, %v981
        %v983 = vpop.f32.mrb[0].mxu0
        %984 = vmatprep.mubr.f32.mxu0 0.0
        %985 = vmatmul.mubr.f32.gmra.mrb[0].mxu0 %v776
        %v986 = vpop.f32.mrb[0].mxu0
        %v987 = vadd.f32 0.0, %v986
        %v988 = vpop.f32.mrb[0].mxu0
        %989 = vmatprep.mubr.f32.mxu0 0.0
        %990 = vmatmul.mubr.f32.gmra.mrb[0].mxu0 %v777
        %v991 = vpop.f32.mrb[0].mxu0
        %v992 = vadd.f32 0.0, %v991
        %v993 = vpop.f32.mrb[0].mxu0
        %994 = vmatprep.mubr.f32.mxu0 0.0
        %995 = vmatmul.mubr.f32.gmra.mrb[0].mxu0 %v778
        %v996 = vpop.f32.mrb[0].mxu0
        %v997 = vadd.f32 0.0, %v996
        %v998 = vpop.f32.mrb[0].mxu0
        %999 = vmatprep.mubr.f32.mxu0 0.0
        %1000 = vmatmul.mubr.f32.gmra.mrb[0].mxu0 %v779
        %v1001 = vpop.f32.mrb[0].mxu0
        %v1002 = vadd.f32 0.0, %v1001
        %v1003 = vpop.f32.mrb[0].mxu0
        %1004 = vmatprep.mubr.f32.mxu0 0.0
        %1005 = vmatmul.mubr.f32.gmra.mrb[0].mxu0 %v780
        %v1006 = vpop.f32.mrb[0].mxu0
        %v1007 = vadd.f32 0.0, %v1006
        %v1008 = vpop.f32.mrb[0].mxu0
        %1009 = vmatprep.mubr.f32.mxu0 0.0
        %1010 = vmatmul.mubr.f32.gmra.mrb[0].mxu0 %v781
        %v1011 = vpop.f32.mrb[0].mxu0
        %v1012 = vadd.f32 0.0, %v1011
        %v1013 = vpop.f32.mrb[0].mxu0
        %1014 = vmatprep.mubr.f32.mxu0 0.0
        %1015 = vmatmul.mubr.f32.gmra.mrb[0].mxu0 %v782
        %v1016 = vpop.f32.mrb[0].mxu0
        %v1017 = vadd.f32 0.0, %v1016
        %v1018 = vpop.f32.mrb[0].mxu0
        %1019 = vmatprep.mubr.f32.mxu0 0.0
        %1020 = vmatmul.mubr.f32.gmra.mrb[0].mxu0 %v783
        %v1021 = vpop.f32.mrb[0].mxu0
        %v1022 = vadd.f32 0.0, %v1021
        %v1023 = vpop.f32.mrb[0].mxu0
        %1024 = vdwg.mxu0
        %1025 = vst [vmem:[#allocation3] sm:$0xff] %v867
        %1026 = vst [vmem:[#allocation3 + $0x8] sm:$0xff] %v872
        %1027 = vst [vmem:[#allocation3 + $0x10] sm:$0xff] %v877
        %1028 = vst [vmem:[#allocation3 + $0x18] sm:$0xff] %v882
        %1029 = vst [vmem:[#allocation3 + $0x20] sm:$0xff] %v887
        %1030 = vst [vmem:[#allocation3 + $0x28] sm:$0xff] %v892
        %1031 = vst [vmem:[#allocation3 + $0x30] sm:$0xff] %v897
        %1032 = vst [vmem:[#allocation3 + $0x38] sm:$0xff] %v902
        %1033 = vst [vmem:[#allocation3 + $0x40] sm:$0xff] %v907
        %1034 = vst [vmem:[#allocation3 + $0x48] sm:$0xff] %v912
        %1035 = vst [vmem:[#allocation3 + $0x50] sm:$0xff] %v917
        %1036 = vst [vmem:[#allocation3 + $0x58] sm:$0xff] %v922
        %1037 = vst [vmem:[#allocation3 + $0x60] sm:$0xff] %v927
        %1038 = vst [vmem:[#allocation3 + $0x68] sm:$0xff] %v932
        %1039 = vst [vmem:[#allocation3 + $0x70] sm:$0xff] %v937
        %1040 = vst [vmem:[#allocation3 + $0x78] sm:$0xff] %v942
        %1041 = vst [vmem:[#allocation3 + $0x80] sm:$0xff] %v947
        %1042 = vst [vmem:[#allocation3 + $0x88] sm:$0xff] %v952
        %1043 = vst [vmem:[#allocation3 + $0x90] sm:$0xff] %v957
        %1044 = vst [vmem:[#allocation3 + $0x98] sm:$0xff] %v962
        %1045 = vst [vmem:[#allocation3 + $0xa0] sm:$0xff] %v967
        %1046 = vst [vmem:[#allocation3 + $0xa8] sm:$0xff] %v972
        %1047 = vst [vmem:[#allocation3 + $0xb0] sm:$0xff] %v977
        %1048 = vst [vmem:[#allocation3 + $0xb8] sm:$0xff] %v982
        %1049 = vst [vmem:[#allocation3 + $0xc0] sm:$0xff] %v987
        %1050 = vst [vmem:[#allocation3 + $0xc8] sm:$0xff] %v992
        %1051 = vst [vmem:[#allocation3 + $0xd0] sm:$0xff] %v997
        %1052 = vst [vmem:[#allocation3 + $0xd8] sm:$0xff] %v1002
        %1053 = vst [vmem:[#allocation3 + $0xe0] sm:$0xff] %v1007
        %1054 = vst [vmem:[#allocation3 + $0xe8] sm:$0xff] %v1012
        %1055 = vst [vmem:[#allocation3 + $0xf0] sm:$0xff] %v1017
        %1056 = vst [vmem:[#allocation3 + $0xf8] sm:$0xff] %v1022
        %v1057 = vld [vmem:[#allocation2 + $0x1] sm:$0xff]
        %v1058 = vld [vmem:[#allocation2 + $0x9] sm:$0xff]
        %v1059 = vld [vmem:[#allocation2 + $0x19] sm:$0xff]
        %v1060 = vld [vmem:[#allocation2 + $0x21] sm:$0xff]
        %v1061 = vld [vmem:[#allocation2 + $0x31] sm:$0xff]
        %v1062 = vld [vmem:[#allocation2 + $0x39] sm:$0xff]
        %v1063 = vld [vmem:[#allocation2 + $0x49] sm:$0xff]
        %v1064 = vld [vmem:[#allocation2 + $0x51] sm:$0xff]
        %v1065 = vld [vmem:[#allocation2 + $0x61] sm:$0xff]
        %v1066 = vld [vmem:[#allocation2 + $0x69] sm:$0xff]
        %v1067 = vld [vmem:[#allocation2 + $0x79] sm:$0xff]
        %v1068 = vld [vmem:[#allocation2 + $0x81] sm:$0xff]
        %v1069 = vld [vmem:[#allocation2 + $0x91] sm:$0xff]
        %v1070 = vld [vmem:[#allocation2 + $0x99] sm:$0xff]
        %v1071 = vld [vmem:[#allocation2 + $0xa9] sm:$0xff]
        %v1072 = vld [vmem:[#allocation2 + $0xb1] sm:$0xff]
        %v1073 = vld [vmem:[#allocation2 + $0xc1] sm:$0xff]
        %v1074 = vld [vmem:[#allocation2 + $0xc9] sm:$0xff]
        %v1075 = vld [vmem:[#allocation2 + $0xd9] sm:$0xff]
        %v1076 = vld [vmem:[#allocation2 + $0xe1] sm:$0xff]
        %v1077 = vld [vmem:[#allocation2 + $0xf1] sm:$0xff]
        %v1078 = vld [vmem:[#allocation2 + $0xf9] sm:$0xff]
        %v1079 = vld [vmem:[#allocation2 + $0x109] sm:$0xff]
        %v1080 = vld [vmem:[#allocation2 + $0x111] sm:$0xff]
        %v1081 = vld [vmem:[#allocation2 + $0x121] sm:$0xff]
        %v1082 = vld [vmem:[#allocation2 + $0x129] sm:$0xff]
        %v1083 = vld [vmem:[#allocation2 + $0x139] sm:$0xff]
        %v1084 = vld [vmem:[#allocation2 + $0x141] sm:$0xff]
        %v1085 = vld [vmem:[#allocation2 + $0x151] sm:$0xff]
        %v1086 = vld [vmem:[#allocation2 + $0x159] sm:$0xff]
        %v1087 = vld [vmem:[#allocation2 + $0x169] sm:$0xff]
        %v1088 = vld [vmem:[#allocation2 + $0x171] sm:$0xff]
        %s1089 = scalar_lea.vmem [#allocation9], 128
        %v1090 = vld [vmem:[%s1089] sm:$0xff]
        %v1091 = vld [vmem:[%s1089 + $0x8] sm:$0xff]
        %v1092 = vld [vmem:[%s1089 + $0x10] sm:$0xff]
        %v1093 = vld [vmem:[%s1089 + $0x18] sm:$0xff]
        %v1094 = vld [vmem:[%s1089 + $0x20] sm:$0xff]
        %v1095 = vld [vmem:[%s1089 + $0x28] sm:$0xff]
        %v1096 = vld [vmem:[%s1089 + $0x30] sm:$0xff]
        %v1097 = vld [vmem:[%s1089 + $0x38] sm:$0xff]
        %v1098 = vld [vmem:[%s1089 + $0x40] sm:$0xff]
        %v1099 = vld [vmem:[%s1089 + $0x48] sm:$0xff]
        %v1100 = vld [vmem:[%s1089 + $0x50] sm:$0xff]
        %v1101 = vld [vmem:[%s1089 + $0x58] sm:$0xff]
        %v1102 = vld [vmem:[%s1089 + $0x60] sm:$0xff]
        %v1103 = vld [vmem:[%s1089 + $0x68] sm:$0xff]
        %v1104 = vld [vmem:[%s1089 + $0x70] sm:$0xff]
        %v1105 = vld [vmem:[%s1089 + $0x78] sm:$0xff]
        %1106 = vmatprep.subr.mxu0 0.0
        %1107 = vmatpush1.msra.mxu0 %v1090
        %1108 = vmatprep.subr.mxu0 0.0
        %1109 = vmatpush1.msra.mxu0 %v1091
        %1110 = vmatprep.subr.mxu0 0.0
        %1111 = vmatpush1.msra.mxu0 %v1092
        %1112 = vmatprep.subr.mxu0 0.0
        %1113 = vmatpush1.msra.mxu0 %v1093
        %1114 = vmatprep.subr.mxu0 0.0
        %1115 = vmatpush1.msra.mxu0 %v1094
        %1116 = vmatprep.subr.mxu0 0.0
        %1117 = vmatpush1.msra.mxu0 %v1095
        %1118 = vmatprep.subr.mxu0 0.0
        %1119 = vmatpush1.msra.mxu0 %v1096
        %1120 = vmatprep.subr.mxu0 0.0
        %1121 = vmatpush1.msra.mxu0 %v1097
        %1122 = vmatprep.subr.mxu0 0.0
        %1123 = vmatpush1.msra.mxu0 %v1098
        %1124 = vmatprep.subr.mxu0 0.0
        %1125 = vmatpush1.msra.mxu0 %v1099
        %1126 = vmatprep.subr.mxu0 0.0
        %1127 = vmatpush1.msra.mxu0 %v1100
        %1128 = vmatprep.subr.mxu0 0.0
        %1129 = vmatpush1.msra.mxu0 %v1101
        %1130 = vmatprep.subr.mxu0 0.0
        %1131 = vmatpush1.msra.mxu0 %v1102
        %1132 = vmatprep.subr.mxu0 0.0
        %1133 = vmatpush1.msra.mxu0 %v1103
        %1134 = vmatprep.subr.mxu0 0.0
        %1135 = vmatpush1.msra.mxu0 %v1104
        %1136 = vmatprep.subr.mxu0 0.0
        %1137 = vmatpush1.msra.mxu0 %v1105
        %1138 = vmatprep.subr.mxu0 0.0
        %1139 = vmatpush1.msra.mxu0 0.0
        %1140 = vmatprep.subr.mxu0 0.0
        %1141 = vmatpush1.msra.mxu0 0.0
        %1142 = vmatprep.subr.mxu0 0.0
        %1143 = vmatpush1.msra.mxu0 0.0
        %1144 = vmatprep.subr.mxu0 0.0
        %1145 = vmatpush1.msra.mxu0 0.0
        %1146 = vmatprep.subr.mxu0 0.0
        %1147 = vmatpush1.msra.mxu0 0.0
        %1148 = vmatprep.subr.mxu0 0.0
        %1149 = vmatpush1.msra.mxu0 0.0
        %1150 = vmatprep.subr.mxu0 0.0
        %1151 = vmatpush1.msra.mxu0 0.0
        %1152 = vmatprep.subr.mxu0 0.0
        %1153 = vmatpush1.msra.mxu0 0.0
        %1154 = vmatprep.subr.mxu0 0.0
        %1155 = vmatpush1.msra.mxu0 0.0
        %1156 = vmatprep.subr.mxu0 0.0
        %1157 = vmatpush1.msra.mxu0 0.0
        %1158 = vmatprep.subr.mxu0 0.0
        %1159 = vmatpush1.msra.mxu0 0.0
        %1160 = vmatprep.subr.mxu0 0.0
        %1161 = vmatpush1.msra.mxu0 0.0
        %1162 = vmatprep.subr.mxu0 0.0
        %1163 = vmatpush1.msra.mxu0 0.0
        %1164 = vmatprep.subr.mxu0 0.0
        %1165 = vmatpush1.msra.mxu0 0.0
        %1166 = vmatprep.subr.mxu0 0.0
        %1167 = vmatpush1.msra.mxu0 0.0
        %1168 = vmatprep.subr.mxu0 0.0
        %1169 = vmatpush1.msra.mxu0 0.0
        %1170 = vmatprep.mubr.f32.mxu0 0.0
        %1171 = vmatmul.mubr.f32.gmra.mrb[0].mxu0 %v1057
        %v1172 = vpop.f32.mrb[0].mxu0
        %v1173 = vadd.f32 0.0, %v1172
        %v1174 = vpop.f32.mrb[0].mxu0
        %1175 = vmatprep.mubr.f32.mxu0 0.0
        %1176 = vmatmul.mubr.f32.gmra.mrb[0].mxu0 %v1058
        %v1177 = vpop.f32.mrb[0].mxu0
        %v1178 = vadd.f32 0.0, %v1177
        %v1179 = vpop.f32.mrb[0].mxu0
        %1180 = vmatprep.mubr.f32.mxu0 0.0
        %1181 = vmatmul.mubr.f32.gmra.mrb[0].mxu0 %v1059
        %v1182 = vpop.f32.mrb[0].mxu0
        %v1183 = vadd.f32 0.0, %v1182
        %v1184 = vpop.f32.mrb[0].mxu0
        %1185 = vmatprep.mubr.f32.mxu0 0.0
        %1186 = vmatmul.mubr.f32.gmra.mrb[0].mxu0 %v1060
        %v1187 = vpop.f32.mrb[0].mxu0
        %v1188 = vadd.f32 0.0, %v1187
        %v1189 = vpop.f32.mrb[0].mxu0
        %1190 = vmatprep.mubr.f32.mxu0 0.0
        %1191 = vmatmul.mubr.f32.gmra.mrb[0].mxu0 %v1061
        %v1192 = vpop.f32.mrb[0].mxu0
        %v1193 = vadd.f32 0.0, %v1192
        %v1194 = vpop.f32.mrb[0].mxu0
        %1195 = vmatprep.mubr.f32.mxu0 0.0
        %1196 = vmatmul.mubr.f32.gmra.mrb[0].mxu0 %v1062
        %v1197 = vpop.f32.mrb[0].mxu0
        %v1198 = vadd.f32 0.0, %v1197
        %v1199 = vpop.f32.mrb[0].mxu0
        %1200 = vmatprep.mubr.f32.mxu0 0.0
        %1201 = vmatmul.mubr.f32.gmra.mrb[0].mxu0 %v1063
        %v1202 = vpop.f32.mrb[0].mxu0
        %v1203 = vadd.f32 0.0, %v1202
        %v1204 = vpop.f32.mrb[0].mxu0
        %1205 = vmatprep.mubr.f32.mxu0 0.0
        %1206 = vmatmul.mubr.f32.gmra.mrb[0].mxu0 %v1064
        %v1207 = vpop.f32.mrb[0].mxu0
        %v1208 = vadd.f32 0.0, %v1207
        %v1209 = vpop.f32.mrb[0].mxu0
        %1210 = vmatprep.mubr.f32.mxu0 0.0
        %1211 = vmatmul.mubr.f32.gmra.mrb[0].mxu0 %v1065
        %v1212 = vpop.f32.mrb[0].mxu0
        %v1213 = vadd.f32 0.0, %v1212
        %v1214 = vpop.f32.mrb[0].mxu0
        %1215 = vmatprep.mubr.f32.mxu0 0.0
        %1216 = vmatmul.mubr.f32.gmra.mrb[0].mxu0 %v1066
        %v1217 = vpop.f32.mrb[0].mxu0
        %v1218 = vadd.f32 0.0, %v1217
        %v1219 = vpop.f32.mrb[0].mxu0
        %1220 = vmatprep.mubr.f32.mxu0 0.0
        %1221 = vmatmul.mubr.f32.gmra.mrb[0].mxu0 %v1067
        %v1222 = vpop.f32.mrb[0].mxu0
        %v1223 = vadd.f32 0.0, %v1222
        %v1224 = vpop.f32.mrb[0].mxu0
        %1225 = vmatprep.mubr.f32.mxu0 0.0
        %1226 = vmatmul.mubr.f32.gmra.mrb[0].mxu0 %v1068
        %v1227 = vpop.f32.mrb[0].mxu0
        %v1228 = vadd.f32 0.0, %v1227
        %v1229 = vpop.f32.mrb[0].mxu0
        %1230 = vmatprep.mubr.f32.mxu0 0.0
        %1231 = vmatmul.mubr.f32.gmra.mrb[0].mxu0 %v1069
        %v1232 = vpop.f32.mrb[0].mxu0
        %v1233 = vadd.f32 0.0, %v1232
        %v1234 = vpop.f32.mrb[0].mxu0
        %1235 = vmatprep.mubr.f32.mxu0 0.0
        %1236 = vmatmul.mubr.f32.gmra.mrb[0].mxu0 %v1070
        %v1237 = vpop.f32.mrb[0].mxu0
        %v1238 = vadd.f32 0.0, %v1237
        %v1239 = vpop.f32.mrb[0].mxu0
        %1240 = vmatprep.mubr.f32.mxu0 0.0
        %1241 = vmatmul.mubr.f32.gmra.mrb[0].mxu0 %v1071
        %v1242 = vpop.f32.mrb[0].mxu0
        %v1243 = vadd.f32 0.0, %v1242
        %v1244 = vpop.f32.mrb[0].mxu0
        %1245 = vmatprep.mubr.f32.mxu0 0.0
        %1246 = vmatmul.mubr.f32.gmra.mrb[0].mxu0 %v1072
        %v1247 = vpop.f32.mrb[0].mxu0
        %v1248 = vadd.f32 0.0, %v1247
        %v1249 = vpop.f32.mrb[0].mxu0
        %1250 = vmatprep.mubr.f32.mxu0 0.0
        %1251 = vmatmul.mubr.f32.gmra.mrb[0].mxu0 %v1073
        %v1252 = vpop.f32.mrb[0].mxu0
        %v1253 = vadd.f32 0.0, %v1252
        %v1254 = vpop.f32.mrb[0].mxu0
        %1255 = vmatprep.mubr.f32.mxu0 0.0
        %1256 = vmatmul.mubr.f32.gmra.mrb[0].mxu0 %v1074
        %v1257 = vpop.f32.mrb[0].mxu0
        %v1258 = vadd.f32 0.0, %v1257
        %v1259 = vpop.f32.mrb[0].mxu0
        %1260 = vmatprep.mubr.f32.mxu0 0.0
        %1261 = vmatmul.mubr.f32.gmra.mrb[0].mxu0 %v1075
        %v1262 = vpop.f32.mrb[0].mxu0
        %v1263 = vadd.f32 0.0, %v1262
        %v1264 = vpop.f32.mrb[0].mxu0
        %1265 = vmatprep.mubr.f32.mxu0 0.0
        %1266 = vmatmul.mubr.f32.gmra.mrb[0].mxu0 %v1076
        %v1267 = vpop.f32.mrb[0].mxu0
        %v1268 = vadd.f32 0.0, %v1267
        %v1269 = vpop.f32.mrb[0].mxu0
        %1270 = vmatprep.mubr.f32.mxu0 0.0
        %1271 = vmatmul.mubr.f32.gmra.mrb[0].mxu0 %v1077
        %v1272 = vpop.f32.mrb[0].mxu0
        %v1273 = vadd.f32 0.0, %v1272
        %v1274 = vpop.f32.mrb[0].mxu0
        %1275 = vmatprep.mubr.f32.mxu0 0.0
        %1276 = vmatmul.mubr.f32.gmra.mrb[0].mxu0 %v1078
        %v1277 = vpop.f32.mrb[0].mxu0
        %v1278 = vadd.f32 0.0, %v1277
        %v1279 = vpop.f32.mrb[0].mxu0
        %1280 = vmatprep.mubr.f32.mxu0 0.0
        %1281 = vmatmul.mubr.f32.gmra.mrb[0].mxu0 %v1079
        %v1282 = vpop.f32.mrb[0].mxu0
        %v1283 = vadd.f32 0.0, %v1282
        %v1284 = vpop.f32.mrb[0].mxu0
        %1285 = vmatprep.mubr.f32.mxu0 0.0
        %1286 = vmatmul.mubr.f32.gmra.mrb[0].mxu0 %v1080
        %v1287 = vpop.f32.mrb[0].mxu0
        %v1288 = vadd.f32 0.0, %v1287
        %v1289 = vpop.f32.mrb[0].mxu0
        %1290 = vmatprep.mubr.f32.mxu0 0.0
        %1291 = vmatmul.mubr.f32.gmra.mrb[0].mxu0 %v1081
        %v1292 = vpop.f32.mrb[0].mxu0
        %v1293 = vadd.f32 0.0, %v1292
        %v1294 = vpop.f32.mrb[0].mxu0
        %1295 = vmatprep.mubr.f32.mxu0 0.0
        %1296 = vmatmul.mubr.f32.gmra.mrb[0].mxu0 %v1082
        %v1297 = vpop.f32.mrb[0].mxu0
        %v1298 = vadd.f32 0.0, %v1297
        %v1299 = vpop.f32.mrb[0].mxu0
        %1300 = vmatprep.mubr.f32.mxu0 0.0
        %1301 = vmatmul.mubr.f32.gmra.mrb[0].mxu0 %v1083
        %v1302 = vpop.f32.mrb[0].mxu0
        %v1303 = vadd.f32 0.0, %v1302
        %v1304 = vpop.f32.mrb[0].mxu0
        %1305 = vmatprep.mubr.f32.mxu0 0.0
        %1306 = vmatmul.mubr.f32.gmra.mrb[0].mxu0 %v1084
        %v1307 = vpop.f32.mrb[0].mxu0
        %v1308 = vadd.f32 0.0, %v1307
        %v1309 = vpop.f32.mrb[0].mxu0
        %1310 = vmatprep.mubr.f32.mxu0 0.0
        %1311 = vmatmul.mubr.f32.gmra.mrb[0].mxu0 %v1085
        %v1312 = vpop.f32.mrb[0].mxu0
        %v1313 = vadd.f32 0.0, %v1312
        %v1314 = vpop.f32.mrb[0].mxu0
        %1315 = vmatprep.mubr.f32.mxu0 0.0
        %1316 = vmatmul.mubr.f32.gmra.mrb[0].mxu0 %v1086
        %v1317 = vpop.f32.mrb[0].mxu0
        %v1318 = vadd.f32 0.0, %v1317
        %v1319 = vpop.f32.mrb[0].mxu0
        %1320 = vmatprep.mubr.f32.mxu0 0.0
        %1321 = vmatmul.mubr.f32.gmra.mrb[0].mxu0 %v1087
        %v1322 = vpop.f32.mrb[0].mxu0
        %v1323 = vadd.f32 0.0, %v1322
        %v1324 = vpop.f32.mrb[0].mxu0
        %1325 = vmatprep.mubr.f32.mxu0 0.0
        %1326 = vmatmul.mubr.f32.gmra.mrb[0].mxu0 %v1088
        %v1327 = vpop.f32.mrb[0].mxu0
        %v1328 = vadd.f32 0.0, %v1327
        %v1329 = vpop.f32.mrb[0].mxu0
        %1330 = vdwg.mxu0
        %v1331 = vld [vmem:[#allocation3] sm:$0xff]
        %v1332 = vld [vmem:[#allocation3 + $0x8] sm:$0xff]
        %v1333 = vld [vmem:[#allocation3 + $0x10] sm:$0xff]
        %v1334 = vld [vmem:[#allocation3 + $0x18] sm:$0xff]
        %v1335 = vld [vmem:[#allocation3 + $0x20] sm:$0xff]
        %v1336 = vld [vmem:[#allocation3 + $0x28] sm:$0xff]
        %v1337 = vld [vmem:[#allocation3 + $0x30] sm:$0xff]
        %v1338 = vld [vmem:[#allocation3 + $0x38] sm:$0xff]
        %v1339 = vld [vmem:[#allocation3 + $0x40] sm:$0xff]
        %v1340 = vld [vmem:[#allocation3 + $0x48] sm:$0xff]
        %v1341 = vld [vmem:[#allocation3 + $0x50] sm:$0xff]
        %v1342 = vld [vmem:[#allocation3 + $0x58] sm:$0xff]
        %v1343 = vld [vmem:[#allocation3 + $0x60] sm:$0xff]
        %v1344 = vld [vmem:[#allocation3 + $0x68] sm:$0xff]
        %v1345 = vld [vmem:[#allocation3 + $0x70] sm:$0xff]
        %v1346 = vld [vmem:[#allocation3 + $0x78] sm:$0xff]
        %v1347 = vld [vmem:[#allocation3 + $0x80] sm:$0xff]
        %v1348 = vld [vmem:[#allocation3 + $0x88] sm:$0xff]
        %v1349 = vld [vmem:[#allocation3 + $0x90] sm:$0xff]
        %v1350 = vld [vmem:[#allocation3 + $0x98] sm:$0xff]
        %v1351 = vld [vmem:[#allocation3 + $0xa0] sm:$0xff]
        %v1352 = vld [vmem:[#allocation3 + $0xa8] sm:$0xff]
        %v1353 = vld [vmem:[#allocation3 + $0xb0] sm:$0xff]
        %v1354 = vld [vmem:[#allocation3 + $0xb8] sm:$0xff]
        %v1355 = vld [vmem:[#allocation3 + $0xc0] sm:$0xff]
        %v1356 = vld [vmem:[#allocation3 + $0xc8] sm:$0xff]
        %v1357 = vld [vmem:[#allocation3 + $0xd0] sm:$0xff]
        %v1358 = vld [vmem:[#allocation3 + $0xd8] sm:$0xff]
        %v1359 = vld [vmem:[#allocation3 + $0xe0] sm:$0xff]
        %v1360 = vld [vmem:[#allocation3 + $0xe8] sm:$0xff]
        %v1361 = vld [vmem:[#allocation3 + $0xf0] sm:$0xff]
        %v1362 = vld [vmem:[#allocation3 + $0xf8] sm:$0xff]
        %v1363 = vadd.f32 %v1331, %v1173
        %v1364 = vadd.f32 %v1332, %v1178
        %v1365 = vadd.f32 %v1333, %v1183
        %v1366 = vadd.f32 %v1334, %v1188
        %v1367 = vadd.f32 %v1335, %v1193
        %v1368 = vadd.f32 %v1336, %v1198
        %v1369 = vadd.f32 %v1337, %v1203
        %v1370 = vadd.f32 %v1338, %v1208
        %v1371 = vadd.f32 %v1339, %v1213
        %v1372 = vadd.f32 %v1340, %v1218
        %v1373 = vadd.f32 %v1341, %v1223
        %v1374 = vadd.f32 %v1342, %v1228
        %v1375 = vadd.f32 %v1343, %v1233
        %v1376 = vadd.f32 %v1344, %v1238
        %v1377 = vadd.f32 %v1345, %v1243
        %v1378 = vadd.f32 %v1346, %v1248
        %v1379 = vadd.f32 %v1347, %v1253
        %v1380 = vadd.f32 %v1348, %v1258
        %v1381 = vadd.f32 %v1349, %v1263
        %v1382 = vadd.f32 %v1350, %v1268
        %v1383 = vadd.f32 %v1351, %v1273
        %v1384 = vadd.f32 %v1352, %v1278
        %v1385 = vadd.f32 %v1353, %v1283
        %v1386 = vadd.f32 %v1354, %v1288
        %v1387 = vadd.f32 %v1355, %v1293
        %v1388 = vadd.f32 %v1356, %v1298
        %v1389 = vadd.f32 %v1357, %v1303
        %v1390 = vadd.f32 %v1358, %v1308
        %v1391 = vadd.f32 %v1359, %v1313
        %v1392 = vadd.f32 %v1360, %v1318
        %v1393 = vadd.f32 %v1361, %v1323
        %v1394 = vadd.f32 %v1362, %v1328
        %1395 = vst [vmem:[#allocation3] sm:$0xff] %v1363
        %1396 = vst [vmem:[#allocation3 + $0x8] sm:$0xff] %v1364
        %1397 = vst [vmem:[#allocation3 + $0x10] sm:$0xff] %v1365
        %1398 = vst [vmem:[#allocation3 + $0x18] sm:$0xff] %v1366
        %1399 = vst [vmem:[#allocation3 + $0x20] sm:$0xff] %v1367
        %1400 = vst [vmem:[#allocation3 + $0x28] sm:$0xff] %v1368
        %1401 = vst [vmem:[#allocation3 + $0x30] sm:$0xff] %v1369
        %1402 = vst [vmem:[#allocation3 + $0x38] sm:$0xff] %v1370
        %1403 = vst [vmem:[#allocation3 + $0x40] sm:$0xff] %v1371
        %1404 = vst [vmem:[#allocation3 + $0x48] sm:$0xff] %v1372
        %1405 = vst [vmem:[#allocation3 + $0x50] sm:$0xff] %v1373
        %1406 = vst [vmem:[#allocation3 + $0x58] sm:$0xff] %v1374
        %1407 = vst [vmem:[#allocation3 + $0x60] sm:$0xff] %v1375
        %1408 = vst [vmem:[#allocation3 + $0x68] sm:$0xff] %v1376
        %1409 = vst [vmem:[#allocation3 + $0x70] sm:$0xff] %v1377
        %1410 = vst [vmem:[#allocation3 + $0x78] sm:$0xff] %v1378
        %1411 = vst [vmem:[#allocation3 + $0x80] sm:$0xff] %v1379
        %1412 = vst [vmem:[#allocation3 + $0x88] sm:$0xff] %v1380
        %1413 = vst [vmem:[#allocation3 + $0x90] sm:$0xff] %v1381
        %1414 = vst [vmem:[#allocation3 + $0x98] sm:$0xff] %v1382
        %1415 = vst [vmem:[#allocation3 + $0xa0] sm:$0xff] %v1383
        %1416 = vst [vmem:[#allocation3 + $0xa8] sm:$0xff] %v1384
        %1417 = vst [vmem:[#allocation3 + $0xb0] sm:$0xff] %v1385
        %1418 = vst [vmem:[#allocation3 + $0xb8] sm:$0xff] %v1386
        %1419 = vst [vmem:[#allocation3 + $0xc0] sm:$0xff] %v1387
        %1420 = vst [vmem:[#allocation3 + $0xc8] sm:$0xff] %v1388
        %1421 = vst [vmem:[#allocation3 + $0xd0] sm:$0xff] %v1389
        %1422 = vst [vmem:[#allocation3 + $0xd8] sm:$0xff] %v1390
        %1423 = vst [vmem:[#allocation3 + $0xe0] sm:$0xff] %v1391
        %1424 = vst [vmem:[#allocation3 + $0xe8] sm:$0xff] %v1392
        %1425 = vst [vmem:[#allocation3 + $0xf0] sm:$0xff] %v1393
        %1426 = vst [vmem:[#allocation3 + $0xf8] sm:$0xff] %v1394
        %v1427 = vld [vmem:[#allocation2 + $0x2] sm:$0xff]
        %v1428 = vld [vmem:[#allocation2 + $0xa] sm:$0xff]
        %v1429 = vld [vmem:[#allocation2 + $0x1a] sm:$0xff]
        %v1430 = vld [vmem:[#allocation2 + $0x22] sm:$0xff]
        %v1431 = vld [vmem:[#allocation2 + $0x32] sm:$0xff]
        %v1432 = vld [vmem:[#allocation2 + $0x3a] sm:$0xff]
        %v1433 = vld [vmem:[#allocation2 + $0x4a] sm:$0xff]
        %v1434 = vld [vmem:[#allocation2 + $0x52] sm:$0xff]
        %v1435 = vld [vmem:[#allocation2 + $0x62] sm:$0xff]
        %v1436 = vld [vmem:[#allocation2 + $0x6a] sm:$0xff]
        %v1437 = vld [vmem:[#allocation2 + $0x7a] sm:$0xff]
        %v1438 = vld [vmem:[#allocation2 + $0x82] sm:$0xff]
        %v1439 = vld [vmem:[#allocation2 + $0x92] sm:$0xff]
        %v1440 = vld [vmem:[#allocation2 + $0x9a] sm:$0xff]
        %v1441 = vld [vmem:[#allocation2 + $0xaa] sm:$0xff]
        %v1442 = vld [vmem:[#allocation2 + $0xb2] sm:$0xff]
        %v1443 = vld [vmem:[#allocation2 + $0xc2] sm:$0xff]
        %v1444 = vld [vmem:[#allocation2 + $0xca] sm:$0xff]
        %v1445 = vld [vmem:[#allocation2 + $0xda] sm:$0xff]
        %v1446 = vld [vmem:[#allocation2 + $0xe2] sm:$0xff]
        %v1447 = vld [vmem:[#allocation2 + $0xf2] sm:$0xff]
        %v1448 = vld [vmem:[#allocation2 + $0xfa] sm:$0xff]
        %v1449 = vld [vmem:[#allocation2 + $0x10a] sm:$0xff]
        %v1450 = vld [vmem:[#allocation2 + $0x112] sm:$0xff]
        %v1451 = vld [vmem:[#allocation2 + $0x122] sm:$0xff]
        %v1452 = vld [vmem:[#allocation2 + $0x12a] sm:$0xff]
        %v1453 = vld [vmem:[#allocation2 + $0x13a] sm:$0xff]
        %v1454 = vld [vmem:[#allocation2 + $0x142] sm:$0xff]
        %v1455 = vld [vmem:[#allocation2 + $0x152] sm:$0xff]
        %v1456 = vld [vmem:[#allocation2 + $0x15a] sm:$0xff]
        %v1457 = vld [vmem:[#allocation2 + $0x16a] sm:$0xff]
        %v1458 = vld [vmem:[#allocation2 + $0x172] sm:$0xff]
        %s1459 = scalar_lea.vmem [#allocation9], 256
        %v1460 = vld [vmem:[%s1459] sm:$0xff]
        %v1461 = vld [vmem:[%s1459 + $0x8] sm:$0xff]
        %v1462 = vld [vmem:[%s1459 + $0x10] sm:$0xff]
        %v1463 = vld [vmem:[%s1459 + $0x18] sm:$0xff]
        %v1464 = vld [vmem:[%s1459 + $0x20] sm:$0xff]
        %v1465 = vld [vmem:[%s1459 + $0x28] sm:$0xff]
        %v1466 = vld [vmem:[%s1459 + $0x30] sm:$0xff]
        %v1467 = vld [vmem:[%s1459 + $0x38] sm:$0xff]
        %v1468 = vld [vmem:[%s1459 + $0x40] sm:$0xff]
        %v1469 = vld [vmem:[%s1459 + $0x48] sm:$0xff]
        %v1470 = vld [vmem:[%s1459 + $0x50] sm:$0xff]
        %v1471 = vld [vmem:[%s1459 + $0x58] sm:$0xff]
        %v1472 = vld [vmem:[%s1459 + $0x60] sm:$0xff]
        %v1473 = vld [vmem:[%s1459 + $0x68] sm:$0xff]
        %v1474 = vld [vmem:[%s1459 + $0x70] sm:$0xff]
        %v1475 = vld [vmem:[%s1459 + $0x78] sm:$0xff]
        %1476 = vmatprep.subr.mxu0 0.0
        %1477 = vmatpush1.msra.mxu0 %v1460
        %1478 = vmatprep.subr.mxu0 0.0
        %1479 = vmatpush1.msra.mxu0 %v1461
        %1480 = vmatprep.subr.mxu0 0.0
        %1481 = vmatpush1.msra.mxu0 %v1462
        %1482 = vmatprep.subr.mxu0 0.0
        %1483 = vmatpush1.msra.mxu0 %v1463
        %1484 = vmatprep.subr.mxu0 0.0
        %1485 = vmatpush1.msra.mxu0 %v1464
        %1486 = vmatprep.subr.mxu0 0.0
        %1487 = vmatpush1.msra.mxu0 %v1465
        %1488 = vmatprep.subr.mxu0 0.0
        %1489 = vmatpush1.msra.mxu0 %v1466
        %1490 = vmatprep.subr.mxu0 0.0
        %1491 = vmatpush1.msra.mxu0 %v1467
        %1492 = vmatprep.subr.mxu0 0.0
        %1493 = vmatpush1.msra.mxu0 %v1468
        %1494 = vmatprep.subr.mxu0 0.0
        %1495 = vmatpush1.msra.mxu0 %v1469
        %1496 = vmatprep.subr.mxu0 0.0
        %1497 = vmatpush1.msra.mxu0 %v1470
        %1498 = vmatprep.subr.mxu0 0.0
        %1499 = vmatpush1.msra.mxu0 %v1471
        %1500 = vmatprep.subr.mxu0 0.0
        %1501 = vmatpush1.msra.mxu0 %v1472
        %1502 = vmatprep.subr.mxu0 0.0
        %1503 = vmatpush1.msra.mxu0 %v1473
        %1504 = vmatprep.subr.mxu0 0.0
        %1505 = vmatpush1.msra.mxu0 %v1474
        %1506 = vmatprep.subr.mxu0 0.0
        %1507 = vmatpush1.msra.mxu0 %v1475
        %1508 = vmatprep.subr.mxu0 0.0
        %1509 = vmatpush1.msra.mxu0 0.0
        %1510 = vmatprep.subr.mxu0 0.0
        %1511 = vmatpush1.msra.mxu0 0.0
        %1512 = vmatprep.subr.mxu0 0.0
        %1513 = vmatpush1.msra.mxu0 0.0
        %1514 = vmatprep.subr.mxu0 0.0
        %1515 = vmatpush1.msra.mxu0 0.0
        %1516 = vmatprep.subr.mxu0 0.0
        %1517 = vmatpush1.msra.mxu0 0.0
        %1518 = vmatprep.subr.mxu0 0.0
        %1519 = vmatpush1.msra.mxu0 0.0
        %1520 = vmatprep.subr.mxu0 0.0
        %1521 = vmatpush1.msra.mxu0 0.0
        %1522 = vmatprep.subr.mxu0 0.0
        %1523 = vmatpush1.msra.mxu0 0.0
        %1524 = vmatprep.subr.mxu0 0.0
        %1525 = vmatpush1.msra.mxu0 0.0
        %1526 = vmatprep.subr.mxu0 0.0
        %1527 = vmatpush1.msra.mxu0 0.0
        %1528 = vmatprep.subr.mxu0 0.0
        %1529 = vmatpush1.msra.mxu0 0.0
        %1530 = vmatprep.subr.mxu0 0.0
        %1531 = vmatpush1.msra.mxu0 0.0
        %1532 = vmatprep.subr.mxu0 0.0
        %1533 = vmatpush1.msra.mxu0 0.0
        %1534 = vmatprep.subr.mxu0 0.0
        %1535 = vmatpush1.msra.mxu0 0.0
        %1536 = vmatprep.subr.mxu0 0.0
        %1537 = vmatpush1.msra.mxu0 0.0
        %1538 = vmatprep.subr.mxu0 0.0
        %1539 = vmatpush1.msra.mxu0 0.0
        %1540 = vmatprep.mubr.f32.mxu0 0.0
        %1541 = vmatmul.mubr.f32.gmra.mrb[0].mxu0 %v1427
        %v1542 = vpop.f32.mrb[0].mxu0
        %v1543 = vadd.f32 0.0, %v1542
        %v1544 = vpop.f32.mrb[0].mxu0
        %1545 = vmatprep.mubr.f32.mxu0 0.0
        %1546 = vmatmul.mubr.f32.gmra.mrb[0].mxu0 %v1428
        %v1547 = vpop.f32.mrb[0].mxu0
        %v1548 = vadd.f32 0.0, %v1547
        %v1549 = vpop.f32.mrb[0].mxu0
        %1550 = vmatprep.mubr.f32.mxu0 0.0
        %1551 = vmatmul.mubr.f32.gmra.mrb[0].mxu0 %v1429
        %v1552 = vpop.f32.mrb[0].mxu0
        %v1553 = vadd.f32 0.0, %v1552
        %v1554 = vpop.f32.mrb[0].mxu0
        %1555 = vmatprep.mubr.f32.mxu0 0.0
        %1556 = vmatmul.mubr.f32.gmra.mrb[0].mxu0 %v1430
        %v1557 = vpop.f32.mrb[0].mxu0
        %v1558 = vadd.f32 0.0, %v1557
        %v1559 = vpop.f32.mrb[0].mxu0
        %1560 = vmatprep.mubr.f32.mxu0 0.0
        %1561 = vmatmul.mubr.f32.gmra.mrb[0].mxu0 %v1431
        %v1562 = vpop.f32.mrb[0].mxu0
        %v1563 = vadd.f32 0.0, %v1562
        %v1564 = vpop.f32.mrb[0].mxu0
        %1565 = vmatprep.mubr.f32.mxu0 0.0
        %1566 = vmatmul.mubr.f32.gmra.mrb[0].mxu0 %v1432
        %v1567 = vpop.f32.mrb[0].mxu0
        %v1568 = vadd.f32 0.0, %v1567
        %v1569 = vpop.f32.mrb[0].mxu0
        %1570 = vmatprep.mubr.f32.mxu0 0.0
        %1571 = vmatmul.mubr.f32.gmra.mrb[0].mxu0 %v1433
        %v1572 = vpop.f32.mrb[0].mxu0
        %v1573 = vadd.f32 0.0, %v1572
        %v1574 = vpop.f32.mrb[0].mxu0
        %1575 = vmatprep.mubr.f32.mxu0 0.0
        %1576 = vmatmul.mubr.f32.gmra.mrb[0].mxu0 %v1434
        %v1577 = vpop.f32.mrb[0].mxu0
        %v1578 = vadd.f32 0.0, %v1577
        %v1579 = vpop.f32.mrb[0].mxu0
        %1580 = vmatprep.mubr.f32.mxu0 0.0
        %1581 = vmatmul.mubr.f32.gmra.mrb[0].mxu0 %v1435
        %v1582 = vpop.f32.mrb[0].mxu0
        %v1583 = vadd.f32 0.0, %v1582
        %v1584 = vpop.f32.mrb[0].mxu0
        %1585 = vmatprep.mubr.f32.mxu0 0.0
        %1586 = vmatmul.mubr.f32.gmra.mrb[0].mxu0 %v1436
        %v1587 = vpop.f32.mrb[0].mxu0
        %v1588 = vadd.f32 0.0, %v1587
        %v1589 = vpop.f32.mrb[0].mxu0
        %1590 = vmatprep.mubr.f32.mxu0 0.0
        %1591 = vmatmul.mubr.f32.gmra.mrb[0].mxu0 %v1437
        %v1592 = vpop.f32.mrb[0].mxu0
        %v1593 = vadd.f32 0.0, %v1592
        %v1594 = vpop.f32.mrb[0].mxu0
        %1595 = vmatprep.mubr.f32.mxu0 0.0
        %1596 = vmatmul.mubr.f32.gmra.mrb[0].mxu0 %v1438
        %v1597 = vpop.f32.mrb[0].mxu0
        %v1598 = vadd.f32 0.0, %v1597
        %v1599 = vpop.f32.mrb[0].mxu0
        %1600 = vmatprep.mubr.f32.mxu0 0.0
        %1601 = vmatmul.mubr.f32.gmra.mrb[0].mxu0 %v1439
        %v1602 = vpop.f32.mrb[0].mxu0
        %v1603 = vadd.f32 0.0, %v1602
        %v1604 = vpop.f32.mrb[0].mxu0
        %1605 = vmatprep.mubr.f32.mxu0 0.0
        %1606 = vmatmul.mubr.f32.gmra.mrb[0].mxu0 %v1440
        %v1607 = vpop.f32.mrb[0].mxu0
        %v1608 = vadd.f32 0.0, %v1607
        %v1609 = vpop.f32.mrb[0].mxu0
        %1610 = vmatprep.mubr.f32.mxu0 0.0
        %1611 = vmatmul.mubr.f32.gmra.mrb[0].mxu0 %v1441
        %v1612 = vpop.f32.mrb[0].mxu0
        %v1613 = vadd.f32 0.0, %v1612
        %v1614 = vpop.f32.mrb[0].mxu0
        %1615 = vmatprep.mubr.f32.mxu0 0.0
        %1616 = vmatmul.mubr.f32.gmra.mrb[0].mxu0 %v1442
        %v1617 = vpop.f32.mrb[0].mxu0
        %v1618 = vadd.f32 0.0, %v1617
        %v1619 = vpop.f32.mrb[0].mxu0
        %1620 = vmatprep.mubr.f32.mxu0 0.0
        %1621 = vmatmul.mubr.f32.gmra.mrb[0].mxu0 %v1443
        %v1622 = vpop.f32.mrb[0].mxu0
        %v1623 = vadd.f32 0.0, %v1622
        %v1624 = vpop.f32.mrb[0].mxu0
        %1625 = vmatprep.mubr.f32.mxu0 0.0
        %1626 = vmatmul.mubr.f32.gmra.mrb[0].mxu0 %v1444
        %v1627 = vpop.f32.mrb[0].mxu0
        %v1628 = vadd.f32 0.0, %v1627
        %v1629 = vpop.f32.mrb[0].mxu0
        %1630 = vmatprep.mubr.f32.mxu0 0.0
        %1631 = vmatmul.mubr.f32.gmra.mrb[0].mxu0 %v1445
        %v1632 = vpop.f32.mrb[0].mxu0
        %v1633 = vadd.f32 0.0, %v1632
        %v1634 = vpop.f32.mrb[0].mxu0
        %1635 = vmatprep.mubr.f32.mxu0 0.0
        %1636 = vmatmul.mubr.f32.gmra.mrb[0].mxu0 %v1446
        %v1637 = vpop.f32.mrb[0].mxu0
        %v1638 = vadd.f32 0.0, %v1637
        %v1639 = vpop.f32.mrb[0].mxu0
        %1640 = vmatprep.mubr.f32.mxu0 0.0
        %1641 = vmatmul.mubr.f32.gmra.mrb[0].mxu0 %v1447
        %v1642 = vpop.f32.mrb[0].mxu0
        %v1643 = vadd.f32 0.0, %v1642
        %v1644 = vpop.f32.mrb[0].mxu0
        %1645 = vmatprep.mubr.f32.mxu0 0.0
        %1646 = vmatmul.mubr.f32.gmra.mrb[0].mxu0 %v1448
        %v1647 = vpop.f32.mrb[0].mxu0
        %v1648 = vadd.f32 0.0, %v1647
        %v1649 = vpop.f32.mrb[0].mxu0
        %1650 = vmatprep.mubr.f32.mxu0 0.0
        %1651 = vmatmul.mubr.f32.gmra.mrb[0].mxu0 %v1449
        %v1652 = vpop.f32.mrb[0].mxu0
        %v1653 = vadd.f32 0.0, %v1652
        %v1654 = vpop.f32.mrb[0].mxu0
        %1655 = vmatprep.mubr.f32.mxu0 0.0
        %1656 = vmatmul.mubr.f32.gmra.mrb[0].mxu0 %v1450
        %v1657 = vpop.f32.mrb[0].mxu0
        %v1658 = vadd.f32 0.0, %v1657
        %v1659 = vpop.f32.mrb[0].mxu0
        %1660 = vmatprep.mubr.f32.mxu0 0.0
        %1661 = vmatmul.mubr.f32.gmra.mrb[0].mxu0 %v1451
        %v1662 = vpop.f32.mrb[0].mxu0
        %v1663 = vadd.f32 0.0, %v1662
        %v1664 = vpop.f32.mrb[0].mxu0
        %1665 = vmatprep.mubr.f32.mxu0 0.0
        %1666 = vmatmul.mubr.f32.gmra.mrb[0].mxu0 %v1452
        %v1667 = vpop.f32.mrb[0].mxu0
        %v1668 = vadd.f32 0.0, %v1667
        %v1669 = vpop.f32.mrb[0].mxu0
        %1670 = vmatprep.mubr.f32.mxu0 0.0
        %1671 = vmatmul.mubr.f32.gmra.mrb[0].mxu0 %v1453
        %v1672 = vpop.f32.mrb[0].mxu0
        %v1673 = vadd.f32 0.0, %v1672
        %v1674 = vpop.f32.mrb[0].mxu0
        %1675 = vmatprep.mubr.f32.mxu0 0.0
        %1676 = vmatmul.mubr.f32.gmra.mrb[0].mxu0 %v1454
        %v1677 = vpop.f32.mrb[0].mxu0
        %v1678 = vadd.f32 0.0, %v1677
        %v1679 = vpop.f32.mrb[0].mxu0
        %1680 = vmatprep.mubr.f32.mxu0 0.0
        %1681 = vmatmul.mubr.f32.gmra.mrb[0].mxu0 %v1455
        %v1682 = vpop.f32.mrb[0].mxu0
        %v1683 = vadd.f32 0.0, %v1682
        %v1684 = vpop.f32.mrb[0].mxu0
        %1685 = vmatprep.mubr.f32.mxu0 0.0
        %1686 = vmatmul.mubr.f32.gmra.mrb[0].mxu0 %v1456
        %v1687 = vpop.f32.mrb[0].mxu0
        %v1688 = vadd.f32 0.0, %v1687
        %v1689 = vpop.f32.mrb[0].mxu0
        %1690 = vmatprep.mubr.f32.mxu0 0.0
        %1691 = vmatmul.mubr.f32.gmra.mrb[0].mxu0 %v1457
        %v1692 = vpop.f32.mrb[0].mxu0
        %v1693 = vadd.f32 0.0, %v1692
        %v1694 = vpop.f32.mrb[0].mxu0
        %1695 = vmatprep.mubr.f32.mxu0 0.0
        %1696 = vmatmul.mubr.f32.gmra.mrb[0].mxu0 %v1458
        %v1697 = vpop.f32.mrb[0].mxu0
        %v1698 = vadd.f32 0.0, %v1697
        %v1699 = vpop.f32.mrb[0].mxu0
        %1700 = vdwg.mxu0
        %v1701 = vld [vmem:[#allocation3] sm:$0xff]
        %v1702 = vld [vmem:[#allocation3 + $0x8] sm:$0xff]
        %v1703 = vld [vmem:[#allocation3 + $0x10] sm:$0xff]
        %v1704 = vld [vmem:[#allocation3 + $0x18] sm:$0xff]
        %v1705 = vld [vmem:[#allocation3 + $0x20] sm:$0xff]
        %v1706 = vld [vmem:[#allocation3 + $0x28] sm:$0xff]
        %v1707 = vld [vmem:[#allocation3 + $0x30] sm:$0xff]
        %v1708 = vld [vmem:[#allocation3 + $0x38] sm:$0xff]
        %v1709 = vld [vmem:[#allocation3 + $0x40] sm:$0xff]
        %v1710 = vld [vmem:[#allocation3 + $0x48] sm:$0xff]
        %v1711 = vld [vmem:[#allocation3 + $0x50] sm:$0xff]
        %v1712 = vld [vmem:[#allocation3 + $0x58] sm:$0xff]
        %v1713 = vld [vmem:[#allocation3 + $0x60] sm:$0xff]
        %v1714 = vld [vmem:[#allocation3 + $0x68] sm:$0xff]
        %v1715 = vld [vmem:[#allocation3 + $0x70] sm:$0xff]
        %v1716 = vld [vmem:[#allocation3 + $0x78] sm:$0xff]
        %v1717 = vld [vmem:[#allocation3 + $0x80] sm:$0xff]
        %v1718 = vld [vmem:[#allocation3 + $0x88] sm:$0xff]
        %v1719 = vld [vmem:[#allocation3 + $0x90] sm:$0xff]
        %v1720 = vld [vmem:[#allocation3 + $0x98] sm:$0xff]
        %v1721 = vld [vmem:[#allocation3 + $0xa0] sm:$0xff]
        %v1722 = vld [vmem:[#allocation3 + $0xa8] sm:$0xff]
        %v1723 = vld [vmem:[#allocation3 + $0xb0] sm:$0xff]
        %v1724 = vld [vmem:[#allocation3 + $0xb8] sm:$0xff]
        %v1725 = vld [vmem:[#allocation3 + $0xc0] sm:$0xff]
        %v1726 = vld [vmem:[#allocation3 + $0xc8] sm:$0xff]
        %v1727 = vld [vmem:[#allocation3 + $0xd0] sm:$0xff]
        %v1728 = vld [vmem:[#allocation3 + $0xd8] sm:$0xff]
        %v1729 = vld [vmem:[#allocation3 + $0xe0] sm:$0xff]
        %v1730 = vld [vmem:[#allocation3 + $0xe8] sm:$0xff]
        %v1731 = vld [vmem:[#allocation3 + $0xf0] sm:$0xff]
        %v1732 = vld [vmem:[#allocation3 + $0xf8] sm:$0xff]
        %v1733 = vadd.f32 %v1701, %v1543
        %v1734 = vadd.f32 %v1702, %v1548
        %v1735 = vadd.f32 %v1703, %v1553
        %v1736 = vadd.f32 %v1704, %v1558
        %v1737 = vadd.f32 %v1705, %v1563
        %v1738 = vadd.f32 %v1706, %v1568
        %v1739 = vadd.f32 %v1707, %v1573
        %v1740 = vadd.f32 %v1708, %v1578
        %v1741 = vadd.f32 %v1709, %v1583
        %v1742 = vadd.f32 %v1710, %v1588
        %v1743 = vadd.f32 %v1711, %v1593
        %v1744 = vadd.f32 %v1712, %v1598
        %v1745 = vadd.f32 %v1713, %v1603
        %v1746 = vadd.f32 %v1714, %v1608
        %v1747 = vadd.f32 %v1715, %v1613
        %v1748 = vadd.f32 %v1716, %v1618
        %v1749 = vadd.f32 %v1717, %v1623
        %v1750 = vadd.f32 %v1718, %v1628
        %v1751 = vadd.f32 %v1719, %v1633
        %v1752 = vadd.f32 %v1720, %v1638
        %v1753 = vadd.f32 %v1721, %v1643
        %v1754 = vadd.f32 %v1722, %v1648
        %v1755 = vadd.f32 %v1723, %v1653
        %v1756 = vadd.f32 %v1724, %v1658
        %v1757 = vadd.f32 %v1725, %v1663
        %v1758 = vadd.f32 %v1726, %v1668
        %v1759 = vadd.f32 %v1727, %v1673
        %v1760 = vadd.f32 %v1728, %v1678
        %v1761 = vadd.f32 %v1729, %v1683
        %v1762 = vadd.f32 %v1730, %v1688
        %v1763 = vadd.f32 %v1731, %v1693
        %v1764 = vadd.f32 %v1732, %v1698
        %1765 = vst [vmem:[#allocation3] sm:$0xff] %v1733
        %1766 = vst [vmem:[#allocation3 + $0x8] sm:$0xff] %v1734
        %1767 = vst [vmem:[#allocation3 + $0x10] sm:$0xff] %v1735
        %1768 = vst [vmem:[#allocation3 + $0x18] sm:$0xff] %v1736
        %1769 = vst [vmem:[#allocation3 + $0x20] sm:$0xff] %v1737
        %1770 = vst [vmem:[#allocation3 + $0x28] sm:$0xff] %v1738
        %1771 = vst [vmem:[#allocation3 + $0x30] sm:$0xff] %v1739
        %1772 = vst [vmem:[#allocation3 + $0x38] sm:$0xff] %v1740
        %1773 = vst [vmem:[#allocation3 + $0x40] sm:$0xff] %v1741
        %1774 = vst [vmem:[#allocation3 + $0x48] sm:$0xff] %v1742
        %1775 = vst [vmem:[#allocation3 + $0x50] sm:$0xff] %v1743
        %1776 = vst [vmem:[#allocation3 + $0x58] sm:$0xff] %v1744
        %1777 = vst [vmem:[#allocation3 + $0x60] sm:$0xff] %v1745
        %1778 = vst [vmem:[#allocation3 + $0x68] sm:$0xff] %v1746
        %1779 = vst [vmem:[#allocation3 + $0x70] sm:$0xff] %v1747
        %1780 = vst [vmem:[#allocation3 + $0x78] sm:$0xff] %v1748
        %1781 = vst [vmem:[#allocation3 + $0x80] sm:$0xff] %v1749
        %1782 = vst [vmem:[#allocation3 + $0x88] sm:$0xff] %v1750
        %1783 = vst [vmem:[#allocation3 + $0x90] sm:$0xff] %v1751
        %1784 = vst [vmem:[#allocation3 + $0x98] sm:$0xff] %v1752
        %1785 = vst [vmem:[#allocation3 + $0xa0] sm:$0xff] %v1753
        %1786 = vst [vmem:[#allocation3 + $0xa8] sm:$0xff] %v1754
        %1787 = vst [vmem:[#allocation3 + $0xb0] sm:$0xff] %v1755
        %1788 = vst [vmem:[#allocation3 + $0xb8] sm:$0xff] %v1756
        %1789 = vst [vmem:[#allocation3 + $0xc0] sm:$0xff] %v1757
        %1790 = vst [vmem:[#allocation3 + $0xc8] sm:$0xff] %v1758
        %1791 = vst [vmem:[#allocation3 + $0xd0] sm:$0xff] %v1759
        %1792 = vst [vmem:[#allocation3 + $0xd8] sm:$0xff] %v1760
        %1793 = vst [vmem:[#allocation3 + $0xe0] sm:$0xff] %v1761
        %1794 = vst [vmem:[#allocation3 + $0xe8] sm:$0xff] %v1762
        %1795 = vst [vmem:[#allocation3 + $0xf0] sm:$0xff] %v1763
        %1796 = vst [vmem:[#allocation3 + $0xf8] sm:$0xff] %v1764
        %v1797 = vld [vmem:[%s687] sm:$0xff]
        %v1798 = vld [vmem:[%s687 + $0x8] sm:$0xff]
        %v1799 = vld [vmem:[%s687 + $0x18] sm:$0xff]
        %v1800 = vld [vmem:[%s687 + $0x20] sm:$0xff]
        %v1801 = vld [vmem:[%s687 + $0x30] sm:$0xff]
        %v1802 = vld [vmem:[%s687 + $0x38] sm:$0xff]
        %v1803 = vld [vmem:[%s687 + $0x48] sm:$0xff]
        %v1804 = vld [vmem:[%s687 + $0x50] sm:$0xff]
        %v1805 = vld [vmem:[%s687 + $0x60] sm:$0xff]
        %v1806 = vld [vmem:[%s687 + $0x68] sm:$0xff]
        %v1807 = vld [vmem:[%s687 + $0x78] sm:$0xff]
        %v1808 = vld [vmem:[%s687 + $0x80] sm:$0xff]
        %v1809 = vld [vmem:[%s687 + $0x90] sm:$0xff]
        %v1810 = vld [vmem:[%s687 + $0x98] sm:$0xff]
        %v1811 = vld [vmem:[%s687 + $0xa8] sm:$0xff]
        %v1812 = vld [vmem:[%s687 + $0xb0] sm:$0xff]
        %v1813 = vld [vmem:[%s687 + $0xc0] sm:$0xff]
        %v1814 = vld [vmem:[%s687 + $0xc8] sm:$0xff]
        %v1815 = vld [vmem:[%s687 + $0xd8] sm:$0xff]
        %v1816 = vld [vmem:[%s687 + $0xe0] sm:$0xff]
        %v1817 = vld [vmem:[%s687 + $0xf0] sm:$0xff]
        %v1818 = vld [vmem:[%s687 + $0xf8] sm:$0xff]
        %v1819 = vld [vmem:[%s687 + $0x108] sm:$0xff]
        %v1820 = vld [vmem:[%s687 + $0x110] sm:$0xff]
        %v1821 = vld [vmem:[%s687 + $0x120] sm:$0xff]
        %v1822 = vld [vmem:[%s687 + $0x128] sm:$0xff]
        %v1823 = vld [vmem:[%s687 + $0x138] sm:$0xff]
        %v1824 = vld [vmem:[%s687 + $0x140] sm:$0xff]
        %v1825 = vld [vmem:[%s687 + $0x150] sm:$0xff]
        %v1826 = vld [vmem:[%s687 + $0x158] sm:$0xff]
        %v1827 = vld [vmem:[%s687 + $0x168] sm:$0xff]
        %v1828 = vld [vmem:[%s687 + $0x170] sm:$0xff]
        %s1829 = scalar_lea.vmem [#allocation9], 384
        %v1830 = vld [vmem:[%s1829] sm:$0xff]
        %v1831 = vld [vmem:[%s1829 + $0x8] sm:$0xff]
        %v1832 = vld [vmem:[%s1829 + $0x10] sm:$0xff]
        %v1833 = vld [vmem:[%s1829 + $0x18] sm:$0xff]
        %v1834 = vld [vmem:[%s1829 + $0x20] sm:$0xff]
        %v1835 = vld [vmem:[%s1829 + $0x28] sm:$0xff]
        %v1836 = vld [vmem:[%s1829 + $0x30] sm:$0xff]
        %v1837 = vld [vmem:[%s1829 + $0x38] sm:$0xff]
        %v1838 = vld [vmem:[%s1829 + $0x40] sm:$0xff]
        %v1839 = vld [vmem:[%s1829 + $0x48] sm:$0xff]
        %v1840 = vld [vmem:[%s1829 + $0x50] sm:$0xff]
        %v1841 = vld [vmem:[%s1829 + $0x58] sm:$0xff]
        %v1842 = vld [vmem:[%s1829 + $0x60] sm:$0xff]
        %v1843 = vld [vmem:[%s1829 + $0x68] sm:$0xff]
        %v1844 = vld [vmem:[%s1829 + $0x70] sm:$0xff]
        %v1845 = vld [vmem:[%s1829 + $0x78] sm:$0xff]
        %1846 = vmatprep.subr.mxu0 0.0
        %1847 = vmatpush1.msra.mxu0 %v1830
        %1848 = vmatprep.subr.mxu0 0.0
        %1849 = vmatpush1.msra.mxu0 %v1831
        %1850 = vmatprep.subr.mxu0 0.0
        %1851 = vmatpush1.msra.mxu0 %v1832
        %1852 = vmatprep.subr.mxu0 0.0
        %1853 = vmatpush1.msra.mxu0 %v1833
        %1854 = vmatprep.subr.mxu0 0.0
        %1855 = vmatpush1.msra.mxu0 %v1834
        %1856 = vmatprep.subr.mxu0 0.0
        %1857 = vmatpush1.msra.mxu0 %v1835
        %1858 = vmatprep.subr.mxu0 0.0
        %1859 = vmatpush1.msra.mxu0 %v1836
        %1860 = vmatprep.subr.mxu0 0.0
        %1861 = vmatpush1.msra.mxu0 %v1837
        %1862 = vmatprep.subr.mxu0 0.0
        %1863 = vmatpush1.msra.mxu0 %v1838
        %1864 = vmatprep.subr.mxu0 0.0
        %1865 = vmatpush1.msra.mxu0 %v1839
        %1866 = vmatprep.subr.mxu0 0.0
        %1867 = vmatpush1.msra.mxu0 %v1840
        %1868 = vmatprep.subr.mxu0 0.0
        %1869 = vmatpush1.msra.mxu0 %v1841
        %1870 = vmatprep.subr.mxu0 0.0
        %1871 = vmatpush1.msra.mxu0 %v1842
        %1872 = vmatprep.subr.mxu0 0.0
        %1873 = vmatpush1.msra.mxu0 %v1843
        %1874 = vmatprep.subr.mxu0 0.0
        %1875 = vmatpush1.msra.mxu0 %v1844
        %1876 = vmatprep.subr.mxu0 0.0
        %1877 = vmatpush1.msra.mxu0 %v1845
        %1878 = vmatprep.subr.mxu0 0.0
        %1879 = vmatpush1.msra.mxu0 0.0
        %1880 = vmatprep.subr.mxu0 0.0
        %1881 = vmatpush1.msra.mxu0 0.0
        %1882 = vmatprep.subr.mxu0 0.0
        %1883 = vmatpush1.msra.mxu0 0.0
        %1884 = vmatprep.subr.mxu0 0.0
        %1885 = vmatpush1.msra.mxu0 0.0
        %1886 = vmatprep.subr.mxu0 0.0
        %1887 = vmatpush1.msra.mxu0 0.0
        %1888 = vmatprep.subr.mxu0 0.0
        %1889 = vmatpush1.msra.mxu0 0.0
        %1890 = vmatprep.subr.mxu0 0.0
        %1891 = vmatpush1.msra.mxu0 0.0
        %1892 = vmatprep.subr.mxu0 0.0
        %1893 = vmatpush1.msra.mxu0 0.0
        %1894 = vmatprep.subr.mxu0 0.0
        %1895 = vmatpush1.msra.mxu0 0.0
        %1896 = vmatprep.subr.mxu0 0.0
        %1897 = vmatpush1.msra.mxu0 0.0
        %1898 = vmatprep.subr.mxu0 0.0
        %1899 = vmatpush1.msra.mxu0 0.0
        %1900 = vmatprep.subr.mxu0 0.0
        %1901 = vmatpush1.msra.mxu0 0.0
        %1902 = vmatprep.subr.mxu0 0.0
        %1903 = vmatpush1.msra.mxu0 0.0
        %1904 = vmatprep.subr.mxu0 0.0
        %1905 = vmatpush1.msra.mxu0 0.0
        %1906 = vmatprep.subr.mxu0 0.0
        %1907 = vmatpush1.msra.mxu0 0.0
        %1908 = vmatprep.subr.mxu0 0.0
        %1909 = vmatpush1.msra.mxu0 0.0
        %1910 = vmatprep.mubr.f32.mxu0 0.0
        %1911 = vmatmul.mubr.f32.gmra.mrb[0].mxu0 %v1797
        %v1912 = vpop.f32.mrb[0].mxu0
        %v1913 = vadd.f32 0.0, %v1912
        %v1914 = vpop.f32.mrb[0].mxu0
        %1915 = vmatprep.mubr.f32.mxu0 0.0
        %1916 = vmatmul.mubr.f32.gmra.mrb[0].mxu0 %v1798
        %v1917 = vpop.f32.mrb[0].mxu0
        %v1918 = vadd.f32 0.0, %v1917
        %v1919 = vpop.f32.mrb[0].mxu0
        %1920 = vmatprep.mubr.f32.mxu0 0.0
        %1921 = vmatmul.mubr.f32.gmra.mrb[0].mxu0 %v1799
        %v1922 = vpop.f32.mrb[0].mxu0
        %v1923 = vadd.f32 0.0, %v1922
        %v1924 = vpop.f32.mrb[0].mxu0
        %1925 = vmatprep.mubr.f32.mxu0 0.0
        %1926 = vmatmul.mubr.f32.gmra.mrb[0].mxu0 %v1800
        %v1927 = vpop.f32.mrb[0].mxu0
        %v1928 = vadd.f32 0.0, %v1927
        %v1929 = vpop.f32.mrb[0].mxu0
        %1930 = vmatprep.mubr.f32.mxu0 0.0
        %1931 = vmatmul.mubr.f32.gmra.mrb[0].mxu0 %v1801
        %v1932 = vpop.f32.mrb[0].mxu0
        %v1933 = vadd.f32 0.0, %v1932
        %v1934 = vpop.f32.mrb[0].mxu0
        %1935 = vmatprep.mubr.f32.mxu0 0.0
        %1936 = vmatmul.mubr.f32.gmra.mrb[0].mxu0 %v1802
        %v1937 = vpop.f32.mrb[0].mxu0
        %v1938 = vadd.f32 0.0, %v1937
        %v1939 = vpop.f32.mrb[0].mxu0
        %1940 = vmatprep.mubr.f32.mxu0 0.0
        %1941 = vmatmul.mubr.f32.gmra.mrb[0].mxu0 %v1803
        %v1942 = vpop.f32.mrb[0].mxu0
        %v1943 = vadd.f32 0.0, %v1942
        %v1944 = vpop.f32.mrb[0].mxu0
        %1945 = vmatprep.mubr.f32.mxu0 0.0
        %1946 = vmatmul.mubr.f32.gmra.mrb[0].mxu0 %v1804
        %v1947 = vpop.f32.mrb[0].mxu0
        %v1948 = vadd.f32 0.0, %v1947
        %v1949 = vpop.f32.mrb[0].mxu0
        %1950 = vmatprep.mubr.f32.mxu0 0.0
        %1951 = vmatmul.mubr.f32.gmra.mrb[0].mxu0 %v1805
        %v1952 = vpop.f32.mrb[0].mxu0
        %v1953 = vadd.f32 0.0, %v1952
        %v1954 = vpop.f32.mrb[0].mxu0
        %1955 = vmatprep.mubr.f32.mxu0 0.0
        %1956 = vmatmul.mubr.f32.gmra.mrb[0].mxu0 %v1806
        %v1957 = vpop.f32.mrb[0].mxu0
        %v1958 = vadd.f32 0.0, %v1957
        %v1959 = vpop.f32.mrb[0].mxu0
        %1960 = vmatprep.mubr.f32.mxu0 0.0
        %1961 = vmatmul.mubr.f32.gmra.mrb[0].mxu0 %v1807
        %v1962 = vpop.f32.mrb[0].mxu0
        %v1963 = vadd.f32 0.0, %v1962
        %v1964 = vpop.f32.mrb[0].mxu0
        %1965 = vmatprep.mubr.f32.mxu0 0.0
        %1966 = vmatmul.mubr.f32.gmra.mrb[0].mxu0 %v1808
        %v1967 = vpop.f32.mrb[0].mxu0
        %v1968 = vadd.f32 0.0, %v1967
        %v1969 = vpop.f32.mrb[0].mxu0
        %1970 = vmatprep.mubr.f32.mxu0 0.0
        %1971 = vmatmul.mubr.f32.gmra.mrb[0].mxu0 %v1809
        %v1972 = vpop.f32.mrb[0].mxu0
        %v1973 = vadd.f32 0.0, %v1972
        %v1974 = vpop.f32.mrb[0].mxu0
        %1975 = vmatprep.mubr.f32.mxu0 0.0
        %1976 = vmatmul.mubr.f32.gmra.mrb[0].mxu0 %v1810
        %v1977 = vpop.f32.mrb[0].mxu0
        %v1978 = vadd.f32 0.0, %v1977
        %v1979 = vpop.f32.mrb[0].mxu0
        %1980 = vmatprep.mubr.f32.mxu0 0.0
        %1981 = vmatmul.mubr.f32.gmra.mrb[0].mxu0 %v1811
        %v1982 = vpop.f32.mrb[0].mxu0
        %v1983 = vadd.f32 0.0, %v1982
        %v1984 = vpop.f32.mrb[0].mxu0
        %1985 = vmatprep.mubr.f32.mxu0 0.0
        %1986 = vmatmul.mubr.f32.gmra.mrb[0].mxu0 %v1812
        %v1987 = vpop.f32.mrb[0].mxu0
        %v1988 = vadd.f32 0.0, %v1987
        %v1989 = vpop.f32.mrb[0].mxu0
        %1990 = vmatprep.mubr.f32.mxu0 0.0
        %1991 = vmatmul.mubr.f32.gmra.mrb[0].mxu0 %v1813
        %v1992 = vpop.f32.mrb[0].mxu0
        %v1993 = vadd.f32 0.0, %v1992
        %v1994 = vpop.f32.mrb[0].mxu0
        %1995 = vmatprep.mubr.f32.mxu0 0.0
        %1996 = vmatmul.mubr.f32.gmra.mrb[0].mxu0 %v1814
        %v1997 = vpop.f32.mrb[0].mxu0
        %v1998 = vadd.f32 0.0, %v1997
        %v1999 = vpop.f32.mrb[0].mxu0
        %2000 = vmatprep.mubr.f32.mxu0 0.0
        %2001 = vmatmul.mubr.f32.gmra.mrb[0].mxu0 %v1815
        %v2002 = vpop.f32.mrb[0].mxu0
        %v2003 = vadd.f32 0.0, %v2002
        %v2004 = vpop.f32.mrb[0].mxu0
        %2005 = vmatprep.mubr.f32.mxu0 0.0
        %2006 = vmatmul.mubr.f32.gmra.mrb[0].mxu0 %v1816
        %v2007 = vpop.f32.mrb[0].mxu0
        %v2008 = vadd.f32 0.0, %v2007
        %v2009 = vpop.f32.mrb[0].mxu0
        %2010 = vmatprep.mubr.f32.mxu0 0.0
        %2011 = vmatmul.mubr.f32.gmra.mrb[0].mxu0 %v1817
        %v2012 = vpop.f32.mrb[0].mxu0
        %v2013 = vadd.f32 0.0, %v2012
        %v2014 = vpop.f32.mrb[0].mxu0
        %2015 = vmatprep.mubr.f32.mxu0 0.0
        %2016 = vmatmul.mubr.f32.gmra.mrb[0].mxu0 %v1818
        %v2017 = vpop.f32.mrb[0].mxu0
        %v2018 = vadd.f32 0.0, %v2017
        %v2019 = vpop.f32.mrb[0].mxu0
        %2020 = vmatprep.mubr.f32.mxu0 0.0
        %2021 = vmatmul.mubr.f32.gmra.mrb[0].mxu0 %v1819
        %v2022 = vpop.f32.mrb[0].mxu0
        %v2023 = vadd.f32 0.0, %v2022
        %v2024 = vpop.f32.mrb[0].mxu0
        %2025 = vmatprep.mubr.f32.mxu0 0.0
        %2026 = vmatmul.mubr.f32.gmra.mrb[0].mxu0 %v1820
        %v2027 = vpop.f32.mrb[0].mxu0
        %v2028 = vadd.f32 0.0, %v2027
        %v2029 = vpop.f32.mrb[0].mxu0
        %2030 = vmatprep.mubr.f32.mxu0 0.0
        %2031 = vmatmul.mubr.f32.gmra.mrb[0].mxu0 %v1821
        %v2032 = vpop.f32.mrb[0].mxu0
        %v2033 = vadd.f32 0.0, %v2032
        %v2034 = vpop.f32.mrb[0].mxu0
        %2035 = vmatprep.mubr.f32.mxu0 0.0
        %2036 = vmatmul.mubr.f32.gmra.mrb[0].mxu0 %v1822
        %v2037 = vpop.f32.mrb[0].mxu0
        %v2038 = vadd.f32 0.0, %v2037
        %v2039 = vpop.f32.mrb[0].mxu0
        %2040 = vmatprep.mubr.f32.mxu0 0.0
        %2041 = vmatmul.mubr.f32.gmra.mrb[0].mxu0 %v1823
        %v2042 = vpop.f32.mrb[0].mxu0
        %v2043 = vadd.f32 0.0, %v2042
        %v2044 = vpop.f32.mrb[0].mxu0
        %2045 = vmatprep.mubr.f32.mxu0 0.0
        %2046 = vmatmul.mubr.f32.gmra.mrb[0].mxu0 %v1824
        %v2047 = vpop.f32.mrb[0].mxu0
        %v2048 = vadd.f32 0.0, %v2047
        %v2049 = vpop.f32.mrb[0].mxu0
        %2050 = vmatprep.mubr.f32.mxu0 0.0
        %2051 = vmatmul.mubr.f32.gmra.mrb[0].mxu0 %v1825
        %v2052 = vpop.f32.mrb[0].mxu0
        %v2053 = vadd.f32 0.0, %v2052
        %v2054 = vpop.f32.mrb[0].mxu0
        %2055 = vmatprep.mubr.f32.mxu0 0.0
        %2056 = vmatmul.mubr.f32.gmra.mrb[0].mxu0 %v1826
        %v2057 = vpop.f32.mrb[0].mxu0
        %v2058 = vadd.f32 0.0, %v2057
        %v2059 = vpop.f32.mrb[0].mxu0
        %2060 = vmatprep.mubr.f32.mxu0 0.0
        %2061 = vmatmul.mubr.f32.gmra.mrb[0].mxu0 %v1827
        %v2062 = vpop.f32.mrb[0].mxu0
        %v2063 = vadd.f32 0.0, %v2062
        %v2064 = vpop.f32.mrb[0].mxu0
        %2065 = vmatprep.mubr.f32.mxu0 0.0
        %2066 = vmatmul.mubr.f32.gmra.mrb[0].mxu0 %v1828
        %v2067 = vpop.f32.mrb[0].mxu0
        %v2068 = vadd.f32 0.0, %v2067
        %v2069 = vpop.f32.mrb[0].mxu0
        %2070 = vdwg.mxu0
        %v2071 = vld [vmem:[#allocation3] sm:$0xff]
        %v2072 = vld [vmem:[#allocation3 + $0x8] sm:$0xff]
        %v2073 = vld [vmem:[#allocation3 + $0x10] sm:$0xff]
        %v2074 = vld [vmem:[#allocation3 + $0x18] sm:$0xff]
        %v2075 = vld [vmem:[#allocation3 + $0x20] sm:$0xff]
        %v2076 = vld [vmem:[#allocation3 + $0x28] sm:$0xff]
        %v2077 = vld [vmem:[#allocation3 + $0x30] sm:$0xff]
        %v2078 = vld [vmem:[#allocation3 + $0x38] sm:$0xff]
        %v2079 = vld [vmem:[#allocation3 + $0x40] sm:$0xff]
        %v2080 = vld [vmem:[#allocation3 + $0x48] sm:$0xff]
        %v2081 = vld [vmem:[#allocation3 + $0x50] sm:$0xff]
        %v2082 = vld [vmem:[#allocation3 + $0x58] sm:$0xff]
        %v2083 = vld [vmem:[#allocation3 + $0x60] sm:$0xff]
        %v2084 = vld [vmem:[#allocation3 + $0x68] sm:$0xff]
        %v2085 = vld [vmem:[#allocation3 + $0x70] sm:$0xff]
        %v2086 = vld [vmem:[#allocation3 + $0x78] sm:$0xff]
        %v2087 = vld [vmem:[#allocation3 + $0x80] sm:$0xff]
        %v2088 = vld [vmem:[#allocation3 + $0x88] sm:$0xff]
        %v2089 = vld [vmem:[#allocation3 + $0x90] sm:$0xff]
        %v2090 = vld [vmem:[#allocation3 + $0x98] sm:$0xff]
        %v2091 = vld [vmem:[#allocation3 + $0xa0] sm:$0xff]
        %v2092 = vld [vmem:[#allocation3 + $0xa8] sm:$0xff]
        %v2093 = vld [vmem:[#allocation3 + $0xb0] sm:$0xff]
        %v2094 = vld [vmem:[#allocation3 + $0xb8] sm:$0xff]
        %v2095 = vld [vmem:[#allocation3 + $0xc0] sm:$0xff]
        %v2096 = vld [vmem:[#allocation3 + $0xc8] sm:$0xff]
        %v2097 = vld [vmem:[#allocation3 + $0xd0] sm:$0xff]
        %v2098 = vld [vmem:[#allocation3 + $0xd8] sm:$0xff]
        %v2099 = vld [vmem:[#allocation3 + $0xe0] sm:$0xff]
        %v2100 = vld [vmem:[#allocation3 + $0xe8] sm:$0xff]
        %v2101 = vld [vmem:[#allocation3 + $0xf0] sm:$0xff]
        %v2102 = vld [vmem:[#allocation3 + $0xf8] sm:$0xff]
        %v2103 = vadd.f32 %v2071, %v1913
        %v2104 = vadd.f32 %v2072, %v1918
        %v2105 = vadd.f32 %v2073, %v1923
        %v2106 = vadd.f32 %v2074, %v1928
        %v2107 = vadd.f32 %v2075, %v1933
        %v2108 = vadd.f32 %v2076, %v1938
        %v2109 = vadd.f32 %v2077, %v1943
        %v2110 = vadd.f32 %v2078, %v1948
        %v2111 = vadd.f32 %v2079, %v1953
        %v2112 = vadd.f32 %v2080, %v1958
        %v2113 = vadd.f32 %v2081, %v1963
        %v2114 = vadd.f32 %v2082, %v1968
        %v2115 = vadd.f32 %v2083, %v1973
        %v2116 = vadd.f32 %v2084, %v1978
        %v2117 = vadd.f32 %v2085, %v1983
        %v2118 = vadd.f32 %v2086, %v1988
        %v2119 = vadd.f32 %v2087, %v1993
        %v2120 = vadd.f32 %v2088, %v1998
        %v2121 = vadd.f32 %v2089, %v2003
        %v2122 = vadd.f32 %v2090, %v2008
        %v2123 = vadd.f32 %v2091, %v2013
        %v2124 = vadd.f32 %v2092, %v2018
        %v2125 = vadd.f32 %v2093, %v2023
        %v2126 = vadd.f32 %v2094, %v2028
        %v2127 = vadd.f32 %v2095, %v2033
        %v2128 = vadd.f32 %v2096, %v2038
        %v2129 = vadd.f32 %v2097, %v2043
        %v2130 = vadd.f32 %v2098, %v2048
        %v2131 = vadd.f32 %v2099, %v2053
        %v2132 = vadd.f32 %v2100, %v2058
        %v2133 = vadd.f32 %v2101, %v2063
        %v2134 = vadd.f32 %v2102, %v2068
        %2135 = vst [vmem:[#allocation3] sm:$0xff] %v2103
        %2136 = vst [vmem:[#allocation3 + $0x8] sm:$0xff] %v2104
        %2137 = vst [vmem:[#allocation3 + $0x10] sm:$0xff] %v2105
        %2138 = vst [vmem:[#allocation3 + $0x18] sm:$0xff] %v2106
        %2139 = vst [vmem:[#allocation3 + $0x20] sm:$0xff] %v2107
        %2140 = vst [vmem:[#allocation3 + $0x28] sm:$0xff] %v2108
        %2141 = vst [vmem:[#allocation3 + $0x30] sm:$0xff] %v2109
        %2142 = vst [vmem:[#allocation3 + $0x38] sm:$0xff] %v2110
        %2143 = vst [vmem:[#allocation3 + $0x40] sm:$0xff] %v2111
        %2144 = vst [vmem:[#allocation3 + $0x48] sm:$0xff] %v2112
        %2145 = vst [vmem:[#allocation3 + $0x50] sm:$0xff] %v2113
        %2146 = vst [vmem:[#allocation3 + $0x58] sm:$0xff] %v2114
        %2147 = vst [vmem:[#allocation3 + $0x60] sm:$0xff] %v2115
        %2148 = vst [vmem:[#allocation3 + $0x68] sm:$0xff] %v2116
        %2149 = vst [vmem:[#allocation3 + $0x70] sm:$0xff] %v2117
        %2150 = vst [vmem:[#allocation3 + $0x78] sm:$0xff] %v2118
        %2151 = vst [vmem:[#allocation3 + $0x80] sm:$0xff] %v2119
        %2152 = vst [vmem:[#allocation3 + $0x88] sm:$0xff] %v2120
        %2153 = vst [vmem:[#allocation3 + $0x90] sm:$0xff] %v2121
        %2154 = vst [vmem:[#allocation3 + $0x98] sm:$0xff] %v2122
        %2155 = vst [vmem:[#allocation3 + $0xa0] sm:$0xff] %v2123
        %2156 = vst [vmem:[#allocation3 + $0xa8] sm:$0xff] %v2124
        %2157 = vst [vmem:[#allocation3 + $0xb0] sm:$0xff] %v2125
        %2158 = vst [vmem:[#allocation3 + $0xb8] sm:$0xff] %v2126
        %2159 = vst [vmem:[#allocation3 + $0xc0] sm:$0xff] %v2127
        %2160 = vst [vmem:[#allocation3 + $0xc8] sm:$0xff] %v2128
        %2161 = vst [vmem:[#allocation3 + $0xd0] sm:$0xff] %v2129
        %2162 = vst [vmem:[#allocation3 + $0xd8] sm:$0xff] %v2130
        %2163 = vst [vmem:[#allocation3 + $0xe0] sm:$0xff] %v2131
        %2164 = vst [vmem:[#allocation3 + $0xe8] sm:$0xff] %v2132
        %2165 = vst [vmem:[#allocation3 + $0xf0] sm:$0xff] %v2133
        %2166 = vst [vmem:[#allocation3 + $0xf8] sm:$0xff] %v2134
        %v2167 = vld [vmem:[%s687 + $0x1] sm:$0xff]
        %v2168 = vld [vmem:[%s687 + $0x9] sm:$0xff]
        %v2169 = vld [vmem:[%s687 + $0x19] sm:$0xff]
        %v2170 = vld [vmem:[%s687 + $0x21] sm:$0xff]
        %v2171 = vld [vmem:[%s687 + $0x31] sm:$0xff]
        %v2172 = vld [vmem:[%s687 + $0x39] sm:$0xff]
        %v2173 = vld [vmem:[%s687 + $0x49] sm:$0xff]
        %v2174 = vld [vmem:[%s687 + $0x51] sm:$0xff]
        %v2175 = vld [vmem:[%s687 + $0x61] sm:$0xff]
        %v2176 = vld [vmem:[%s687 + $0x69] sm:$0xff]
        %v2177 = vld [vmem:[%s687 + $0x79] sm:$0xff]
        %v2178 = vld [vmem:[%s687 + $0x81] sm:$0xff]
        %v2179 = vld [vmem:[%s687 + $0x91] sm:$0xff]
        %v2180 = vld [vmem:[%s687 + $0x99] sm:$0xff]
        %v2181 = vld [vmem:[%s687 + $0xa9] sm:$0xff]
        %v2182 = vld [vmem:[%s687 + $0xb1] sm:$0xff]
        %v2183 = vld [vmem:[%s687 + $0xc1] sm:$0xff]
        %v2184 = vld [vmem:[%s687 + $0xc9] sm:$0xff]
        %v2185 = vld [vmem:[%s687 + $0xd9] sm:$0xff]
        %v2186 = vld [vmem:[%s687 + $0xe1] sm:$0xff]
        %v2187 = vld [vmem:[%s687 + $0xf1] sm:$0xff]
        %v2188 = vld [vmem:[%s687 + $0xf9] sm:$0xff]
        %v2189 = vld [vmem:[%s687 + $0x109] sm:$0xff]
        %v2190 = vld [vmem:[%s687 + $0x111] sm:$0xff]
        %v2191 = vld [vmem:[%s687 + $0x121] sm:$0xff]
        %v2192 = vld [vmem:[%s687 + $0x129] sm:$0xff]
        %v2193 = vld [vmem:[%s687 + $0x139] sm:$0xff]
        %v2194 = vld [vmem:[%s687 + $0x141] sm:$0xff]
        %v2195 = vld [vmem:[%s687 + $0x151] sm:$0xff]
        %v2196 = vld [vmem:[%s687 + $0x159] sm:$0xff]
        %v2197 = vld [vmem:[%s687 + $0x169] sm:$0xff]
        %v2198 = vld [vmem:[%s687 + $0x171] sm:$0xff]
        %s2199 = scalar_lea.vmem [#allocation9], 512
        %v2200 = vld [vmem:[%s2199] sm:$0xff]
        %v2201 = vld [vmem:[%s2199 + $0x8] sm:$0xff]
        %v2202 = vld [vmem:[%s2199 + $0x10] sm:$0xff]
        %v2203 = vld [vmem:[%s2199 + $0x18] sm:$0xff]
        %v2204 = vld [vmem:[%s2199 + $0x20] sm:$0xff]
        %v2205 = vld [vmem:[%s2199 + $0x28] sm:$0xff]
        %v2206 = vld [vmem:[%s2199 + $0x30] sm:$0xff]
        %v2207 = vld [vmem:[%s2199 + $0x38] sm:$0xff]
        %v2208 = vld [vmem:[%s2199 + $0x40] sm:$0xff]
        %v2209 = vld [vmem:[%s2199 + $0x48] sm:$0xff]
        %v2210 = vld [vmem:[%s2199 + $0x50] sm:$0xff]
        %v2211 = vld [vmem:[%s2199 + $0x58] sm:$0xff]
        %v2212 = vld [vmem:[%s2199 + $0x60] sm:$0xff]
        %v2213 = vld [vmem:[%s2199 + $0x68] sm:$0xff]
        %v2214 = vld [vmem:[%s2199 + $0x70] sm:$0xff]
        %v2215 = vld [vmem:[%s2199 + $0x78] sm:$0xff]
        %2216 = vmatprep.subr.mxu0 0.0
        %2217 = vmatpush1.msra.mxu0 %v2200
        %2218 = vmatprep.subr.mxu0 0.0
        %2219 = vmatpush1.msra.mxu0 %v2201
        %2220 = vmatprep.subr.mxu0 0.0
        %2221 = vmatpush1.msra.mxu0 %v2202
        %2222 = vmatprep.subr.mxu0 0.0
        %2223 = vmatpush1.msra.mxu0 %v2203
        %2224 = vmatprep.subr.mxu0 0.0
        %2225 = vmatpush1.msra.mxu0 %v2204
        %2226 = vmatprep.subr.mxu0 0.0
        %2227 = vmatpush1.msra.mxu0 %v2205
        %2228 = vmatprep.subr.mxu0 0.0
        %2229 = vmatpush1.msra.mxu0 %v2206
        %2230 = vmatprep.subr.mxu0 0.0
        %2231 = vmatpush1.msra.mxu0 %v2207
        %2232 = vmatprep.subr.mxu0 0.0
        %2233 = vmatpush1.msra.mxu0 %v2208
        %2234 = vmatprep.subr.mxu0 0.0
        %2235 = vmatpush1.msra.mxu0 %v2209
        %2236 = vmatprep.subr.mxu0 0.0
        %2237 = vmatpush1.msra.mxu0 %v2210
        %2238 = vmatprep.subr.mxu0 0.0
        %2239 = vmatpush1.msra.mxu0 %v2211
        %2240 = vmatprep.subr.mxu0 0.0
        %2241 = vmatpush1.msra.mxu0 %v2212
        %2242 = vmatprep.subr.mxu0 0.0
        %2243 = vmatpush1.msra.mxu0 %v2213
        %2244 = vmatprep.subr.mxu0 0.0
        %2245 = vmatpush1.msra.mxu0 %v2214
        %2246 = vmatprep.subr.mxu0 0.0
        %2247 = vmatpush1.msra.mxu0 %v2215
        %2248 = vmatprep.subr.mxu0 0.0
        %2249 = vmatpush1.msra.mxu0 0.0
        %2250 = vmatprep.subr.mxu0 0.0
        %2251 = vmatpush1.msra.mxu0 0.0
        %2252 = vmatprep.subr.mxu0 0.0
        %2253 = vmatpush1.msra.mxu0 0.0
        %2254 = vmatprep.subr.mxu0 0.0
        %2255 = vmatpush1.msra.mxu0 0.0
        %2256 = vmatprep.subr.mxu0 0.0
        %2257 = vmatpush1.msra.mxu0 0.0
        %2258 = vmatprep.subr.mxu0 0.0
        %2259 = vmatpush1.msra.mxu0 0.0
        %2260 = vmatprep.subr.mxu0 0.0
        %2261 = vmatpush1.msra.mxu0 0.0
        %2262 = vmatprep.subr.mxu0 0.0
        %2263 = vmatpush1.msra.mxu0 0.0
        %2264 = vmatprep.subr.mxu0 0.0
        %2265 = vmatpush1.msra.mxu0 0.0
        %2266 = vmatprep.subr.mxu0 0.0
        %2267 = vmatpush1.msra.mxu0 0.0
        %2268 = vmatprep.subr.mxu0 0.0
        %2269 = vmatpush1.msra.mxu0 0.0
        %2270 = vmatprep.subr.mxu0 0.0
        %2271 = vmatpush1.msra.mxu0 0.0
        %2272 = vmatprep.subr.mxu0 0.0
        %2273 = vmatpush1.msra.mxu0 0.0
        %2274 = vmatprep.subr.mxu0 0.0
        %2275 = vmatpush1.msra.mxu0 0.0
        %2276 = vmatprep.subr.mxu0 0.0
        %2277 = vmatpush1.msra.mxu0 0.0
        %2278 = vmatprep.subr.mxu0 0.0
        %2279 = vmatpush1.msra.mxu0 0.0
        %2280 = vmatprep.mubr.f32.mxu0 0.0
        %2281 = vmatmul.mubr.f32.gmra.mrb[0].mxu0 %v2167
        %v2282 = vpop.f32.mrb[0].mxu0
        %v2283 = vadd.f32 0.0, %v2282
        %v2284 = vpop.f32.mrb[0].mxu0
        %2285 = vmatprep.mubr.f32.mxu0 0.0
        %2286 = vmatmul.mubr.f32.gmra.mrb[0].mxu0 %v2168
        %v2287 = vpop.f32.mrb[0].mxu0
        %v2288 = vadd.f32 0.0, %v2287
        %v2289 = vpop.f32.mrb[0].mxu0
        %2290 = vmatprep.mubr.f32.mxu0 0.0
        %2291 = vmatmul.mubr.f32.gmra.mrb[0].mxu0 %v2169
        %v2292 = vpop.f32.mrb[0].mxu0
        %v2293 = vadd.f32 0.0, %v2292
        %v2294 = vpop.f32.mrb[0].mxu0
        %2295 = vmatprep.mubr.f32.mxu0 0.0
        %2296 = vmatmul.mubr.f32.gmra.mrb[0].mxu0 %v2170
        %v2297 = vpop.f32.mrb[0].mxu0
        %v2298 = vadd.f32 0.0, %v2297
        %v2299 = vpop.f32.mrb[0].mxu0
        %2300 = vmatprep.mubr.f32.mxu0 0.0
        %2301 = vmatmul.mubr.f32.gmra.mrb[0].mxu0 %v2171
        %v2302 = vpop.f32.mrb[0].mxu0
        %v2303 = vadd.f32 0.0, %v2302
        %v2304 = vpop.f32.mrb[0].mxu0
        %2305 = vmatprep.mubr.f32.mxu0 0.0
        %2306 = vmatmul.mubr.f32.gmra.mrb[0].mxu0 %v2172
        %v2307 = vpop.f32.mrb[0].mxu0
        %v2308 = vadd.f32 0.0, %v2307
        %v2309 = vpop.f32.mrb[0].mxu0
        %2310 = vmatprep.mubr.f32.mxu0 0.0
        %2311 = vmatmul.mubr.f32.gmra.mrb[0].mxu0 %v2173
        %v2312 = vpop.f32.mrb[0].mxu0
        %v2313 = vadd.f32 0.0, %v2312
        %v2314 = vpop.f32.mrb[0].mxu0
        %2315 = vmatprep.mubr.f32.mxu0 0.0
        %2316 = vmatmul.mubr.f32.gmra.mrb[0].mxu0 %v2174
        %v2317 = vpop.f32.mrb[0].mxu0
        %v2318 = vadd.f32 0.0, %v2317
        %v2319 = vpop.f32.mrb[0].mxu0
        %2320 = vmatprep.mubr.f32.mxu0 0.0
        %2321 = vmatmul.mubr.f32.gmra.mrb[0].mxu0 %v2175
        %v2322 = vpop.f32.mrb[0].mxu0
        %v2323 = vadd.f32 0.0, %v2322
        %v2324 = vpop.f32.mrb[0].mxu0
        %2325 = vmatprep.mubr.f32.mxu0 0.0
        %2326 = vmatmul.mubr.f32.gmra.mrb[0].mxu0 %v2176
        %v2327 = vpop.f32.mrb[0].mxu0
        %v2328 = vadd.f32 0.0, %v2327
        %v2329 = vpop.f32.mrb[0].mxu0
        %2330 = vmatprep.mubr.f32.mxu0 0.0
        %2331 = vmatmul.mubr.f32.gmra.mrb[0].mxu0 %v2177
        %v2332 = vpop.f32.mrb[0].mxu0
        %v2333 = vadd.f32 0.0, %v2332
        %v2334 = vpop.f32.mrb[0].mxu0
        %2335 = vmatprep.mubr.f32.mxu0 0.0
        %2336 = vmatmul.mubr.f32.gmra.mrb[0].mxu0 %v2178
        %v2337 = vpop.f32.mrb[0].mxu0
        %v2338 = vadd.f32 0.0, %v2337
        %v2339 = vpop.f32.mrb[0].mxu0
        %2340 = vmatprep.mubr.f32.mxu0 0.0
        %2341 = vmatmul.mubr.f32.gmra.mrb[0].mxu0 %v2179
        %v2342 = vpop.f32.mrb[0].mxu0
        %v2343 = vadd.f32 0.0, %v2342
        %v2344 = vpop.f32.mrb[0].mxu0
        %2345 = vmatprep.mubr.f32.mxu0 0.0
        %2346 = vmatmul.mubr.f32.gmra.mrb[0].mxu0 %v2180
        %v2347 = vpop.f32.mrb[0].mxu0
        %v2348 = vadd.f32 0.0, %v2347
        %v2349 = vpop.f32.mrb[0].mxu0
        %2350 = vmatprep.mubr.f32.mxu0 0.0
        %2351 = vmatmul.mubr.f32.gmra.mrb[0].mxu0 %v2181
        %v2352 = vpop.f32.mrb[0].mxu0
        %v2353 = vadd.f32 0.0, %v2352
        %v2354 = vpop.f32.mrb[0].mxu0
        %2355 = vmatprep.mubr.f32.mxu0 0.0
        %2356 = vmatmul.mubr.f32.gmra.mrb[0].mxu0 %v2182
        %v2357 = vpop.f32.mrb[0].mxu0
        %v2358 = vadd.f32 0.0, %v2357
        %v2359 = vpop.f32.mrb[0].mxu0
        %2360 = vmatprep.mubr.f32.mxu0 0.0
        %2361 = vmatmul.mubr.f32.gmra.mrb[0].mxu0 %v2183
        %v2362 = vpop.f32.mrb[0].mxu0
        %v2363 = vadd.f32 0.0, %v2362
        %v2364 = vpop.f32.mrb[0].mxu0
        %2365 = vmatprep.mubr.f32.mxu0 0.0
        %2366 = vmatmul.mubr.f32.gmra.mrb[0].mxu0 %v2184
        %v2367 = vpop.f32.mrb[0].mxu0
        %v2368 = vadd.f32 0.0, %v2367
        %v2369 = vpop.f32.mrb[0].mxu0
        %2370 = vmatprep.mubr.f32.mxu0 0.0
        %2371 = vmatmul.mubr.f32.gmra.mrb[0].mxu0 %v2185
        %v2372 = vpop.f32.mrb[0].mxu0
        %v2373 = vadd.f32 0.0, %v2372
        %v2374 = vpop.f32.mrb[0].mxu0
        %2375 = vmatprep.mubr.f32.mxu0 0.0
        %2376 = vmatmul.mubr.f32.gmra.mrb[0].mxu0 %v2186
        %v2377 = vpop.f32.mrb[0].mxu0
        %v2378 = vadd.f32 0.0, %v2377
        %v2379 = vpop.f32.mrb[0].mxu0
        %2380 = vmatprep.mubr.f32.mxu0 0.0
        %2381 = vmatmul.mubr.f32.gmra.mrb[0].mxu0 %v2187
        %v2382 = vpop.f32.mrb[0].mxu0
        %v2383 = vadd.f32 0.0, %v2382
        %v2384 = vpop.f32.mrb[0].mxu0
        %2385 = vmatprep.mubr.f32.mxu0 0.0
        %2386 = vmatmul.mubr.f32.gmra.mrb[0].mxu0 %v2188
        %v2387 = vpop.f32.mrb[0].mxu0
        %v2388 = vadd.f32 0.0, %v2387
        %v2389 = vpop.f32.mrb[0].mxu0
        %2390 = vmatprep.mubr.f32.mxu0 0.0
        %2391 = vmatmul.mubr.f32.gmra.mrb[0].mxu0 %v2189
        %v2392 = vpop.f32.mrb[0].mxu0
        %v2393 = vadd.f32 0.0, %v2392
        %v2394 = vpop.f32.mrb[0].mxu0
        %2395 = vmatprep.mubr.f32.mxu0 0.0
        %2396 = vmatmul.mubr.f32.gmra.mrb[0].mxu0 %v2190
        %v2397 = vpop.f32.mrb[0].mxu0
        %v2398 = vadd.f32 0.0, %v2397
        %v2399 = vpop.f32.mrb[0].mxu0
        %2400 = vmatprep.mubr.f32.mxu0 0.0
        %2401 = vmatmul.mubr.f32.gmra.mrb[0].mxu0 %v2191
        %v2402 = vpop.f32.mrb[0].mxu0
        %v2403 = vadd.f32 0.0, %v2402
        %v2404 = vpop.f32.mrb[0].mxu0
        %2405 = vmatprep.mubr.f32.mxu0 0.0
        %2406 = vmatmul.mubr.f32.gmra.mrb[0].mxu0 %v2192
        %v2407 = vpop.f32.mrb[0].mxu0
        %v2408 = vadd.f32 0.0, %v2407
        %v2409 = vpop.f32.mrb[0].mxu0
        %2410 = vmatprep.mubr.f32.mxu0 0.0
        %2411 = vmatmul.mubr.f32.gmra.mrb[0].mxu0 %v2193
        %v2412 = vpop.f32.mrb[0].mxu0
        %v2413 = vadd.f32 0.0, %v2412
        %v2414 = vpop.f32.mrb[0].mxu0
        %2415 = vmatprep.mubr.f32.mxu0 0.0
        %2416 = vmatmul.mubr.f32.gmra.mrb[0].mxu0 %v2194
        %v2417 = vpop.f32.mrb[0].mxu0
        %v2418 = vadd.f32 0.0, %v2417
        %v2419 = vpop.f32.mrb[0].mxu0
        %2420 = vmatprep.mubr.f32.mxu0 0.0
        %2421 = vmatmul.mubr.f32.gmra.mrb[0].mxu0 %v2195
        %v2422 = vpop.f32.mrb[0].mxu0
        %v2423 = vadd.f32 0.0, %v2422
        %v2424 = vpop.f32.mrb[0].mxu0
        %2425 = vmatprep.mubr.f32.mxu0 0.0
        %2426 = vmatmul.mubr.f32.gmra.mrb[0].mxu0 %v2196
        %v2427 = vpop.f32.mrb[0].mxu0
        %v2428 = vadd.f32 0.0, %v2427
        %v2429 = vpop.f32.mrb[0].mxu0
        %2430 = vmatprep.mubr.f32.mxu0 0.0
        %2431 = vmatmul.mubr.f32.gmra.mrb[0].mxu0 %v2197
        %v2432 = vpop.f32.mrb[0].mxu0
        %v2433 = vadd.f32 0.0, %v2432
        %v2434 = vpop.f32.mrb[0].mxu0
        %2435 = vmatprep.mubr.f32.mxu0 0.0
        %2436 = vmatmul.mubr.f32.gmra.mrb[0].mxu0 %v2198
        %v2437 = vpop.f32.mrb[0].mxu0
        %v2438 = vadd.f32 0.0, %v2437
        %v2439 = vpop.f32.mrb[0].mxu0
        %2440 = vdwg.mxu0
        %v2441 = vld [vmem:[#allocation3] sm:$0xff]
        %v2442 = vld [vmem:[#allocation3 + $0x8] sm:$0xff]
        %v2443 = vld [vmem:[#allocation3 + $0x10] sm:$0xff]
        %v2444 = vld [vmem:[#allocation3 + $0x18] sm:$0xff]
        %v2445 = vld [vmem:[#allocation3 + $0x20] sm:$0xff]
        %v2446 = vld [vmem:[#allocation3 + $0x28] sm:$0xff]
        %v2447 = vld [vmem:[#allocation3 + $0x30] sm:$0xff]
        %v2448 = vld [vmem:[#allocation3 + $0x38] sm:$0xff]
        %v2449 = vld [vmem:[#allocation3 + $0x40] sm:$0xff]
        %v2450 = vld [vmem:[#allocation3 + $0x48] sm:$0xff]
        %v2451 = vld [vmem:[#allocation3 + $0x50] sm:$0xff]
        %v2452 = vld [vmem:[#allocation3 + $0x58] sm:$0xff]
        %v2453 = vld [vmem:[#allocation3 + $0x60] sm:$0xff]
        %v2454 = vld [vmem:[#allocation3 + $0x68] sm:$0xff]
        %v2455 = vld [vmem:[#allocation3 + $0x70] sm:$0xff]
        %v2456 = vld [vmem:[#allocation3 + $0x78] sm:$0xff]
        %v2457 = vld [vmem:[#allocation3 + $0x80] sm:$0xff]
        %v2458 = vld [vmem:[#allocation3 + $0x88] sm:$0xff]
        %v2459 = vld [vmem:[#allocation3 + $0x90] sm:$0xff]
        %v2460 = vld [vmem:[#allocation3 + $0x98] sm:$0xff]
        %v2461 = vld [vmem:[#allocation3 + $0xa0] sm:$0xff]
        %v2462 = vld [vmem:[#allocation3 + $0xa8] sm:$0xff]
        %v2463 = vld [vmem:[#allocation3 + $0xb0] sm:$0xff]
        %v2464 = vld [vmem:[#allocation3 + $0xb8] sm:$0xff]
        %v2465 = vld [vmem:[#allocation3 + $0xc0] sm:$0xff]
        %v2466 = vld [vmem:[#allocation3 + $0xc8] sm:$0xff]
        %v2467 = vld [vmem:[#allocation3 + $0xd0] sm:$0xff]
        %v2468 = vld [vmem:[#allocation3 + $0xd8] sm:$0xff]
        %v2469 = vld [vmem:[#allocation3 + $0xe0] sm:$0xff]
        %v2470 = vld [vmem:[#allocation3 + $0xe8] sm:$0xff]
        %v2471 = vld [vmem:[#allocation3 + $0xf0] sm:$0xff]
        %v2472 = vld [vmem:[#allocation3 + $0xf8] sm:$0xff]
        %v2473 = vadd.f32 %v2441, %v2283
        %v2474 = vadd.f32 %v2442, %v2288
        %v2475 = vadd.f32 %v2443, %v2293
        %v2476 = vadd.f32 %v2444, %v2298
        %v2477 = vadd.f32 %v2445, %v2303
        %v2478 = vadd.f32 %v2446, %v2308
        %v2479 = vadd.f32 %v2447, %v2313
        %v2480 = vadd.f32 %v2448, %v2318
        %v2481 = vadd.f32 %v2449, %v2323
        %v2482 = vadd.f32 %v2450, %v2328
        %v2483 = vadd.f32 %v2451, %v2333
        %v2484 = vadd.f32 %v2452, %v2338
        %v2485 = vadd.f32 %v2453, %v2343
        %v2486 = vadd.f32 %v2454, %v2348
        %v2487 = vadd.f32 %v2455, %v2353
        %v2488 = vadd.f32 %v2456, %v2358
        %v2489 = vadd.f32 %v2457, %v2363
        %v2490 = vadd.f32 %v2458, %v2368
        %v2491 = vadd.f32 %v2459, %v2373
        %v2492 = vadd.f32 %v2460, %v2378
        %v2493 = vadd.f32 %v2461, %v2383
        %v2494 = vadd.f32 %v2462, %v2388
        %v2495 = vadd.f32 %v2463, %v2393
        %v2496 = vadd.f32 %v2464, %v2398
        %v2497 = vadd.f32 %v2465, %v2403
        %v2498 = vadd.f32 %v2466, %v2408
        %v2499 = vadd.f32 %v2467, %v2413
        %v2500 = vadd.f32 %v2468, %v2418
        %v2501 = vadd.f32 %v2469, %v2423
        %v2502 = vadd.f32 %v2470, %v2428
        %v2503 = vadd.f32 %v2471, %v2433
        %v2504 = vadd.f32 %v2472, %v2438
        %2505 = vst [vmem:[#allocation3] sm:$0xff] %v2473
        %2506 = vst [vmem:[#allocation3 + $0x8] sm:$0xff] %v2474
        %2507 = vst [vmem:[#allocation3 + $0x10] sm:$0xff] %v2475
        %2508 = vst [vmem:[#allocation3 + $0x18] sm:$0xff] %v2476
        %2509 = vst [vmem:[#allocation3 + $0x20] sm:$0xff] %v2477
        %2510 = vst [vmem:[#allocation3 + $0x28] sm:$0xff] %v2478
        %2511 = vst [vmem:[#allocation3 + $0x30] sm:$0xff] %v2479
        %2512 = vst [vmem:[#allocation3 + $0x38] sm:$0xff] %v2480
        %2513 = vst [vmem:[#allocation3 + $0x40] sm:$0xff] %v2481
        %2514 = vst [vmem:[#allocation3 + $0x48] sm:$0xff] %v2482
        %2515 = vst [vmem:[#allocation3 + $0x50] sm:$0xff] %v2483
        %2516 = vst [vmem:[#allocation3 + $0x58] sm:$0xff] %v2484
        %2517 = vst [vmem:[#allocation3 + $0x60] sm:$0xff] %v2485
        %2518 = vst [vmem:[#allocation3 + $0x68] sm:$0xff] %v2486
        %2519 = vst [vmem:[#allocation3 + $0x70] sm:$0xff] %v2487
        %2520 = vst [vmem:[#allocation3 + $0x78] sm:$0xff] %v2488
        %2521 = vst [vmem:[#allocation3 + $0x80] sm:$0xff] %v2489
        %2522 = vst [vmem:[#allocation3 + $0x88] sm:$0xff] %v2490
        %2523 = vst [vmem:[#allocation3 + $0x90] sm:$0xff] %v2491
        %2524 = vst [vmem:[#allocation3 + $0x98] sm:$0xff] %v2492
        %2525 = vst [vmem:[#allocation3 + $0xa0] sm:$0xff] %v2493
        %2526 = vst [vmem:[#allocation3 + $0xa8] sm:$0xff] %v2494
        %2527 = vst [vmem:[#allocation3 + $0xb0] sm:$0xff] %v2495
        %2528 = vst [vmem:[#allocation3 + $0xb8] sm:$0xff] %v2496
        %2529 = vst [vmem:[#allocation3 + $0xc0] sm:$0xff] %v2497
        %2530 = vst [vmem:[#allocation3 + $0xc8] sm:$0xff] %v2498
        %2531 = vst [vmem:[#allocation3 + $0xd0] sm:$0xff] %v2499
        %2532 = vst [vmem:[#allocation3 + $0xd8] sm:$0xff] %v2500
        %2533 = vst [vmem:[#allocation3 + $0xe0] sm:$0xff] %v2501
        %2534 = vst [vmem:[#allocation3 + $0xe8] sm:$0xff] %v2502
        %2535 = vst [vmem:[#allocation3 + $0xf0] sm:$0xff] %v2503
        %2536 = vst [vmem:[#allocation3 + $0xf8] sm:$0xff] %v2504
        %v2537 = vld [vmem:[%s687 + $0x2] sm:$0xff]
        %v2538 = vld [vmem:[%s687 + $0xa] sm:$0xff]
        %v2539 = vld [vmem:[%s687 + $0x1a] sm:$0xff]
        %v2540 = vld [vmem:[%s687 + $0x22] sm:$0xff]
        %v2541 = vld [vmem:[%s687 + $0x32] sm:$0xff]
        %v2542 = vld [vmem:[%s687 + $0x3a] sm:$0xff]
        %v2543 = vld [vmem:[%s687 + $0x4a] sm:$0xff]
        %v2544 = vld [vmem:[%s687 + $0x52] sm:$0xff]
        %v2545 = vld [vmem:[%s687 + $0x62] sm:$0xff]
        %v2546 = vld [vmem:[%s687 + $0x6a] sm:$0xff]
        %v2547 = vld [vmem:[%s687 + $0x7a] sm:$0xff]
        %v2548 = vld [vmem:[%s687 + $0x82] sm:$0xff]
        %v2549 = vld [vmem:[%s687 + $0x92] sm:$0xff]
        %v2550 = vld [vmem:[%s687 + $0x9a] sm:$0xff]
        %v2551 = vld [vmem:[%s687 + $0xaa] sm:$0xff]
        %v2552 = vld [vmem:[%s687 + $0xb2] sm:$0xff]
        %v2553 = vld [vmem:[%s687 + $0xc2] sm:$0xff]
        %v2554 = vld [vmem:[%s687 + $0xca] sm:$0xff]
        %v2555 = vld [vmem:[%s687 + $0xda] sm:$0xff]
        %v2556 = vld [vmem:[%s687 + $0xe2] sm:$0xff]
        %v2557 = vld [vmem:[%s687 + $0xf2] sm:$0xff]
        %v2558 = vld [vmem:[%s687 + $0xfa] sm:$0xff]
        %v2559 = vld [vmem:[%s687 + $0x10a] sm:$0xff]
        %v2560 = vld [vmem:[%s687 + $0x112] sm:$0xff]
        %v2561 = vld [vmem:[%s687 + $0x122] sm:$0xff]
        %v2562 = vld [vmem:[%s687 + $0x12a] sm:$0xff]
        %v2563 = vld [vmem:[%s687 + $0x13a] sm:$0xff]
        %v2564 = vld [vmem:[%s687 + $0x142] sm:$0xff]
        %v2565 = vld [vmem:[%s687 + $0x152] sm:$0xff]
        %v2566 = vld [vmem:[%s687 + $0x15a] sm:$0xff]
        %v2567 = vld [vmem:[%s687 + $0x16a] sm:$0xff]
        %v2568 = vld [vmem:[%s687 + $0x172] sm:$0xff]
        %s2569 = scalar_lea.vmem [#allocation9], 640
        %v2570 = vld [vmem:[%s2569] sm:$0xff]
        %v2571 = vld [vmem:[%s2569 + $0x8] sm:$0xff]
        %v2572 = vld [vmem:[%s2569 + $0x10] sm:$0xff]
        %v2573 = vld [vmem:[%s2569 + $0x18] sm:$0xff]
        %v2574 = vld [vmem:[%s2569 + $0x20] sm:$0xff]
        %v2575 = vld [vmem:[%s2569 + $0x28] sm:$0xff]
        %v2576 = vld [vmem:[%s2569 + $0x30] sm:$0xff]
        %v2577 = vld [vmem:[%s2569 + $0x38] sm:$0xff]
        %v2578 = vld [vmem:[%s2569 + $0x40] sm:$0xff]
        %v2579 = vld [vmem:[%s2569 + $0x48] sm:$0xff]
        %v2580 = vld [vmem:[%s2569 + $0x50] sm:$0xff]
        %v2581 = vld [vmem:[%s2569 + $0x58] sm:$0xff]
        %v2582 = vld [vmem:[%s2569 + $0x60] sm:$0xff]
        %v2583 = vld [vmem:[%s2569 + $0x68] sm:$0xff]
        %v2584 = vld [vmem:[%s2569 + $0x70] sm:$0xff]
        %v2585 = vld [vmem:[%s2569 + $0x78] sm:$0xff]
        %2586 = vmatprep.subr.mxu0 0.0
        %2587 = vmatpush1.msra.mxu0 %v2570
        %2588 = vmatprep.subr.mxu0 0.0
        %2589 = vmatpush1.msra.mxu0 %v2571
        %2590 = vmatprep.subr.mxu0 0.0
        %2591 = vmatpush1.msra.mxu0 %v2572
        %2592 = vmatprep.subr.mxu0 0.0
        %2593 = vmatpush1.msra.mxu0 %v2573
        %2594 = vmatprep.subr.mxu0 0.0
        %2595 = vmatpush1.msra.mxu0 %v2574
        %2596 = vmatprep.subr.mxu0 0.0
        %2597 = vmatpush1.msra.mxu0 %v2575
        %2598 = vmatprep.subr.mxu0 0.0
        %2599 = vmatpush1.msra.mxu0 %v2576
        %2600 = vmatprep.subr.mxu0 0.0
        %2601 = vmatpush1.msra.mxu0 %v2577
        %2602 = vmatprep.subr.mxu0 0.0
        %2603 = vmatpush1.msra.mxu0 %v2578
        %2604 = vmatprep.subr.mxu0 0.0
        %2605 = vmatpush1.msra.mxu0 %v2579
        %2606 = vmatprep.subr.mxu0 0.0
        %2607 = vmatpush1.msra.mxu0 %v2580
        %2608 = vmatprep.subr.mxu0 0.0
        %2609 = vmatpush1.msra.mxu0 %v2581
        %2610 = vmatprep.subr.mxu0 0.0
        %2611 = vmatpush1.msra.mxu0 %v2582
        %2612 = vmatprep.subr.mxu0 0.0
        %2613 = vmatpush1.msra.mxu0 %v2583
        %2614 = vmatprep.subr.mxu0 0.0
        %2615 = vmatpush1.msra.mxu0 %v2584
        %2616 = vmatprep.subr.mxu0 0.0
        %2617 = vmatpush1.msra.mxu0 %v2585
        %2618 = vmatprep.subr.mxu0 0.0
        %2619 = vmatpush1.msra.mxu0 0.0
        %2620 = vmatprep.subr.mxu0 0.0
        %2621 = vmatpush1.msra.mxu0 0.0
        %2622 = vmatprep.subr.mxu0 0.0
        %2623 = vmatpush1.msra.mxu0 0.0
        %2624 = vmatprep.subr.mxu0 0.0
        %2625 = vmatpush1.msra.mxu0 0.0
        %2626 = vmatprep.subr.mxu0 0.0
        %2627 = vmatpush1.msra.mxu0 0.0
        %2628 = vmatprep.subr.mxu0 0.0
        %2629 = vmatpush1.msra.mxu0 0.0
        %2630 = vmatprep.subr.mxu0 0.0
        %2631 = vmatpush1.msra.mxu0 0.0
        %2632 = vmatprep.subr.mxu0 0.0
        %2633 = vmatpush1.msra.mxu0 0.0
        %2634 = vmatprep.subr.mxu0 0.0
        %2635 = vmatpush1.msra.mxu0 0.0
        %2636 = vmatprep.subr.mxu0 0.0
        %2637 = vmatpush1.msra.mxu0 0.0
        %2638 = vmatprep.subr.mxu0 0.0
        %2639 = vmatpush1.msra.mxu0 0.0
        %2640 = vmatprep.subr.mxu0 0.0
        %2641 = vmatpush1.msra.mxu0 0.0
        %2642 = vmatprep.subr.mxu0 0.0
        %2643 = vmatpush1.msra.mxu0 0.0
        %2644 = vmatprep.subr.mxu0 0.0
        %2645 = vmatpush1.msra.mxu0 0.0
        %2646 = vmatprep.subr.mxu0 0.0
        %2647 = vmatpush1.msra.mxu0 0.0
        %2648 = vmatprep.subr.mxu0 0.0
        %2649 = vmatpush1.msra.mxu0 0.0
        %2650 = vmatprep.mubr.f32.mxu0 0.0
        %2651 = vmatmul.mubr.f32.gmra.mrb[0].mxu0 %v2537
        %v2652 = vpop.f32.mrb[0].mxu0
        %v2653 = vadd.f32 0.0, %v2652
        %v2654 = vpop.f32.mrb[0].mxu0
        %2655 = vmatprep.mubr.f32.mxu0 0.0
        %2656 = vmatmul.mubr.f32.gmra.mrb[0].mxu0 %v2538
        %v2657 = vpop.f32.mrb[0].mxu0
        %v2658 = vadd.f32 0.0, %v2657
        %v2659 = vpop.f32.mrb[0].mxu0
        %2660 = vmatprep.mubr.f32.mxu0 0.0
        %2661 = vmatmul.mubr.f32.gmra.mrb[0].mxu0 %v2539
        %v2662 = vpop.f32.mrb[0].mxu0
        %v2663 = vadd.f32 0.0, %v2662
        %v2664 = vpop.f32.mrb[0].mxu0
        %2665 = vmatprep.mubr.f32.mxu0 0.0
        %2666 = vmatmul.mubr.f32.gmra.mrb[0].mxu0 %v2540
        %v2667 = vpop.f32.mrb[0].mxu0
        %v2668 = vadd.f32 0.0, %v2667
        %v2669 = vpop.f32.mrb[0].mxu0
        %2670 = vmatprep.mubr.f32.mxu0 0.0
        %2671 = vmatmul.mubr.f32.gmra.mrb[0].mxu0 %v2541
        %v2672 = vpop.f32.mrb[0].mxu0
        %v2673 = vadd.f32 0.0, %v2672
        %v2674 = vpop.f32.mrb[0].mxu0
        %2675 = vmatprep.mubr.f32.mxu0 0.0
        %2676 = vmatmul.mubr.f32.gmra.mrb[0].mxu0 %v2542
        %v2677 = vpop.f32.mrb[0].mxu0
        %v2678 = vadd.f32 0.0, %v2677
        %v2679 = vpop.f32.mrb[0].mxu0
        %2680 = vmatprep.mubr.f32.mxu0 0.0
        %2681 = vmatmul.mubr.f32.gmra.mrb[0].mxu0 %v2543
        %v2682 = vpop.f32.mrb[0].mxu0
        %v2683 = vadd.f32 0.0, %v2682
        %v2684 = vpop.f32.mrb[0].mxu0
        %2685 = vmatprep.mubr.f32.mxu0 0.0
        %2686 = vmatmul.mubr.f32.gmra.mrb[0].mxu0 %v2544
        %v2687 = vpop.f32.mrb[0].mxu0
        %v2688 = vadd.f32 0.0, %v2687
        %v2689 = vpop.f32.mrb[0].mxu0
        %2690 = vmatprep.mubr.f32.mxu0 0.0
        %2691 = vmatmul.mubr.f32.gmra.mrb[0].mxu0 %v2545
        %v2692 = vpop.f32.mrb[0].mxu0
        %v2693 = vadd.f32 0.0, %v2692
        %v2694 = vpop.f32.mrb[0].mxu0
        %2695 = vmatprep.mubr.f32.mxu0 0.0
        %2696 = vmatmul.mubr.f32.gmra.mrb[0].mxu0 %v2546
        %v2697 = vpop.f32.mrb[0].mxu0
        %v2698 = vadd.f32 0.0, %v2697
        %v2699 = vpop.f32.mrb[0].mxu0
        %2700 = vmatprep.mubr.f32.mxu0 0.0
        %2701 = vmatmul.mubr.f32.gmra.mrb[0].mxu0 %v2547
        %v2702 = vpop.f32.mrb[0].mxu0
        %v2703 = vadd.f32 0.0, %v2702
        %v2704 = vpop.f32.mrb[0].mxu0
        %2705 = vmatprep.mubr.f32.mxu0 0.0
        %2706 = vmatmul.mubr.f32.gmra.mrb[0].mxu0 %v2548
        %v2707 = vpop.f32.mrb[0].mxu0
        %v2708 = vadd.f32 0.0, %v2707
        %v2709 = vpop.f32.mrb[0].mxu0
        %2710 = vmatprep.mubr.f32.mxu0 0.0
        %2711 = vmatmul.mubr.f32.gmra.mrb[0].mxu0 %v2549
        %v2712 = vpop.f32.mrb[0].mxu0
        %v2713 = vadd.f32 0.0, %v2712
        %v2714 = vpop.f32.mrb[0].mxu0
        %2715 = vmatprep.mubr.f32.mxu0 0.0
        %2716 = vmatmul.mubr.f32.gmra.mrb[0].mxu0 %v2550
        %v2717 = vpop.f32.mrb[0].mxu0
        %v2718 = vadd.f32 0.0, %v2717
        %v2719 = vpop.f32.mrb[0].mxu0
        %2720 = vmatprep.mubr.f32.mxu0 0.0
        %2721 = vmatmul.mubr.f32.gmra.mrb[0].mxu0 %v2551
        %v2722 = vpop.f32.mrb[0].mxu0
        %v2723 = vadd.f32 0.0, %v2722
        %v2724 = vpop.f32.mrb[0].mxu0
        %2725 = vmatprep.mubr.f32.mxu0 0.0
        %2726 = vmatmul.mubr.f32.gmra.mrb[0].mxu0 %v2552
        %v2727 = vpop.f32.mrb[0].mxu0
        %v2728 = vadd.f32 0.0, %v2727
        %v2729 = vpop.f32.mrb[0].mxu0
        %2730 = vmatprep.mubr.f32.mxu0 0.0
        %2731 = vmatmul.mubr.f32.gmra.mrb[0].mxu0 %v2553
        %v2732 = vpop.f32.mrb[0].mxu0
        %v2733 = vadd.f32 0.0, %v2732
        %v2734 = vpop.f32.mrb[0].mxu0
        %2735 = vmatprep.mubr.f32.mxu0 0.0
        %2736 = vmatmul.mubr.f32.gmra.mrb[0].mxu0 %v2554
        %v2737 = vpop.f32.mrb[0].mxu0
        %v2738 = vadd.f32 0.0, %v2737
        %v2739 = vpop.f32.mrb[0].mxu0
        %2740 = vmatprep.mubr.f32.mxu0 0.0
        %2741 = vmatmul.mubr.f32.gmra.mrb[0].mxu0 %v2555
        %v2742 = vpop.f32.mrb[0].mxu0
        %v2743 = vadd.f32 0.0, %v2742
        %v2744 = vpop.f32.mrb[0].mxu0
        %2745 = vmatprep.mubr.f32.mxu0 0.0
        %2746 = vmatmul.mubr.f32.gmra.mrb[0].mxu0 %v2556
        %v2747 = vpop.f32.mrb[0].mxu0
        %v2748 = vadd.f32 0.0, %v2747
        %v2749 = vpop.f32.mrb[0].mxu0
        %2750 = vmatprep.mubr.f32.mxu0 0.0
        %2751 = vmatmul.mubr.f32.gmra.mrb[0].mxu0 %v2557
        %v2752 = vpop.f32.mrb[0].mxu0
        %v2753 = vadd.f32 0.0, %v2752
        %v2754 = vpop.f32.mrb[0].mxu0
        %2755 = vmatprep.mubr.f32.mxu0 0.0
        %2756 = vmatmul.mubr.f32.gmra.mrb[0].mxu0 %v2558
        %v2757 = vpop.f32.mrb[0].mxu0
        %v2758 = vadd.f32 0.0, %v2757
        %v2759 = vpop.f32.mrb[0].mxu0
        %2760 = vmatprep.mubr.f32.mxu0 0.0
        %2761 = vmatmul.mubr.f32.gmra.mrb[0].mxu0 %v2559
        %v2762 = vpop.f32.mrb[0].mxu0
        %v2763 = vadd.f32 0.0, %v2762
        %v2764 = vpop.f32.mrb[0].mxu0
        %2765 = vmatprep.mubr.f32.mxu0 0.0
        %2766 = vmatmul.mubr.f32.gmra.mrb[0].mxu0 %v2560
        %v2767 = vpop.f32.mrb[0].mxu0
        %v2768 = vadd.f32 0.0, %v2767
        %v2769 = vpop.f32.mrb[0].mxu0
        %2770 = vmatprep.mubr.f32.mxu0 0.0
        %2771 = vmatmul.mubr.f32.gmra.mrb[0].mxu0 %v2561
        %v2772 = vpop.f32.mrb[0].mxu0
        %v2773 = vadd.f32 0.0, %v2772
        %v2774 = vpop.f32.mrb[0].mxu0
        %2775 = vmatprep.mubr.f32.mxu0 0.0
        %2776 = vmatmul.mubr.f32.gmra.mrb[0].mxu0 %v2562
        %v2777 = vpop.f32.mrb[0].mxu0
        %v2778 = vadd.f32 0.0, %v2777
        %v2779 = vpop.f32.mrb[0].mxu0
        %2780 = vmatprep.mubr.f32.mxu0 0.0
        %2781 = vmatmul.mubr.f32.gmra.mrb[0].mxu0 %v2563
        %v2782 = vpop.f32.mrb[0].mxu0
        %v2783 = vadd.f32 0.0, %v2782
        %v2784 = vpop.f32.mrb[0].mxu0
        %2785 = vmatprep.mubr.f32.mxu0 0.0
        %2786 = vmatmul.mubr.f32.gmra.mrb[0].mxu0 %v2564
        %v2787 = vpop.f32.mrb[0].mxu0
        %v2788 = vadd.f32 0.0, %v2787
        %v2789 = vpop.f32.mrb[0].mxu0
        %2790 = vmatprep.mubr.f32.mxu0 0.0
        %2791 = vmatmul.mubr.f32.gmra.mrb[0].mxu0 %v2565
        %v2792 = vpop.f32.mrb[0].mxu0
        %v2793 = vadd.f32 0.0, %v2792
        %v2794 = vpop.f32.mrb[0].mxu0
        %2795 = vmatprep.mubr.f32.mxu0 0.0
        %2796 = vmatmul.mubr.f32.gmra.mrb[0].mxu0 %v2566
        %v2797 = vpop.f32.mrb[0].mxu0
        %v2798 = vadd.f32 0.0, %v2797
        %v2799 = vpop.f32.mrb[0].mxu0
        %2800 = vmatprep.mubr.f32.mxu0 0.0
        %2801 = vmatmul.mubr.f32.gmra.mrb[0].mxu0 %v2567
        %v2802 = vpop.f32.mrb[0].mxu0
        %v2803 = vadd.f32 0.0, %v2802
        %v2804 = vpop.f32.mrb[0].mxu0
        %2805 = vmatprep.mubr.f32.mxu0 0.0
        %2806 = vmatmul.mubr.f32.gmra.mrb[0].mxu0 %v2568
        %v2807 = vpop.f32.mrb[0].mxu0
        %v2808 = vadd.f32 0.0, %v2807
        %v2809 = vpop.f32.mrb[0].mxu0
        %2810 = vdwg.mxu0
        %v2811 = vld [vmem:[#allocation3] sm:$0xff]
        %v2812 = vld [vmem:[#allocation3 + $0x8] sm:$0xff]
        %v2813 = vld [vmem:[#allocation3 + $0x10] sm:$0xff]
        %v2814 = vld [vmem:[#allocation3 + $0x18] sm:$0xff]
        %v2815 = vld [vmem:[#allocation3 + $0x20] sm:$0xff]
        %v2816 = vld [vmem:[#allocation3 + $0x28] sm:$0xff]
        %v2817 = vld [vmem:[#allocation3 + $0x30] sm:$0xff]
        %v2818 = vld [vmem:[#allocation3 + $0x38] sm:$0xff]
        %v2819 = vld [vmem:[#allocation3 + $0x40] sm:$0xff]
        %v2820 = vld [vmem:[#allocation3 + $0x48] sm:$0xff]
        %v2821 = vld [vmem:[#allocation3 + $0x50] sm:$0xff]
        %v2822 = vld [vmem:[#allocation3 + $0x58] sm:$0xff]
        %v2823 = vld [vmem:[#allocation3 + $0x60] sm:$0xff]
        %v2824 = vld [vmem:[#allocation3 + $0x68] sm:$0xff]
        %v2825 = vld [vmem:[#allocation3 + $0x70] sm:$0xff]
        %v2826 = vld [vmem:[#allocation3 + $0x78] sm:$0xff]
        %v2827 = vld [vmem:[#allocation3 + $0x80] sm:$0xff]
        %v2828 = vld [vmem:[#allocation3 + $0x88] sm:$0xff]
        %v2829 = vld [vmem:[#allocation3 + $0x90] sm:$0xff]
        %v2830 = vld [vmem:[#allocation3 + $0x98] sm:$0xff]
        %v2831 = vld [vmem:[#allocation3 + $0xa0] sm:$0xff]
        %v2832 = vld [vmem:[#allocation3 + $0xa8] sm:$0xff]
        %v2833 = vld [vmem:[#allocation3 + $0xb0] sm:$0xff]
        %v2834 = vld [vmem:[#allocation3 + $0xb8] sm:$0xff]
        %v2835 = vld [vmem:[#allocation3 + $0xc0] sm:$0xff]
        %v2836 = vld [vmem:[#allocation3 + $0xc8] sm:$0xff]
        %v2837 = vld [vmem:[#allocation3 + $0xd0] sm:$0xff]
        %v2838 = vld [vmem:[#allocation3 + $0xd8] sm:$0xff]
        %v2839 = vld [vmem:[#allocation3 + $0xe0] sm:$0xff]
        %v2840 = vld [vmem:[#allocation3 + $0xe8] sm:$0xff]
        %v2841 = vld [vmem:[#allocation3 + $0xf0] sm:$0xff]
        %v2842 = vld [vmem:[#allocation3 + $0xf8] sm:$0xff]
        %v2843 = vadd.f32 %v2811, %v2653
        %v2844 = vadd.f32 %v2812, %v2658
        %v2845 = vadd.f32 %v2813, %v2663
        %v2846 = vadd.f32 %v2814, %v2668
        %v2847 = vadd.f32 %v2815, %v2673
        %v2848 = vadd.f32 %v2816, %v2678
        %v2849 = vadd.f32 %v2817, %v2683
        %v2850 = vadd.f32 %v2818, %v2688
        %v2851 = vadd.f32 %v2819, %v2693
        %v2852 = vadd.f32 %v2820, %v2698
        %v2853 = vadd.f32 %v2821, %v2703
        %v2854 = vadd.f32 %v2822, %v2708
        %v2855 = vadd.f32 %v2823, %v2713
        %v2856 = vadd.f32 %v2824, %v2718
        %v2857 = vadd.f32 %v2825, %v2723
        %v2858 = vadd.f32 %v2826, %v2728
        %v2859 = vadd.f32 %v2827, %v2733
        %v2860 = vadd.f32 %v2828, %v2738
        %v2861 = vadd.f32 %v2829, %v2743
        %v2862 = vadd.f32 %v2830, %v2748
        %v2863 = vadd.f32 %v2831, %v2753
        %v2864 = vadd.f32 %v2832, %v2758
        %v2865 = vadd.f32 %v2833, %v2763
        %v2866 = vadd.f32 %v2834, %v2768
        %v2867 = vadd.f32 %v2835, %v2773
        %v2868 = vadd.f32 %v2836, %v2778
        %v2869 = vadd.f32 %v2837, %v2783
        %v2870 = vadd.f32 %v2838, %v2788
        %v2871 = vadd.f32 %v2839, %v2793
        %v2872 = vadd.f32 %v2840, %v2798
        %v2873 = vadd.f32 %v2841, %v2803
        %v2874 = vadd.f32 %v2842, %v2808
        %2875 = vst [vmem:[#allocation3] sm:$0xff] %v2843
        %2876 = vst [vmem:[#allocation3 + $0x8] sm:$0xff] %v2844
        %2877 = vst [vmem:[#allocation3 + $0x10] sm:$0xff] %v2845
        %2878 = vst [vmem:[#allocation3 + $0x18] sm:$0xff] %v2846
        %2879 = vst [vmem:[#allocation3 + $0x20] sm:$0xff] %v2847
        %2880 = vst [vmem:[#allocation3 + $0x28] sm:$0xff] %v2848
        %2881 = vst [vmem:[#allocation3 + $0x30] sm:$0xff] %v2849
        %2882 = vst [vmem:[#allocation3 + $0x38] sm:$0xff] %v2850
        %2883 = vst [vmem:[#allocation3 + $0x40] sm:$0xff] %v2851
        %2884 = vst [vmem:[#allocation3 + $0x48] sm:$0xff] %v2852
        %2885 = vst [vmem:[#allocation3 + $0x50] sm:$0xff] %v2853
        %2886 = vst [vmem:[#allocation3 + $0x58] sm:$0xff] %v2854
        %2887 = vst [vmem:[#allocation3 + $0x60] sm:$0xff] %v2855
        %2888 = vst [vmem:[#allocation3 + $0x68] sm:$0xff] %v2856
        %2889 = vst [vmem:[#allocation3 + $0x70] sm:$0xff] %v2857
        %2890 = vst [vmem:[#allocation3 + $0x78] sm:$0xff] %v2858
        %2891 = vst [vmem:[#allocation3 + $0x80] sm:$0xff] %v2859
        %2892 = vst [vmem:[#allocation3 + $0x88] sm:$0xff] %v2860
        %2893 = vst [vmem:[#allocation3 + $0x90] sm:$0xff] %v2861
        %2894 = vst [vmem:[#allocation3 + $0x98] sm:$0xff] %v2862
        %2895 = vst [vmem:[#allocation3 + $0xa0] sm:$0xff] %v2863
        %2896 = vst [vmem:[#allocation3 + $0xa8] sm:$0xff] %v2864
        %2897 = vst [vmem:[#allocation3 + $0xb0] sm:$0xff] %v2865
        %2898 = vst [vmem:[#allocation3 + $0xb8] sm:$0xff] %v2866
        %2899 = vst [vmem:[#allocation3 + $0xc0] sm:$0xff] %v2867
        %2900 = vst [vmem:[#allocation3 + $0xc8] sm:$0xff] %v2868
        %2901 = vst [vmem:[#allocation3 + $0xd0] sm:$0xff] %v2869
        %2902 = vst [vmem:[#allocation3 + $0xd8] sm:$0xff] %v2870
        %2903 = vst [vmem:[#allocation3 + $0xe0] sm:$0xff] %v2871
        %2904 = vst [vmem:[#allocation3 + $0xe8] sm:$0xff] %v2872
        %2905 = vst [vmem:[#allocation3 + $0xf0] sm:$0xff] %v2873
        %2906 = vst [vmem:[#allocation3 + $0xf8] sm:$0xff] %v2874
        %s2907 = scalar_lea.vmem [#allocation2], 48
        %v2908 = vld [vmem:[%s2907] sm:$0xff]
        %v2909 = vld [vmem:[%s2907 + $0x8] sm:$0xff]
        %v2910 = vld [vmem:[%s2907 + $0x18] sm:$0xff]
        %v2911 = vld [vmem:[%s2907 + $0x20] sm:$0xff]
        %v2912 = vld [vmem:[%s2907 + $0x30] sm:$0xff]
        %v2913 = vld [vmem:[%s2907 + $0x38] sm:$0xff]
        %v2914 = vld [vmem:[%s2907 + $0x48] sm:$0xff]
        %v2915 = vld [vmem:[%s2907 + $0x50] sm:$0xff]
        %v2916 = vld [vmem:[%s2907 + $0x60] sm:$0xff]
        %v2917 = vld [vmem:[%s2907 + $0x68] sm:$0xff]
        %v2918 = vld [vmem:[%s2907 + $0x78] sm:$0xff]
        %v2919 = vld [vmem:[%s2907 + $0x80] sm:$0xff]
        %v2920 = vld [vmem:[%s2907 + $0x90] sm:$0xff]
        %v2921 = vld [vmem:[%s2907 + $0x98] sm:$0xff]
        %v2922 = vld [vmem:[%s2907 + $0xa8] sm:$0xff]
        %v2923 = vld [vmem:[%s2907 + $0xb0] sm:$0xff]
        %v2924 = vld [vmem:[%s2907 + $0xc0] sm:$0xff]
        %v2925 = vld [vmem:[%s2907 + $0xc8] sm:$0xff]
        %v2926 = vld [vmem:[%s2907 + $0xd8] sm:$0xff]
        %v2927 = vld [vmem:[%s2907 + $0xe0] sm:$0xff]
        %v2928 = vld [vmem:[%s2907 + $0xf0] sm:$0xff]
        %v2929 = vld [vmem:[%s2907 + $0xf8] sm:$0xff]
        %v2930 = vld [vmem:[%s2907 + $0x108] sm:$0xff]
        %v2931 = vld [vmem:[%s2907 + $0x110] sm:$0xff]
        %v2932 = vld [vmem:[%s2907 + $0x120] sm:$0xff]
        %v2933 = vld [vmem:[%s2907 + $0x128] sm:$0xff]
        %v2934 = vld [vmem:[%s2907 + $0x138] sm:$0xff]
        %v2935 = vld [vmem:[%s2907 + $0x140] sm:$0xff]
        %v2936 = vld [vmem:[%s2907 + $0x150] sm:$0xff]
        %v2937 = vld [vmem:[%s2907 + $0x158] sm:$0xff]
        %v2938 = vld [vmem:[%s2907 + $0x168] sm:$0xff]
        %v2939 = vld [vmem:[%s2907 + $0x170] sm:$0xff]
        %s2940 = scalar_lea.vmem [#allocation9], 768
        %v2941 = vld [vmem:[%s2940] sm:$0xff]
        %v2942 = vld [vmem:[%s2940 + $0x8] sm:$0xff]
        %v2943 = vld [vmem:[%s2940 + $0x10] sm:$0xff]
        %v2944 = vld [vmem:[%s2940 + $0x18] sm:$0xff]
        %v2945 = vld [vmem:[%s2940 + $0x20] sm:$0xff]
        %v2946 = vld [vmem:[%s2940 + $0x28] sm:$0xff]
        %v2947 = vld [vmem:[%s2940 + $0x30] sm:$0xff]
        %v2948 = vld [vmem:[%s2940 + $0x38] sm:$0xff]
        %v2949 = vld [vmem:[%s2940 + $0x40] sm:$0xff]
        %v2950 = vld [vmem:[%s2940 + $0x48] sm:$0xff]
        %v2951 = vld [vmem:[%s2940 + $0x50] sm:$0xff]
        %v2952 = vld [vmem:[%s2940 + $0x58] sm:$0xff]
        %v2953 = vld [vmem:[%s2940 + $0x60] sm:$0xff]
        %v2954 = vld [vmem:[%s2940 + $0x68] sm:$0xff]
        %v2955 = vld [vmem:[%s2940 + $0x70] sm:$0xff]
        %v2956 = vld [vmem:[%s2940 + $0x78] sm:$0xff]
        %2957 = vmatprep.subr.mxu0 0.0
        %2958 = vmatpush1.msra.mxu0 %v2941
        %2959 = vmatprep.subr.mxu0 0.0
        %2960 = vmatpush1.msra.mxu0 %v2942
        %2961 = vmatprep.subr.mxu0 0.0
        %2962 = vmatpush1.msra.mxu0 %v2943
        %2963 = vmatprep.subr.mxu0 0.0
        %2964 = vmatpush1.msra.mxu0 %v2944
        %2965 = vmatprep.subr.mxu0 0.0
        %2966 = vmatpush1.msra.mxu0 %v2945
        %2967 = vmatprep.subr.mxu0 0.0
        %2968 = vmatpush1.msra.mxu0 %v2946
        %2969 = vmatprep.subr.mxu0 0.0
        %2970 = vmatpush1.msra.mxu0 %v2947
        %2971 = vmatprep.subr.mxu0 0.0
        %2972 = vmatpush1.msra.mxu0 %v2948
        %2973 = vmatprep.subr.mxu0 0.0
        %2974 = vmatpush1.msra.mxu0 %v2949
        %2975 = vmatprep.subr.mxu0 0.0
        %2976 = vmatpush1.msra.mxu0 %v2950
        %2977 = vmatprep.subr.mxu0 0.0
        %2978 = vmatpush1.msra.mxu0 %v2951
        %2979 = vmatprep.subr.mxu0 0.0
        %2980 = vmatpush1.msra.mxu0 %v2952
        %2981 = vmatprep.subr.mxu0 0.0
        %2982 = vmatpush1.msra.mxu0 %v2953
        %2983 = vmatprep.subr.mxu0 0.0
        %2984 = vmatpush1.msra.mxu0 %v2954
        %2985 = vmatprep.subr.mxu0 0.0
        %2986 = vmatpush1.msra.mxu0 %v2955
        %2987 = vmatprep.subr.mxu0 0.0
        %2988 = vmatpush1.msra.mxu0 %v2956
        %2989 = vmatprep.subr.mxu0 0.0
        %2990 = vmatpush1.msra.mxu0 0.0
        %2991 = vmatprep.subr.mxu0 0.0
        %2992 = vmatpush1.msra.mxu0 0.0
        %2993 = vmatprep.subr.mxu0 0.0
        %2994 = vmatpush1.msra.mxu0 0.0
        %2995 = vmatprep.subr.mxu0 0.0
        %2996 = vmatpush1.msra.mxu0 0.0
        %2997 = vmatprep.subr.mxu0 0.0
        %2998 = vmatpush1.msra.mxu0 0.0
        %2999 = vmatprep.subr.mxu0 0.0
        %3000 = vmatpush1.msra.mxu0 0.0
        %3001 = vmatprep.subr.mxu0 0.0
        %3002 = vmatpush1.msra.mxu0 0.0
        %3003 = vmatprep.subr.mxu0 0.0
        %3004 = vmatpush1.msra.mxu0 0.0
        %3005 = vmatprep.subr.mxu0 0.0
        %3006 = vmatpush1.msra.mxu0 0.0
        %3007 = vmatprep.subr.mxu0 0.0
        %3008 = vmatpush1.msra.mxu0 0.0
        %3009 = vmatprep.subr.mxu0 0.0
        %3010 = vmatpush1.msra.mxu0 0.0
        %3011 = vmatprep.subr.mxu0 0.0
        %3012 = vmatpush1.msra.mxu0 0.0
        %3013 = vmatprep.subr.mxu0 0.0
        %3014 = vmatpush1.msra.mxu0 0.0
        %3015 = vmatprep.subr.mxu0 0.0
        %3016 = vmatpush1.msra.mxu0 0.0
        %3017 = vmatprep.subr.mxu0 0.0
        %3018 = vmatpush1.msra.mxu0 0.0
        %3019 = vmatprep.subr.mxu0 0.0
        %3020 = vmatpush1.msra.mxu0 0.0
        %3021 = vmatprep.mubr.f32.mxu0 0.0
        %3022 = vmatmul.mubr.f32.gmra.mrb[0].mxu0 %v2908
        %v3023 = vpop.f32.mrb[0].mxu0
        %v3024 = vadd.f32 0.0, %v3023
        %v3025 = vpop.f32.mrb[0].mxu0
        %3026 = vmatprep.mubr.f32.mxu0 0.0
        %3027 = vmatmul.mubr.f32.gmra.mrb[0].mxu0 %v2909
        %v3028 = vpop.f32.mrb[0].mxu0
        %v3029 = vadd.f32 0.0, %v3028
        %v3030 = vpop.f32.mrb[0].mxu0
        %3031 = vmatprep.mubr.f32.mxu0 0.0
        %3032 = vmatmul.mubr.f32.gmra.mrb[0].mxu0 %v2910
        %v3033 = vpop.f32.mrb[0].mxu0
        %v3034 = vadd.f32 0.0, %v3033
        %v3035 = vpop.f32.mrb[0].mxu0
        %3036 = vmatprep.mubr.f32.mxu0 0.0
        %3037 = vmatmul.mubr.f32.gmra.mrb[0].mxu0 %v2911
        %v3038 = vpop.f32.mrb[0].mxu0
        %v3039 = vadd.f32 0.0, %v3038
        %v3040 = vpop.f32.mrb[0].mxu0
        %3041 = vmatprep.mubr.f32.mxu0 0.0
        %3042 = vmatmul.mubr.f32.gmra.mrb[0].mxu0 %v2912
        %v3043 = vpop.f32.mrb[0].mxu0
        %v3044 = vadd.f32 0.0, %v3043
        %v3045 = vpop.f32.mrb[0].mxu0
        %3046 = vmatprep.mubr.f32.mxu0 0.0
        %3047 = vmatmul.mubr.f32.gmra.mrb[0].mxu0 %v2913
        %v3048 = vpop.f32.mrb[0].mxu0
        %v3049 = vadd.f32 0.0, %v3048
        %v3050 = vpop.f32.mrb[0].mxu0
        %3051 = vmatprep.mubr.f32.mxu0 0.0
        %3052 = vmatmul.mubr.f32.gmra.mrb[0].mxu0 %v2914
        %v3053 = vpop.f32.mrb[0].mxu0
        %v3054 = vadd.f32 0.0, %v3053
        %v3055 = vpop.f32.mrb[0].mxu0
        %3056 = vmatprep.mubr.f32.mxu0 0.0
        %3057 = vmatmul.mubr.f32.gmra.mrb[0].mxu0 %v2915
        %v3058 = vpop.f32.mrb[0].mxu0
        %v3059 = vadd.f32 0.0, %v3058
        %v3060 = vpop.f32.mrb[0].mxu0
        %3061 = vmatprep.mubr.f32.mxu0 0.0
        %3062 = vmatmul.mubr.f32.gmra.mrb[0].mxu0 %v2916
        %v3063 = vpop.f32.mrb[0].mxu0
        %v3064 = vadd.f32 0.0, %v3063
        %v3065 = vpop.f32.mrb[0].mxu0
        %3066 = vmatprep.mubr.f32.mxu0 0.0
        %3067 = vmatmul.mubr.f32.gmra.mrb[0].mxu0 %v2917
        %v3068 = vpop.f32.mrb[0].mxu0
        %v3069 = vadd.f32 0.0, %v3068
        %v3070 = vpop.f32.mrb[0].mxu0
        %3071 = vmatprep.mubr.f32.mxu0 0.0
        %3072 = vmatmul.mubr.f32.gmra.mrb[0].mxu0 %v2918
        %v3073 = vpop.f32.mrb[0].mxu0
        %v3074 = vadd.f32 0.0, %v3073
        %v3075 = vpop.f32.mrb[0].mxu0
        %3076 = vmatprep.mubr.f32.mxu0 0.0
        %3077 = vmatmul.mubr.f32.gmra.mrb[0].mxu0 %v2919
        %v3078 = vpop.f32.mrb[0].mxu0
        %v3079 = vadd.f32 0.0, %v3078
        %v3080 = vpop.f32.mrb[0].mxu0
        %3081 = vmatprep.mubr.f32.mxu0 0.0
        %3082 = vmatmul.mubr.f32.gmra.mrb[0].mxu0 %v2920
        %v3083 = vpop.f32.mrb[0].mxu0
        %v3084 = vadd.f32 0.0, %v3083
        %v3085 = vpop.f32.mrb[0].mxu0
        %3086 = vmatprep.mubr.f32.mxu0 0.0
        %3087 = vmatmul.mubr.f32.gmra.mrb[0].mxu0 %v2921
        %v3088 = vpop.f32.mrb[0].mxu0
        %v3089 = vadd.f32 0.0, %v3088
        %v3090 = vpop.f32.mrb[0].mxu0
        %3091 = vmatprep.mubr.f32.mxu0 0.0
        %3092 = vmatmul.mubr.f32.gmra.mrb[0].mxu0 %v2922
        %v3093 = vpop.f32.mrb[0].mxu0
        %v3094 = vadd.f32 0.0, %v3093
        %v3095 = vpop.f32.mrb[0].mxu0
        %3096 = vmatprep.mubr.f32.mxu0 0.0
        %3097 = vmatmul.mubr.f32.gmra.mrb[0].mxu0 %v2923
        %v3098 = vpop.f32.mrb[0].mxu0
        %v3099 = vadd.f32 0.0, %v3098
        %v3100 = vpop.f32.mrb[0].mxu0
        %3101 = vmatprep.mubr.f32.mxu0 0.0
        %3102 = vmatmul.mubr.f32.gmra.mrb[0].mxu0 %v2924
        %v3103 = vpop.f32.mrb[0].mxu0
        %v3104 = vadd.f32 0.0, %v3103
        %v3105 = vpop.f32.mrb[0].mxu0
        %3106 = vmatprep.mubr.f32.mxu0 0.0
        %3107 = vmatmul.mubr.f32.gmra.mrb[0].mxu0 %v2925
        %v3108 = vpop.f32.mrb[0].mxu0
        %v3109 = vadd.f32 0.0, %v3108
        %v3110 = vpop.f32.mrb[0].mxu0
        %3111 = vmatprep.mubr.f32.mxu0 0.0
        %3112 = vmatmul.mubr.f32.gmra.mrb[0].mxu0 %v2926
        %v3113 = vpop.f32.mrb[0].mxu0
        %v3114 = vadd.f32 0.0, %v3113
        %v3115 = vpop.f32.mrb[0].mxu0
        %3116 = vmatprep.mubr.f32.mxu0 0.0
        %3117 = vmatmul.mubr.f32.gmra.mrb[0].mxu0 %v2927
        %v3118 = vpop.f32.mrb[0].mxu0
        %v3119 = vadd.f32 0.0, %v3118
        %v3120 = vpop.f32.mrb[0].mxu0
        %3121 = vmatprep.mubr.f32.mxu0 0.0
        %3122 = vmatmul.mubr.f32.gmra.mrb[0].mxu0 %v2928
        %v3123 = vpop.f32.mrb[0].mxu0
        %v3124 = vadd.f32 0.0, %v3123
        %v3125 = vpop.f32.mrb[0].mxu0
        %3126 = vmatprep.mubr.f32.mxu0 0.0
        %3127 = vmatmul.mubr.f32.gmra.mrb[0].mxu0 %v2929
        %v3128 = vpop.f32.mrb[0].mxu0
        %v3129 = vadd.f32 0.0, %v3128
        %v3130 = vpop.f32.mrb[0].mxu0
        %3131 = vmatprep.mubr.f32.mxu0 0.0
        %3132 = vmatmul.mubr.f32.gmra.mrb[0].mxu0 %v2930
        %v3133 = vpop.f32.mrb[0].mxu0
        %v3134 = vadd.f32 0.0, %v3133
        %v3135 = vpop.f32.mrb[0].mxu0
        %3136 = vmatprep.mubr.f32.mxu0 0.0
        %3137 = vmatmul.mubr.f32.gmra.mrb[0].mxu0 %v2931
        %v3138 = vpop.f32.mrb[0].mxu0
        %v3139 = vadd.f32 0.0, %v3138
        %v3140 = vpop.f32.mrb[0].mxu0
        %3141 = vmatprep.mubr.f32.mxu0 0.0
        %3142 = vmatmul.mubr.f32.gmra.mrb[0].mxu0 %v2932
        %v3143 = vpop.f32.mrb[0].mxu0
        %v3144 = vadd.f32 0.0, %v3143
        %v3145 = vpop.f32.mrb[0].mxu0
        %3146 = vmatprep.mubr.f32.mxu0 0.0
        %3147 = vmatmul.mubr.f32.gmra.mrb[0].mxu0 %v2933
        %v3148 = vpop.f32.mrb[0].mxu0
        %v3149 = vadd.f32 0.0, %v3148
        %v3150 = vpop.f32.mrb[0].mxu0
        %3151 = vmatprep.mubr.f32.mxu0 0.0
        %3152 = vmatmul.mubr.f32.gmra.mrb[0].mxu0 %v2934
        %v3153 = vpop.f32.mrb[0].mxu0
        %v3154 = vadd.f32 0.0, %v3153
        %v3155 = vpop.f32.mrb[0].mxu0
        %3156 = vmatprep.mubr.f32.mxu0 0.0
        %3157 = vmatmul.mubr.f32.gmra.mrb[0].mxu0 %v2935
        %v3158 = vpop.f32.mrb[0].mxu0
        %v3159 = vadd.f32 0.0, %v3158
        %v3160 = vpop.f32.mrb[0].mxu0
        %3161 = vmatprep.mubr.f32.mxu0 0.0
        %3162 = vmatmul.mubr.f32.gmra.mrb[0].mxu0 %v2936
        %v3163 = vpop.f32.mrb[0].mxu0
        %v3164 = vadd.f32 0.0, %v3163
        %v3165 = vpop.f32.mrb[0].mxu0
        %3166 = vmatprep.mubr.f32.mxu0 0.0
        %3167 = vmatmul.mubr.f32.gmra.mrb[0].mxu0 %v2937
        %v3168 = vpop.f32.mrb[0].mxu0
        %v3169 = vadd.f32 0.0, %v3168
        %v3170 = vpop.f32.mrb[0].mxu0
        %3171 = vmatprep.mubr.f32.mxu0 0.0
        %3172 = vmatmul.mubr.f32.gmra.mrb[0].mxu0 %v2938
        %v3173 = vpop.f32.mrb[0].mxu0
        %v3174 = vadd.f32 0.0, %v3173
        %v3175 = vpop.f32.mrb[0].mxu0
        %3176 = vmatprep.mubr.f32.mxu0 0.0
        %3177 = vmatmul.mubr.f32.gmra.mrb[0].mxu0 %v2939
        %v3178 = vpop.f32.mrb[0].mxu0
        %v3179 = vadd.f32 0.0, %v3178
        %v3180 = vpop.f32.mrb[0].mxu0
        %3181 = vdwg.mxu0
        %v3182 = vld [vmem:[#allocation3] sm:$0xff]
        %v3183 = vld [vmem:[#allocation3 + $0x8] sm:$0xff]
        %v3184 = vld [vmem:[#allocation3 + $0x10] sm:$0xff]
        %v3185 = vld [vmem:[#allocation3 + $0x18] sm:$0xff]
        %v3186 = vld [vmem:[#allocation3 + $0x20] sm:$0xff]
        %v3187 = vld [vmem:[#allocation3 + $0x28] sm:$0xff]
        %v3188 = vld [vmem:[#allocation3 + $0x30] sm:$0xff]
        %v3189 = vld [vmem:[#allocation3 + $0x38] sm:$0xff]
        %v3190 = vld [vmem:[#allocation3 + $0x40] sm:$0xff]
        %v3191 = vld [vmem:[#allocation3 + $0x48] sm:$0xff]
        %v3192 = vld [vmem:[#allocation3 + $0x50] sm:$0xff]
        %v3193 = vld [vmem:[#allocation3 + $0x58] sm:$0xff]
        %v3194 = vld [vmem:[#allocation3 + $0x60] sm:$0xff]
        %v3195 = vld [vmem:[#allocation3 + $0x68] sm:$0xff]
        %v3196 = vld [vmem:[#allocation3 + $0x70] sm:$0xff]
        %v3197 = vld [vmem:[#allocation3 + $0x78] sm:$0xff]
        %v3198 = vld [vmem:[#allocation3 + $0x80] sm:$0xff]
        %v3199 = vld [vmem:[#allocation3 + $0x88] sm:$0xff]
        %v3200 = vld [vmem:[#allocation3 + $0x90] sm:$0xff]
        %v3201 = vld [vmem:[#allocation3 + $0x98] sm:$0xff]
        %v3202 = vld [vmem:[#allocation3 + $0xa0] sm:$0xff]
        %v3203 = vld [vmem:[#allocation3 + $0xa8] sm:$0xff]
        %v3204 = vld [vmem:[#allocation3 + $0xb0] sm:$0xff]
        %v3205 = vld [vmem:[#allocation3 + $0xb8] sm:$0xff]
        %v3206 = vld [vmem:[#allocation3 + $0xc0] sm:$0xff]
        %v3207 = vld [vmem:[#allocation3 + $0xc8] sm:$0xff]
        %v3208 = vld [vmem:[#allocation3 + $0xd0] sm:$0xff]
        %v3209 = vld [vmem:[#allocation3 + $0xd8] sm:$0xff]
        %v3210 = vld [vmem:[#allocation3 + $0xe0] sm:$0xff]
        %v3211 = vld [vmem:[#allocation3 + $0xe8] sm:$0xff]
        %v3212 = vld [vmem:[#allocation3 + $0xf0] sm:$0xff]
        %v3213 = vld [vmem:[#allocation3 + $0xf8] sm:$0xff]
        %v3214 = vadd.f32 %v3182, %v3024
        %v3215 = vadd.f32 %v3183, %v3029
        %v3216 = vadd.f32 %v3184, %v3034
        %v3217 = vadd.f32 %v3185, %v3039
        %v3218 = vadd.f32 %v3186, %v3044
        %v3219 = vadd.f32 %v3187, %v3049
        %v3220 = vadd.f32 %v3188, %v3054
        %v3221 = vadd.f32 %v3189, %v3059
        %v3222 = vadd.f32 %v3190, %v3064
        %v3223 = vadd.f32 %v3191, %v3069
        %v3224 = vadd.f32 %v3192, %v3074
        %v3225 = vadd.f32 %v3193, %v3079
        %v3226 = vadd.f32 %v3194, %v3084
        %v3227 = vadd.f32 %v3195, %v3089
        %v3228 = vadd.f32 %v3196, %v3094
        %v3229 = vadd.f32 %v3197, %v3099
        %v3230 = vadd.f32 %v3198, %v3104
        %v3231 = vadd.f32 %v3199, %v3109
        %v3232 = vadd.f32 %v3200, %v3114
        %v3233 = vadd.f32 %v3201, %v3119
        %v3234 = vadd.f32 %v3202, %v3124
        %v3235 = vadd.f32 %v3203, %v3129
        %v3236 = vadd.f32 %v3204, %v3134
        %v3237 = vadd.f32 %v3205, %v3139
        %v3238 = vadd.f32 %v3206, %v3144
        %v3239 = vadd.f32 %v3207, %v3149
        %v3240 = vadd.f32 %v3208, %v3154
        %v3241 = vadd.f32 %v3209, %v3159
        %v3242 = vadd.f32 %v3210, %v3164
        %v3243 = vadd.f32 %v3211, %v3169
        %v3244 = vadd.f32 %v3212, %v3174
        %v3245 = vadd.f32 %v3213, %v3179
        %3246 = vst [vmem:[#allocation3] sm:$0xff] %v3214
        %3247 = vst [vmem:[#allocation3 + $0x8] sm:$0xff] %v3215
        %3248 = vst [vmem:[#allocation3 + $0x10] sm:$0xff] %v3216
        %3249 = vst [vmem:[#allocation3 + $0x18] sm:$0xff] %v3217
        %3250 = vst [vmem:[#allocation3 + $0x20] sm:$0xff] %v3218
        %3251 = vst [vmem:[#allocation3 + $0x28] sm:$0xff] %v3219
        %3252 = vst [vmem:[#allocation3 + $0x30] sm:$0xff] %v3220
        %3253 = vst [vmem:[#allocation3 + $0x38] sm:$0xff] %v3221
        %3254 = vst [vmem:[#allocation3 + $0x40] sm:$0xff] %v3222
        %3255 = vst [vmem:[#allocation3 + $0x48] sm:$0xff] %v3223
        %3256 = vst [vmem:[#allocation3 + $0x50] sm:$0xff] %v3224
        %3257 = vst [vmem:[#allocation3 + $0x58] sm:$0xff] %v3225
        %3258 = vst [vmem:[#allocation3 + $0x60] sm:$0xff] %v3226
        %3259 = vst [vmem:[#allocation3 + $0x68] sm:$0xff] %v3227
        %3260 = vst [vmem:[#allocation3 + $0x70] sm:$0xff] %v3228
        %3261 = vst [vmem:[#allocation3 + $0x78] sm:$0xff] %v3229
        %3262 = vst [vmem:[#allocation3 + $0x80] sm:$0xff] %v3230
        %3263 = vst [vmem:[#allocation3 + $0x88] sm:$0xff] %v3231
        %3264 = vst [vmem:[#allocation3 + $0x90] sm:$0xff] %v3232
        %3265 = vst [vmem:[#allocation3 + $0x98] sm:$0xff] %v3233
        %3266 = vst [vmem:[#allocation3 + $0xa0] sm:$0xff] %v3234
        %3267 = vst [vmem:[#allocation3 + $0xa8] sm:$0xff] %v3235
        %3268 = vst [vmem:[#allocation3 + $0xb0] sm:$0xff] %v3236
        %3269 = vst [vmem:[#allocation3 + $0xb8] sm:$0xff] %v3237
        %3270 = vst [vmem:[#allocation3 + $0xc0] sm:$0xff] %v3238
        %3271 = vst [vmem:[#allocation3 + $0xc8] sm:$0xff] %v3239
        %3272 = vst [vmem:[#allocation3 + $0xd0] sm:$0xff] %v3240
        %3273 = vst [vmem:[#allocation3 + $0xd8] sm:$0xff] %v3241
        %3274 = vst [vmem:[#allocation3 + $0xe0] sm:$0xff] %v3242
        %3275 = vst [vmem:[#allocation3 + $0xe8] sm:$0xff] %v3243
        %3276 = vst [vmem:[#allocation3 + $0xf0] sm:$0xff] %v3244
        %3277 = vst [vmem:[#allocation3 + $0xf8] sm:$0xff] %v3245
        %v3278 = vld [vmem:[%s2907 + $0x1] sm:$0xff]
        %v3279 = vld [vmem:[%s2907 + $0x9] sm:$0xff]
        %v3280 = vld [vmem:[%s2907 + $0x19] sm:$0xff]
        %v3281 = vld [vmem:[%s2907 + $0x21] sm:$0xff]
        %v3282 = vld [vmem:[%s2907 + $0x31] sm:$0xff]
        %v3283 = vld [vmem:[%s2907 + $0x39] sm:$0xff]
        %v3284 = vld [vmem:[%s2907 + $0x49] sm:$0xff]
        %v3285 = vld [vmem:[%s2907 + $0x51] sm:$0xff]
        %v3286 = vld [vmem:[%s2907 + $0x61] sm:$0xff]
        %v3287 = vld [vmem:[%s2907 + $0x69] sm:$0xff]
        %v3288 = vld [vmem:[%s2907 + $0x79] sm:$0xff]
        %v3289 = vld [vmem:[%s2907 + $0x81] sm:$0xff]
        %v3290 = vld [vmem:[%s2907 + $0x91] sm:$0xff]
        %v3291 = vld [vmem:[%s2907 + $0x99] sm:$0xff]
        %v3292 = vld [vmem:[%s2907 + $0xa9] sm:$0xff]
        %v3293 = vld [vmem:[%s2907 + $0xb1] sm:$0xff]
        %v3294 = vld [vmem:[%s2907 + $0xc1] sm:$0xff]
        %v3295 = vld [vmem:[%s2907 + $0xc9] sm:$0xff]
        %v3296 = vld [vmem:[%s2907 + $0xd9] sm:$0xff]
        %v3297 = vld [vmem:[%s2907 + $0xe1] sm:$0xff]
        %v3298 = vld [vmem:[%s2907 + $0xf1] sm:$0xff]
        %v3299 = vld [vmem:[%s2907 + $0xf9] sm:$0xff]
        %v3300 = vld [vmem:[%s2907 + $0x109] sm:$0xff]
        %v3301 = vld [vmem:[%s2907 + $0x111] sm:$0xff]
        %v3302 = vld [vmem:[%s2907 + $0x121] sm:$0xff]
        %v3303 = vld [vmem:[%s2907 + $0x129] sm:$0xff]
        %v3304 = vld [vmem:[%s2907 + $0x139] sm:$0xff]
        %v3305 = vld [vmem:[%s2907 + $0x141] sm:$0xff]
        %v3306 = vld [vmem:[%s2907 + $0x151] sm:$0xff]
        %v3307 = vld [vmem:[%s2907 + $0x159] sm:$0xff]
        %v3308 = vld [vmem:[%s2907 + $0x169] sm:$0xff]
        %v3309 = vld [vmem:[%s2907 + $0x171] sm:$0xff]
        %s3310 = scalar_lea.vmem [#allocation9], 896
        %v3311 = vld [vmem:[%s3310] sm:$0xff]
        %v3312 = vld [vmem:[%s3310 + $0x8] sm:$0xff]
        %v3313 = vld [vmem:[%s3310 + $0x10] sm:$0xff]
        %v3314 = vld [vmem:[%s3310 + $0x18] sm:$0xff]
        %v3315 = vld [vmem:[%s3310 + $0x20] sm:$0xff]
        %v3316 = vld [vmem:[%s3310 + $0x28] sm:$0xff]
        %v3317 = vld [vmem:[%s3310 + $0x30] sm:$0xff]
        %v3318 = vld [vmem:[%s3310 + $0x38] sm:$0xff]
        %v3319 = vld [vmem:[%s3310 + $0x40] sm:$0xff]
        %v3320 = vld [vmem:[%s3310 + $0x48] sm:$0xff]
        %v3321 = vld [vmem:[%s3310 + $0x50] sm:$0xff]
        %v3322 = vld [vmem:[%s3310 + $0x58] sm:$0xff]
        %v3323 = vld [vmem:[%s3310 + $0x60] sm:$0xff]
        %v3324 = vld [vmem:[%s3310 + $0x68] sm:$0xff]
        %v3325 = vld [vmem:[%s3310 + $0x70] sm:$0xff]
        %v3326 = vld [vmem:[%s3310 + $0x78] sm:$0xff]
        %3327 = vmatprep.subr.mxu0 0.0
        %3328 = vmatpush1.msra.mxu0 %v3311
        %3329 = vmatprep.subr.mxu0 0.0
        %3330 = vmatpush1.msra.mxu0 %v3312
        %3331 = vmatprep.subr.mxu0 0.0
        %3332 = vmatpush1.msra.mxu0 %v3313
        %3333 = vmatprep.subr.mxu0 0.0
        %3334 = vmatpush1.msra.mxu0 %v3314
        %3335 = vmatprep.subr.mxu0 0.0
        %3336 = vmatpush1.msra.mxu0 %v3315
        %3337 = vmatprep.subr.mxu0 0.0
        %3338 = vmatpush1.msra.mxu0 %v3316
        %3339 = vmatprep.subr.mxu0 0.0
        %3340 = vmatpush1.msra.mxu0 %v3317
        %3341 = vmatprep.subr.mxu0 0.0
        %3342 = vmatpush1.msra.mxu0 %v3318
        %3343 = vmatprep.subr.mxu0 0.0
        %3344 = vmatpush1.msra.mxu0 %v3319
        %3345 = vmatprep.subr.mxu0 0.0
        %3346 = vmatpush1.msra.mxu0 %v3320
        %3347 = vmatprep.subr.mxu0 0.0
        %3348 = vmatpush1.msra.mxu0 %v3321
        %3349 = vmatprep.subr.mxu0 0.0
        %3350 = vmatpush1.msra.mxu0 %v3322
        %3351 = vmatprep.subr.mxu0 0.0
        %3352 = vmatpush1.msra.mxu0 %v3323
        %3353 = vmatprep.subr.mxu0 0.0
        %3354 = vmatpush1.msra.mxu0 %v3324
        %3355 = vmatprep.subr.mxu0 0.0
        %3356 = vmatpush1.msra.mxu0 %v3325
        %3357 = vmatprep.subr.mxu0 0.0
        %3358 = vmatpush1.msra.mxu0 %v3326
        %3359 = vmatprep.subr.mxu0 0.0
        %3360 = vmatpush1.msra.mxu0 0.0
        %3361 = vmatprep.subr.mxu0 0.0
        %3362 = vmatpush1.msra.mxu0 0.0
        %3363 = vmatprep.subr.mxu0 0.0
        %3364 = vmatpush1.msra.mxu0 0.0
        %3365 = vmatprep.subr.mxu0 0.0
        %3366 = vmatpush1.msra.mxu0 0.0
        %3367 = vmatprep.subr.mxu0 0.0
        %3368 = vmatpush1.msra.mxu0 0.0
        %3369 = vmatprep.subr.mxu0 0.0
        %3370 = vmatpush1.msra.mxu0 0.0
        %3371 = vmatprep.subr.mxu0 0.0
        %3372 = vmatpush1.msra.mxu0 0.0
        %3373 = vmatprep.subr.mxu0 0.0
        %3374 = vmatpush1.msra.mxu0 0.0
        %3375 = vmatprep.subr.mxu0 0.0
        %3376 = vmatpush1.msra.mxu0 0.0
        %3377 = vmatprep.subr.mxu0 0.0
        %3378 = vmatpush1.msra.mxu0 0.0
        %3379 = vmatprep.subr.mxu0 0.0
        %3380 = vmatpush1.msra.mxu0 0.0
        %3381 = vmatprep.subr.mxu0 0.0
        %3382 = vmatpush1.msra.mxu0 0.0
        %3383 = vmatprep.subr.mxu0 0.0
        %3384 = vmatpush1.msra.mxu0 0.0
        %3385 = vmatprep.subr.mxu0 0.0
        %3386 = vmatpush1.msra.mxu0 0.0
        %3387 = vmatprep.subr.mxu0 0.0
        %3388 = vmatpush1.msra.mxu0 0.0
        %3389 = vmatprep.subr.mxu0 0.0
        %3390 = vmatpush1.msra.mxu0 0.0
        %3391 = vmatprep.mubr.f32.mxu0 0.0
        %3392 = vmatmul.mubr.f32.gmra.mrb[0].mxu0 %v3278
        %v3393 = vpop.f32.mrb[0].mxu0
        %v3394 = vadd.f32 0.0, %v3393
        %v3395 = vpop.f32.mrb[0].mxu0
        %3396 = vmatprep.mubr.f32.mxu0 0.0
        %3397 = vmatmul.mubr.f32.gmra.mrb[0].mxu0 %v3279
        %v3398 = vpop.f32.mrb[0].mxu0
        %v3399 = vadd.f32 0.0, %v3398
        %v3400 = vpop.f32.mrb[0].mxu0
        %3401 = vmatprep.mubr.f32.mxu0 0.0
        %3402 = vmatmul.mubr.f32.gmra.mrb[0].mxu0 %v3280
        %v3403 = vpop.f32.mrb[0].mxu0
        %v3404 = vadd.f32 0.0, %v3403
        %v3405 = vpop.f32.mrb[0].mxu0
        %3406 = vmatprep.mubr.f32.mxu0 0.0
        %3407 = vmatmul.mubr.f32.gmra.mrb[0].mxu0 %v3281
        %v3408 = vpop.f32.mrb[0].mxu0
        %v3409 = vadd.f32 0.0, %v3408
        %v3410 = vpop.f32.mrb[0].mxu0
        %3411 = vmatprep.mubr.f32.mxu0 0.0
        %3412 = vmatmul.mubr.f32.gmra.mrb[0].mxu0 %v3282
        %v3413 = vpop.f32.mrb[0].mxu0
        %v3414 = vadd.f32 0.0, %v3413
        %v3415 = vpop.f32.mrb[0].mxu0
        %3416 = vmatprep.mubr.f32.mxu0 0.0
        %3417 = vmatmul.mubr.f32.gmra.mrb[0].mxu0 %v3283
        %v3418 = vpop.f32.mrb[0].mxu0
        %v3419 = vadd.f32 0.0, %v3418
        %v3420 = vpop.f32.mrb[0].mxu0
        %3421 = vmatprep.mubr.f32.mxu0 0.0
        %3422 = vmatmul.mubr.f32.gmra.mrb[0].mxu0 %v3284
        %v3423 = vpop.f32.mrb[0].mxu0
        %v3424 = vadd.f32 0.0, %v3423
        %v3425 = vpop.f32.mrb[0].mxu0
        %3426 = vmatprep.mubr.f32.mxu0 0.0
        %3427 = vmatmul.mubr.f32.gmra.mrb[0].mxu0 %v3285
        %v3428 = vpop.f32.mrb[0].mxu0
        %v3429 = vadd.f32 0.0, %v3428
        %v3430 = vpop.f32.mrb[0].mxu0
        %3431 = vmatprep.mubr.f32.mxu0 0.0
        %3432 = vmatmul.mubr.f32.gmra.mrb[0].mxu0 %v3286
        %v3433 = vpop.f32.mrb[0].mxu0
        %v3434 = vadd.f32 0.0, %v3433
        %v3435 = vpop.f32.mrb[0].mxu0
        %3436 = vmatprep.mubr.f32.mxu0 0.0
        %3437 = vmatmul.mubr.f32.gmra.mrb[0].mxu0 %v3287
        %v3438 = vpop.f32.mrb[0].mxu0
        %v3439 = vadd.f32 0.0, %v3438
        %v3440 = vpop.f32.mrb[0].mxu0
        %3441 = vmatprep.mubr.f32.mxu0 0.0
        %3442 = vmatmul.mubr.f32.gmra.mrb[0].mxu0 %v3288
        %v3443 = vpop.f32.mrb[0].mxu0
        %v3444 = vadd.f32 0.0, %v3443
        %v3445 = vpop.f32.mrb[0].mxu0
        %3446 = vmatprep.mubr.f32.mxu0 0.0
        %3447 = vmatmul.mubr.f32.gmra.mrb[0].mxu0 %v3289
        %v3448 = vpop.f32.mrb[0].mxu0
        %v3449 = vadd.f32 0.0, %v3448
        %v3450 = vpop.f32.mrb[0].mxu0
        %3451 = vmatprep.mubr.f32.mxu0 0.0
        %3452 = vmatmul.mubr.f32.gmra.mrb[0].mxu0 %v3290
        %v3453 = vpop.f32.mrb[0].mxu0
        %v3454 = vadd.f32 0.0, %v3453
        %v3455 = vpop.f32.mrb[0].mxu0
        %3456 = vmatprep.mubr.f32.mxu0 0.0
        %3457 = vmatmul.mubr.f32.gmra.mrb[0].mxu0 %v3291
        %v3458 = vpop.f32.mrb[0].mxu0
        %v3459 = vadd.f32 0.0, %v3458
        %v3460 = vpop.f32.mrb[0].mxu0
        %3461 = vmatprep.mubr.f32.mxu0 0.0
        %3462 = vmatmul.mubr.f32.gmra.mrb[0].mxu0 %v3292
        %v3463 = vpop.f32.mrb[0].mxu0
        %v3464 = vadd.f32 0.0, %v3463
        %v3465 = vpop.f32.mrb[0].mxu0
        %3466 = vmatprep.mubr.f32.mxu0 0.0
        %3467 = vmatmul.mubr.f32.gmra.mrb[0].mxu0 %v3293
        %v3468 = vpop.f32.mrb[0].mxu0
        %v3469 = vadd.f32 0.0, %v3468
        %v3470 = vpop.f32.mrb[0].mxu0
        %3471 = vmatprep.mubr.f32.mxu0 0.0
        %3472 = vmatmul.mubr.f32.gmra.mrb[0].mxu0 %v3294
        %v3473 = vpop.f32.mrb[0].mxu0
        %v3474 = vadd.f32 0.0, %v3473
        %v3475 = vpop.f32.mrb[0].mxu0
        %3476 = vmatprep.mubr.f32.mxu0 0.0
        %3477 = vmatmul.mubr.f32.gmra.mrb[0].mxu0 %v3295
        %v3478 = vpop.f32.mrb[0].mxu0
        %v3479 = vadd.f32 0.0, %v3478
        %v3480 = vpop.f32.mrb[0].mxu0
        %3481 = vmatprep.mubr.f32.mxu0 0.0
        %3482 = vmatmul.mubr.f32.gmra.mrb[0].mxu0 %v3296
        %v3483 = vpop.f32.mrb[0].mxu0
        %v3484 = vadd.f32 0.0, %v3483
        %v3485 = vpop.f32.mrb[0].mxu0
        %3486 = vmatprep.mubr.f32.mxu0 0.0
        %3487 = vmatmul.mubr.f32.gmra.mrb[0].mxu0 %v3297
        %v3488 = vpop.f32.mrb[0].mxu0
        %v3489 = vadd.f32 0.0, %v3488
        %v3490 = vpop.f32.mrb[0].mxu0
        %3491 = vmatprep.mubr.f32.mxu0 0.0
        %3492 = vmatmul.mubr.f32.gmra.mrb[0].mxu0 %v3298
        %v3493 = vpop.f32.mrb[0].mxu0
        %v3494 = vadd.f32 0.0, %v3493
        %v3495 = vpop.f32.mrb[0].mxu0
        %3496 = vmatprep.mubr.f32.mxu0 0.0
        %3497 = vmatmul.mubr.f32.gmra.mrb[0].mxu0 %v3299
        %v3498 = vpop.f32.mrb[0].mxu0
        %v3499 = vadd.f32 0.0, %v3498
        %v3500 = vpop.f32.mrb[0].mxu0
        %3501 = vmatprep.mubr.f32.mxu0 0.0
        %3502 = vmatmul.mubr.f32.gmra.mrb[0].mxu0 %v3300
        %v3503 = vpop.f32.mrb[0].mxu0
        %v3504 = vadd.f32 0.0, %v3503
        %v3505 = vpop.f32.mrb[0].mxu0
        %3506 = vmatprep.mubr.f32.mxu0 0.0
        %3507 = vmatmul.mubr.f32.gmra.mrb[0].mxu0 %v3301
        %v3508 = vpop.f32.mrb[0].mxu0
        %v3509 = vadd.f32 0.0, %v3508
        %v3510 = vpop.f32.mrb[0].mxu0
        %3511 = vmatprep.mubr.f32.mxu0 0.0
        %3512 = vmatmul.mubr.f32.gmra.mrb[0].mxu0 %v3302
        %v3513 = vpop.f32.mrb[0].mxu0
        %v3514 = vadd.f32 0.0, %v3513
        %v3515 = vpop.f32.mrb[0].mxu0
        %3516 = vmatprep.mubr.f32.mxu0 0.0
        %3517 = vmatmul.mubr.f32.gmra.mrb[0].mxu0 %v3303
        %v3518 = vpop.f32.mrb[0].mxu0
        %v3519 = vadd.f32 0.0, %v3518
        %v3520 = vpop.f32.mrb[0].mxu0
        %3521 = vmatprep.mubr.f32.mxu0 0.0
        %3522 = vmatmul.mubr.f32.gmra.mrb[0].mxu0 %v3304
        %v3523 = vpop.f32.mrb[0].mxu0
        %v3524 = vadd.f32 0.0, %v3523
        %v3525 = vpop.f32.mrb[0].mxu0
        %3526 = vmatprep.mubr.f32.mxu0 0.0
        %3527 = vmatmul.mubr.f32.gmra.mrb[0].mxu0 %v3305
        %v3528 = vpop.f32.mrb[0].mxu0
        %v3529 = vadd.f32 0.0, %v3528
        %v3530 = vpop.f32.mrb[0].mxu0
        %3531 = vmatprep.mubr.f32.mxu0 0.0
        %3532 = vmatmul.mubr.f32.gmra.mrb[0].mxu0 %v3306
        %v3533 = vpop.f32.mrb[0].mxu0
        %v3534 = vadd.f32 0.0, %v3533
        %v3535 = vpop.f32.mrb[0].mxu0
        %3536 = vmatprep.mubr.f32.mxu0 0.0
        %3537 = vmatmul.mubr.f32.gmra.mrb[0].mxu0 %v3307
        %v3538 = vpop.f32.mrb[0].mxu0
        %v3539 = vadd.f32 0.0, %v3538
        %v3540 = vpop.f32.mrb[0].mxu0
        %3541 = vmatprep.mubr.f32.mxu0 0.0
        %3542 = vmatmul.mubr.f32.gmra.mrb[0].mxu0 %v3308
        %v3543 = vpop.f32.mrb[0].mxu0
        %v3544 = vadd.f32 0.0, %v3543
        %v3545 = vpop.f32.mrb[0].mxu0
        %3546 = vmatprep.mubr.f32.mxu0 0.0
        %3547 = vmatmul.mubr.f32.gmra.mrb[0].mxu0 %v3309
        %v3548 = vpop.f32.mrb[0].mxu0
        %v3549 = vadd.f32 0.0, %v3548
        %v3550 = vpop.f32.mrb[0].mxu0
        %3551 = vdwg.mxu0
        %v3552 = vld [vmem:[#allocation3] sm:$0xff]
        %v3553 = vld [vmem:[#allocation3 + $0x8] sm:$0xff]
        %v3554 = vld [vmem:[#allocation3 + $0x10] sm:$0xff]
        %v3555 = vld [vmem:[#allocation3 + $0x18] sm:$0xff]
        %v3556 = vld [vmem:[#allocation3 + $0x20] sm:$0xff]
        %v3557 = vld [vmem:[#allocation3 + $0x28] sm:$0xff]
        %v3558 = vld [vmem:[#allocation3 + $0x30] sm:$0xff]
        %v3559 = vld [vmem:[#allocation3 + $0x38] sm:$0xff]
        %v3560 = vld [vmem:[#allocation3 + $0x40] sm:$0xff]
        %v3561 = vld [vmem:[#allocation3 + $0x48] sm:$0xff]
        %v3562 = vld [vmem:[#allocation3 + $0x50] sm:$0xff]
        %v3563 = vld [vmem:[#allocation3 + $0x58] sm:$0xff]
        %v3564 = vld [vmem:[#allocation3 + $0x60] sm:$0xff]
        %v3565 = vld [vmem:[#allocation3 + $0x68] sm:$0xff]
        %v3566 = vld [vmem:[#allocation3 + $0x70] sm:$0xff]
        %v3567 = vld [vmem:[#allocation3 + $0x78] sm:$0xff]
        %v3568 = vld [vmem:[#allocation3 + $0x80] sm:$0xff]
        %v3569 = vld [vmem:[#allocation3 + $0x88] sm:$0xff]
        %v3570 = vld [vmem:[#allocation3 + $0x90] sm:$0xff]
        %v3571 = vld [vmem:[#allocation3 + $0x98] sm:$0xff]
        %v3572 = vld [vmem:[#allocation3 + $0xa0] sm:$0xff]
        %v3573 = vld [vmem:[#allocation3 + $0xa8] sm:$0xff]
        %v3574 = vld [vmem:[#allocation3 + $0xb0] sm:$0xff]
        %v3575 = vld [vmem:[#allocation3 + $0xb8] sm:$0xff]
        %v3576 = vld [vmem:[#allocation3 + $0xc0] sm:$0xff]
        %v3577 = vld [vmem:[#allocation3 + $0xc8] sm:$0xff]
        %v3578 = vld [vmem:[#allocation3 + $0xd0] sm:$0xff]
        %v3579 = vld [vmem:[#allocation3 + $0xd8] sm:$0xff]
        %v3580 = vld [vmem:[#allocation3 + $0xe0] sm:$0xff]
        %v3581 = vld [vmem:[#allocation3 + $0xe8] sm:$0xff]
        %v3582 = vld [vmem:[#allocation3 + $0xf0] sm:$0xff]
        %v3583 = vld [vmem:[#allocation3 + $0xf8] sm:$0xff]
        %v3584 = vadd.f32 %v3552, %v3394
        %v3585 = vadd.f32 %v3553, %v3399
        %v3586 = vadd.f32 %v3554, %v3404
        %v3587 = vadd.f32 %v3555, %v3409
        %v3588 = vadd.f32 %v3556, %v3414
        %v3589 = vadd.f32 %v3557, %v3419
        %v3590 = vadd.f32 %v3558, %v3424
        %v3591 = vadd.f32 %v3559, %v3429
        %v3592 = vadd.f32 %v3560, %v3434
        %v3593 = vadd.f32 %v3561, %v3439
        %v3594 = vadd.f32 %v3562, %v3444
        %v3595 = vadd.f32 %v3563, %v3449
        %v3596 = vadd.f32 %v3564, %v3454
        %v3597 = vadd.f32 %v3565, %v3459
        %v3598 = vadd.f32 %v3566, %v3464
        %v3599 = vadd.f32 %v3567, %v3469
        %v3600 = vadd.f32 %v3568, %v3474
        %v3601 = vadd.f32 %v3569, %v3479
        %v3602 = vadd.f32 %v3570, %v3484
        %v3603 = vadd.f32 %v3571, %v3489
        %v3604 = vadd.f32 %v3572, %v3494
        %v3605 = vadd.f32 %v3573, %v3499
        %v3606 = vadd.f32 %v3574, %v3504
        %v3607 = vadd.f32 %v3575, %v3509
        %v3608 = vadd.f32 %v3576, %v3514
        %v3609 = vadd.f32 %v3577, %v3519
        %v3610 = vadd.f32 %v3578, %v3524
        %v3611 = vadd.f32 %v3579, %v3529
        %v3612 = vadd.f32 %v3580, %v3534
        %v3613 = vadd.f32 %v3581, %v3539
        %v3614 = vadd.f32 %v3582, %v3544
        %v3615 = vadd.f32 %v3583, %v3549
        %3616 = vst [vmem:[#allocation3] sm:$0xff] %v3584
        %3617 = vst [vmem:[#allocation3 + $0x8] sm:$0xff] %v3585
        %3618 = vst [vmem:[#allocation3 + $0x10] sm:$0xff] %v3586
        %3619 = vst [vmem:[#allocation3 + $0x18] sm:$0xff] %v3587
        %3620 = vst [vmem:[#allocation3 + $0x20] sm:$0xff] %v3588
        %3621 = vst [vmem:[#allocation3 + $0x28] sm:$0xff] %v3589
        %3622 = vst [vmem:[#allocation3 + $0x30] sm:$0xff] %v3590
        %3623 = vst [vmem:[#allocation3 + $0x38] sm:$0xff] %v3591
        %3624 = vst [vmem:[#allocation3 + $0x40] sm:$0xff] %v3592
        %3625 = vst [vmem:[#allocation3 + $0x48] sm:$0xff] %v3593
        %3626 = vst [vmem:[#allocation3 + $0x50] sm:$0xff] %v3594
        %3627 = vst [vmem:[#allocation3 + $0x58] sm:$0xff] %v3595
        %3628 = vst [vmem:[#allocation3 + $0x60] sm:$0xff] %v3596
        %3629 = vst [vmem:[#allocation3 + $0x68] sm:$0xff] %v3597
        %3630 = vst [vmem:[#allocation3 + $0x70] sm:$0xff] %v3598
        %3631 = vst [vmem:[#allocation3 + $0x78] sm:$0xff] %v3599
        %3632 = vst [vmem:[#allocation3 + $0x80] sm:$0xff] %v3600
        %3633 = vst [vmem:[#allocation3 + $0x88] sm:$0xff] %v3601
        %3634 = vst [vmem:[#allocation3 + $0x90] sm:$0xff] %v3602
        %3635 = vst [vmem:[#allocation3 + $0x98] sm:$0xff] %v3603
        %3636 = vst [vmem:[#allocation3 + $0xa0] sm:$0xff] %v3604
        %3637 = vst [vmem:[#allocation3 + $0xa8] sm:$0xff] %v3605
        %3638 = vst [vmem:[#allocation3 + $0xb0] sm:$0xff] %v3606
        %3639 = vst [vmem:[#allocation3 + $0xb8] sm:$0xff] %v3607
        %3640 = vst [vmem:[#allocation3 + $0xc0] sm:$0xff] %v3608
        %3641 = vst [vmem:[#allocation3 + $0xc8] sm:$0xff] %v3609
        %3642 = vst [vmem:[#allocation3 + $0xd0] sm:$0xff] %v3610
        %3643 = vst [vmem:[#allocation3 + $0xd8] sm:$0xff] %v3611
        %3644 = vst [vmem:[#allocation3 + $0xe0] sm:$0xff] %v3612
        %3645 = vst [vmem:[#allocation3 + $0xe8] sm:$0xff] %v3613
        %3646 = vst [vmem:[#allocation3 + $0xf0] sm:$0xff] %v3614
        %3647 = vst [vmem:[#allocation3 + $0xf8] sm:$0xff] %v3615
        %v3648 = vld [vmem:[%s2907 + $0x2] sm:$0xff]
        %v3649 = vld [vmem:[%s2907 + $0xa] sm:$0xff]
        %v3650 = vld [vmem:[%s2907 + $0x1a] sm:$0xff]
        %v3651 = vld [vmem:[%s2907 + $0x22] sm:$0xff]
        %v3652 = vld [vmem:[%s2907 + $0x32] sm:$0xff]
        %v3653 = vld [vmem:[%s2907 + $0x3a] sm:$0xff]
        %v3654 = vld [vmem:[%s2907 + $0x4a] sm:$0xff]
        %v3655 = vld [vmem:[%s2907 + $0x52] sm:$0xff]
        %v3656 = vld [vmem:[%s2907 + $0x62] sm:$0xff]
        %v3657 = vld [vmem:[%s2907 + $0x6a] sm:$0xff]
        %v3658 = vld [vmem:[%s2907 + $0x7a] sm:$0xff]
        %v3659 = vld [vmem:[%s2907 + $0x82] sm:$0xff]
        %v3660 = vld [vmem:[%s2907 + $0x92] sm:$0xff]
        %v3661 = vld [vmem:[%s2907 + $0x9a] sm:$0xff]
        %v3662 = vld [vmem:[%s2907 + $0xaa] sm:$0xff]
        %v3663 = vld [vmem:[%s2907 + $0xb2] sm:$0xff]
        %v3664 = vld [vmem:[%s2907 + $0xc2] sm:$0xff]
        %v3665 = vld [vmem:[%s2907 + $0xca] sm:$0xff]
        %v3666 = vld [vmem:[%s2907 + $0xda] sm:$0xff]
        %v3667 = vld [vmem:[%s2907 + $0xe2] sm:$0xff]
        %v3668 = vld [vmem:[%s2907 + $0xf2] sm:$0xff]
        %v3669 = vld [vmem:[%s2907 + $0xfa] sm:$0xff]
        %v3670 = vld [vmem:[%s2907 + $0x10a] sm:$0xff]
        %v3671 = vld [vmem:[%s2907 + $0x112] sm:$0xff]
        %v3672 = vld [vmem:[%s2907 + $0x122] sm:$0xff]
        %v3673 = vld [vmem:[%s2907 + $0x12a] sm:$0xff]
        %v3674 = vld [vmem:[%s2907 + $0x13a] sm:$0xff]
        %v3675 = vld [vmem:[%s2907 + $0x142] sm:$0xff]
        %v3676 = vld [vmem:[%s2907 + $0x152] sm:$0xff]
        %v3677 = vld [vmem:[%s2907 + $0x15a] sm:$0xff]
        %v3678 = vld [vmem:[%s2907 + $0x16a] sm:$0xff]
        %v3679 = vld [vmem:[%s2907 + $0x172] sm:$0xff]
        %s3680 = scalar_lea.vmem [#allocation9], 1024
        %v3681 = vld [vmem:[%s3680] sm:$0xff]
        %v3682 = vld [vmem:[%s3680 + $0x8] sm:$0xff]
        %v3683 = vld [vmem:[%s3680 + $0x10] sm:$0xff]
        %v3684 = vld [vmem:[%s3680 + $0x18] sm:$0xff]
        %v3685 = vld [vmem:[%s3680 + $0x20] sm:$0xff]
        %v3686 = vld [vmem:[%s3680 + $0x28] sm:$0xff]
        %v3687 = vld [vmem:[%s3680 + $0x30] sm:$0xff]
        %v3688 = vld [vmem:[%s3680 + $0x38] sm:$0xff]
        %v3689 = vld [vmem:[%s3680 + $0x40] sm:$0xff]
        %v3690 = vld [vmem:[%s3680 + $0x48] sm:$0xff]
        %v3691 = vld [vmem:[%s3680 + $0x50] sm:$0xff]
        %v3692 = vld [vmem:[%s3680 + $0x58] sm:$0xff]
        %v3693 = vld [vmem:[%s3680 + $0x60] sm:$0xff]
        %v3694 = vld [vmem:[%s3680 + $0x68] sm:$0xff]
        %v3695 = vld [vmem:[%s3680 + $0x70] sm:$0xff]
        %v3696 = vld [vmem:[%s3680 + $0x78] sm:$0xff]
        %3697 = vmatprep.subr.mxu0 0.0
        %3698 = vmatpush1.msra.mxu0 %v3681
        %3699 = vmatprep.subr.mxu0 0.0
        %3700 = vmatpush1.msra.mxu0 %v3682
        %3701 = vmatprep.subr.mxu0 0.0
        %3702 = vmatpush1.msra.mxu0 %v3683
        %3703 = vmatprep.subr.mxu0 0.0
        %3704 = vmatpush1.msra.mxu0 %v3684
        %3705 = vmatprep.subr.mxu0 0.0
        %3706 = vmatpush1.msra.mxu0 %v3685
        %3707 = vmatprep.subr.mxu0 0.0
        %3708 = vmatpush1.msra.mxu0 %v3686
        %3709 = vmatprep.subr.mxu0 0.0
        %3710 = vmatpush1.msra.mxu0 %v3687
        %3711 = vmatprep.subr.mxu0 0.0
        %3712 = vmatpush1.msra.mxu0 %v3688
        %3713 = vmatprep.subr.mxu0 0.0
        %3714 = vmatpush1.msra.mxu0 %v3689
        %3715 = vmatprep.subr.mxu0 0.0
        %3716 = vmatpush1.msra.mxu0 %v3690
        %3717 = vmatprep.subr.mxu0 0.0
        %3718 = vmatpush1.msra.mxu0 %v3691
        %3719 = vmatprep.subr.mxu0 0.0
        %3720 = vmatpush1.msra.mxu0 %v3692
        %3721 = vmatprep.subr.mxu0 0.0
        %3722 = vmatpush1.msra.mxu0 %v3693
        %3723 = vmatprep.subr.mxu0 0.0
        %3724 = vmatpush1.msra.mxu0 %v3694
        %3725 = vmatprep.subr.mxu0 0.0
        %3726 = vmatpush1.msra.mxu0 %v3695
        %3727 = vmatprep.subr.mxu0 0.0
        %3728 = vmatpush1.msra.mxu0 %v3696
        %3729 = vmatprep.subr.mxu0 0.0
        %3730 = vmatpush1.msra.mxu0 0.0
        %3731 = vmatprep.subr.mxu0 0.0
        %3732 = vmatpush1.msra.mxu0 0.0
        %3733 = vmatprep.subr.mxu0 0.0
        %3734 = vmatpush1.msra.mxu0 0.0
        %3735 = vmatprep.subr.mxu0 0.0
        %3736 = vmatpush1.msra.mxu0 0.0
        %3737 = vmatprep.subr.mxu0 0.0
        %3738 = vmatpush1.msra.mxu0 0.0
        %3739 = vmatprep.subr.mxu0 0.0
        %3740 = vmatpush1.msra.mxu0 0.0
        %3741 = vmatprep.subr.mxu0 0.0
        %3742 = vmatpush1.msra.mxu0 0.0
        %3743 = vmatprep.subr.mxu0 0.0
        %3744 = vmatpush1.msra.mxu0 0.0
        %3745 = vmatprep.subr.mxu0 0.0
        %3746 = vmatpush1.msra.mxu0 0.0
        %3747 = vmatprep.subr.mxu0 0.0
        %3748 = vmatpush1.msra.mxu0 0.0
        %3749 = vmatprep.subr.mxu0 0.0
        %3750 = vmatpush1.msra.mxu0 0.0
        %3751 = vmatprep.subr.mxu0 0.0
        %3752 = vmatpush1.msra.mxu0 0.0
        %3753 = vmatprep.subr.mxu0 0.0
        %3754 = vmatpush1.msra.mxu0 0.0
        %3755 = vmatprep.subr.mxu0 0.0
        %3756 = vmatpush1.msra.mxu0 0.0
        %3757 = vmatprep.subr.mxu0 0.0
        %3758 = vmatpush1.msra.mxu0 0.0
        %3759 = vmatprep.subr.mxu0 0.0
        %3760 = vmatpush1.msra.mxu0 0.0
        %3761 = vmatprep.mubr.f32.mxu0 0.0
        %3762 = vmatmul.mubr.f32.gmra.mrb[0].mxu0 %v3648
        %v3763 = vpop.f32.mrb[0].mxu0
        %v3764 = vadd.f32 0.0, %v3763
        %v3765 = vpop.f32.mrb[0].mxu0
        %3766 = vmatprep.mubr.f32.mxu0 0.0
        %3767 = vmatmul.mubr.f32.gmra.mrb[0].mxu0 %v3649
        %v3768 = vpop.f32.mrb[0].mxu0
        %v3769 = vadd.f32 0.0, %v3768
        %v3770 = vpop.f32.mrb[0].mxu0
        %3771 = vmatprep.mubr.f32.mxu0 0.0
        %3772 = vmatmul.mubr.f32.gmra.mrb[0].mxu0 %v3650
        %v3773 = vpop.f32.mrb[0].mxu0
        %v3774 = vadd.f32 0.0, %v3773
        %v3775 = vpop.f32.mrb[0].mxu0
        %3776 = vmatprep.mubr.f32.mxu0 0.0
        %3777 = vmatmul.mubr.f32.gmra.mrb[0].mxu0 %v3651
        %v3778 = vpop.f32.mrb[0].mxu0
        %v3779 = vadd.f32 0.0, %v3778
        %v3780 = vpop.f32.mrb[0].mxu0
        %3781 = vmatprep.mubr.f32.mxu0 0.0
        %3782 = vmatmul.mubr.f32.gmra.mrb[0].mxu0 %v3652
        %v3783 = vpop.f32.mrb[0].mxu0
        %v3784 = vadd.f32 0.0, %v3783
        %v3785 = vpop.f32.mrb[0].mxu0
        %3786 = vmatprep.mubr.f32.mxu0 0.0
        %3787 = vmatmul.mubr.f32.gmra.mrb[0].mxu0 %v3653
        %v3788 = vpop.f32.mrb[0].mxu0
        %v3789 = vadd.f32 0.0, %v3788
        %v3790 = vpop.f32.mrb[0].mxu0
        %3791 = vmatprep.mubr.f32.mxu0 0.0
        %3792 = vmatmul.mubr.f32.gmra.mrb[0].mxu0 %v3654
        %v3793 = vpop.f32.mrb[0].mxu0
        %v3794 = vadd.f32 0.0, %v3793
        %v3795 = vpop.f32.mrb[0].mxu0
        %3796 = vmatprep.mubr.f32.mxu0 0.0
        %3797 = vmatmul.mubr.f32.gmra.mrb[0].mxu0 %v3655
        %v3798 = vpop.f32.mrb[0].mxu0
        %v3799 = vadd.f32 0.0, %v3798
        %v3800 = vpop.f32.mrb[0].mxu0
        %3801 = vmatprep.mubr.f32.mxu0 0.0
        %3802 = vmatmul.mubr.f32.gmra.mrb[0].mxu0 %v3656
        %v3803 = vpop.f32.mrb[0].mxu0
        %v3804 = vadd.f32 0.0, %v3803
        %v3805 = vpop.f32.mrb[0].mxu0
        %3806 = vmatprep.mubr.f32.mxu0 0.0
        %3807 = vmatmul.mubr.f32.gmra.mrb[0].mxu0 %v3657
        %v3808 = vpop.f32.mrb[0].mxu0
        %v3809 = vadd.f32 0.0, %v3808
        %v3810 = vpop.f32.mrb[0].mxu0
        %3811 = vmatprep.mubr.f32.mxu0 0.0
        %3812 = vmatmul.mubr.f32.gmra.mrb[0].mxu0 %v3658
        %v3813 = vpop.f32.mrb[0].mxu0
        %v3814 = vadd.f32 0.0, %v3813
        %v3815 = vpop.f32.mrb[0].mxu0
        %3816 = vmatprep.mubr.f32.mxu0 0.0
        %3817 = vmatmul.mubr.f32.gmra.mrb[0].mxu0 %v3659
        %v3818 = vpop.f32.mrb[0].mxu0
        %v3819 = vadd.f32 0.0, %v3818
        %v3820 = vpop.f32.mrb[0].mxu0
        %3821 = vmatprep.mubr.f32.mxu0 0.0
        %3822 = vmatmul.mubr.f32.gmra.mrb[0].mxu0 %v3660
        %v3823 = vpop.f32.mrb[0].mxu0
        %v3824 = vadd.f32 0.0, %v3823
        %v3825 = vpop.f32.mrb[0].mxu0
        %3826 = vmatprep.mubr.f32.mxu0 0.0
        %3827 = vmatmul.mubr.f32.gmra.mrb[0].mxu0 %v3661
        %v3828 = vpop.f32.mrb[0].mxu0
        %v3829 = vadd.f32 0.0, %v3828
        %v3830 = vpop.f32.mrb[0].mxu0
        %3831 = vmatprep.mubr.f32.mxu0 0.0
        %3832 = vmatmul.mubr.f32.gmra.mrb[0].mxu0 %v3662
        %v3833 = vpop.f32.mrb[0].mxu0
        %v3834 = vadd.f32 0.0, %v3833
        %v3835 = vpop.f32.mrb[0].mxu0
        %3836 = vmatprep.mubr.f32.mxu0 0.0
        %3837 = vmatmul.mubr.f32.gmra.mrb[0].mxu0 %v3663
        %v3838 = vpop.f32.mrb[0].mxu0
        %v3839 = vadd.f32 0.0, %v3838
        %v3840 = vpop.f32.mrb[0].mxu0
        %3841 = vmatprep.mubr.f32.mxu0 0.0
        %3842 = vmatmul.mubr.f32.gmra.mrb[0].mxu0 %v3664
        %v3843 = vpop.f32.mrb[0].mxu0
        %v3844 = vadd.f32 0.0, %v3843
        %v3845 = vpop.f32.mrb[0].mxu0
        %3846 = vmatprep.mubr.f32.mxu0 0.0
        %3847 = vmatmul.mubr.f32.gmra.mrb[0].mxu0 %v3665
        %v3848 = vpop.f32.mrb[0].mxu0
        %v3849 = vadd.f32 0.0, %v3848
        %v3850 = vpop.f32.mrb[0].mxu0
        %3851 = vmatprep.mubr.f32.mxu0 0.0
        %3852 = vmatmul.mubr.f32.gmra.mrb[0].mxu0 %v3666
        %v3853 = vpop.f32.mrb[0].mxu0
        %v3854 = vadd.f32 0.0, %v3853
        %v3855 = vpop.f32.mrb[0].mxu0
        %3856 = vmatprep.mubr.f32.mxu0 0.0
        %3857 = vmatmul.mubr.f32.gmra.mrb[0].mxu0 %v3667
        %v3858 = vpop.f32.mrb[0].mxu0
        %v3859 = vadd.f32 0.0, %v3858
        %v3860 = vpop.f32.mrb[0].mxu0
        %3861 = vmatprep.mubr.f32.mxu0 0.0
        %3862 = vmatmul.mubr.f32.gmra.mrb[0].mxu0 %v3668
        %v3863 = vpop.f32.mrb[0].mxu0
        %v3864 = vadd.f32 0.0, %v3863
        %v3865 = vpop.f32.mrb[0].mxu0
        %3866 = vmatprep.mubr.f32.mxu0 0.0
        %3867 = vmatmul.mubr.f32.gmra.mrb[0].mxu0 %v3669
        %v3868 = vpop.f32.mrb[0].mxu0
        %v3869 = vadd.f32 0.0, %v3868
        %v3870 = vpop.f32.mrb[0].mxu0
        %3871 = vmatprep.mubr.f32.mxu0 0.0
        %3872 = vmatmul.mubr.f32.gmra.mrb[0].mxu0 %v3670
        %v3873 = vpop.f32.mrb[0].mxu0
        %v3874 = vadd.f32 0.0, %v3873
        %v3875 = vpop.f32.mrb[0].mxu0
        %3876 = vmatprep.mubr.f32.mxu0 0.0
        %3877 = vmatmul.mubr.f32.gmra.mrb[0].mxu0 %v3671
        %v3878 = vpop.f32.mrb[0].mxu0
        %v3879 = vadd.f32 0.0, %v3878
        %v3880 = vpop.f32.mrb[0].mxu0
        %3881 = vmatprep.mubr.f32.mxu0 0.0
        %3882 = vmatmul.mubr.f32.gmra.mrb[0].mxu0 %v3672
        %v3883 = vpop.f32.mrb[0].mxu0
        %v3884 = vadd.f32 0.0, %v3883
        %v3885 = vpop.f32.mrb[0].mxu0
        %3886 = vmatprep.mubr.f32.mxu0 0.0
        %3887 = vmatmul.mubr.f32.gmra.mrb[0].mxu0 %v3673
        %v3888 = vpop.f32.mrb[0].mxu0
        %v3889 = vadd.f32 0.0, %v3888
        %v3890 = vpop.f32.mrb[0].mxu0
        %3891 = vmatprep.mubr.f32.mxu0 0.0
        %3892 = vmatmul.mubr.f32.gmra.mrb[0].mxu0 %v3674
        %v3893 = vpop.f32.mrb[0].mxu0
        %v3894 = vadd.f32 0.0, %v3893
        %v3895 = vpop.f32.mrb[0].mxu0
        %3896 = vmatprep.mubr.f32.mxu0 0.0
        %3897 = vmatmul.mubr.f32.gmra.mrb[0].mxu0 %v3675
        %v3898 = vpop.f32.mrb[0].mxu0
        %v3899 = vadd.f32 0.0, %v3898
        %v3900 = vpop.f32.mrb[0].mxu0
        %3901 = vmatprep.mubr.f32.mxu0 0.0
        %3902 = vmatmul.mubr.f32.gmra.mrb[0].mxu0 %v3676
        %v3903 = vpop.f32.mrb[0].mxu0
        %v3904 = vadd.f32 0.0, %v3903
        %v3905 = vpop.f32.mrb[0].mxu0
        %3906 = vmatprep.mubr.f32.mxu0 0.0
        %3907 = vmatmul.mubr.f32.gmra.mrb[0].mxu0 %v3677
        %v3908 = vpop.f32.mrb[0].mxu0
        %v3909 = vadd.f32 0.0, %v3908
        %v3910 = vpop.f32.mrb[0].mxu0
        %3911 = vmatprep.mubr.f32.mxu0 0.0
        %3912 = vmatmul.mubr.f32.gmra.mrb[0].mxu0 %v3678
        %v3913 = vpop.f32.mrb[0].mxu0
        %v3914 = vadd.f32 0.0, %v3913
        %v3915 = vpop.f32.mrb[0].mxu0
        %3916 = vmatprep.mubr.f32.mxu0 0.0
        %3917 = vmatmul.mubr.f32.gmra.mrb[0].mxu0 %v3679
        %v3918 = vpop.f32.mrb[0].mxu0
        %v3919 = vadd.f32 0.0, %v3918
        %v3920 = vpop.f32.mrb[0].mxu0
        %3921 = vdwg.mxu0
        %v3922 = vld [vmem:[#allocation3] sm:$0xff]
        %v3923 = vld [vmem:[#allocation3 + $0x8] sm:$0xff]
        %v3924 = vld [vmem:[#allocation3 + $0x10] sm:$0xff]
        %v3925 = vld [vmem:[#allocation3 + $0x18] sm:$0xff]
        %v3926 = vld [vmem:[#allocation3 + $0x20] sm:$0xff]
        %v3927 = vld [vmem:[#allocation3 + $0x28] sm:$0xff]
        %v3928 = vld [vmem:[#allocation3 + $0x30] sm:$0xff]
        %v3929 = vld [vmem:[#allocation3 + $0x38] sm:$0xff]
        %v3930 = vld [vmem:[#allocation3 + $0x40] sm:$0xff]
        %v3931 = vld [vmem:[#allocation3 + $0x48] sm:$0xff]
        %v3932 = vld [vmem:[#allocation3 + $0x50] sm:$0xff]
        %v3933 = vld [vmem:[#allocation3 + $0x58] sm:$0xff]
        %v3934 = vld [vmem:[#allocation3 + $0x60] sm:$0xff]
        %v3935 = vld [vmem:[#allocation3 + $0x68] sm:$0xff]
        %v3936 = vld [vmem:[#allocation3 + $0x70] sm:$0xff]
        %v3937 = vld [vmem:[#allocation3 + $0x78] sm:$0xff]
        %v3938 = vld [vmem:[#allocation3 + $0x80] sm:$0xff]
        %v3939 = vld [vmem:[#allocation3 + $0x88] sm:$0xff]
        %v3940 = vld [vmem:[#allocation3 + $0x90] sm:$0xff]
        %v3941 = vld [vmem:[#allocation3 + $0x98] sm:$0xff]
        %v3942 = vld [vmem:[#allocation3 + $0xa0] sm:$0xff]
        %v3943 = vld [vmem:[#allocation3 + $0xa8] sm:$0xff]
        %v3944 = vld [vmem:[#allocation3 + $0xb0] sm:$0xff]
        %v3945 = vld [vmem:[#allocation3 + $0xb8] sm:$0xff]
        %v3946 = vld [vmem:[#allocation3 + $0xc0] sm:$0xff]
        %v3947 = vld [vmem:[#allocation3 + $0xc8] sm:$0xff]
        %v3948 = vld [vmem:[#allocation3 + $0xd0] sm:$0xff]
        %v3949 = vld [vmem:[#allocation3 + $0xd8] sm:$0xff]
        %v3950 = vld [vmem:[#allocation3 + $0xe0] sm:$0xff]
        %v3951 = vld [vmem:[#allocation3 + $0xe8] sm:$0xff]
        %v3952 = vld [vmem:[#allocation3 + $0xf0] sm:$0xff]
        %v3953 = vld [vmem:[#allocation3 + $0xf8] sm:$0xff]
        %v3954 = vadd.f32 %v3922, %v3764
        %v3955 = vadd.f32 %v3923, %v3769
        %v3956 = vadd.f32 %v3924, %v3774
        %v3957 = vadd.f32 %v3925, %v3779
        %v3958 = vadd.f32 %v3926, %v3784
        %v3959 = vadd.f32 %v3927, %v3789
        %v3960 = vadd.f32 %v3928, %v3794
        %v3961 = vadd.f32 %v3929, %v3799
        %v3962 = vadd.f32 %v3930, %v3804
        %v3963 = vadd.f32 %v3931, %v3809
        %v3964 = vadd.f32 %v3932, %v3814
        %v3965 = vadd.f32 %v3933, %v3819
        %v3966 = vadd.f32 %v3934, %v3824
        %v3967 = vadd.f32 %v3935, %v3829
        %v3968 = vadd.f32 %v3936, %v3834
        %v3969 = vadd.f32 %v3937, %v3839
        %v3970 = vadd.f32 %v3938, %v3844
        %v3971 = vadd.f32 %v3939, %v3849
        %v3972 = vadd.f32 %v3940, %v3854
        %v3973 = vadd.f32 %v3941, %v3859
        %v3974 = vadd.f32 %v3942, %v3864
        %v3975 = vadd.f32 %v3943, %v3869
        %v3976 = vadd.f32 %v3944, %v3874
        %v3977 = vadd.f32 %v3945, %v3879
        %v3978 = vadd.f32 %v3946, %v3884
        %v3979 = vadd.f32 %v3947, %v3889
        %v3980 = vadd.f32 %v3948, %v3894
        %v3981 = vadd.f32 %v3949, %v3899
        %v3982 = vadd.f32 %v3950, %v3904
        %v3983 = vadd.f32 %v3951, %v3909
        %v3984 = vadd.f32 %v3952, %v3914
        %v3985 = vadd.f32 %v3953, %v3919
        %3986 = vst [vmem:[#allocation3] sm:$0xff] %v3954
        %3987 = vst [vmem:[#allocation3 + $0x8] sm:$0xff] %v3955
        %3988 = vst [vmem:[#allocation3 + $0x10] sm:$0xff] %v3956
        %3989 = vst [vmem:[#allocation3 + $0x18] sm:$0xff] %v3957
        %3990 = vst [vmem:[#allocation3 + $0x20] sm:$0xff] %v3958
        %3991 = vst [vmem:[#allocation3 + $0x28] sm:$0xff] %v3959
        %3992 = vst [vmem:[#allocation3 + $0x30] sm:$0xff] %v3960
        %3993 = vst [vmem:[#allocation3 + $0x38] sm:$0xff] %v3961
        %3994 = vst [vmem:[#allocation3 + $0x40] sm:$0xff] %v3962
        %3995 = vst [vmem:[#allocation3 + $0x48] sm:$0xff] %v3963
        %3996 = vst [vmem:[#allocation3 + $0x50] sm:$0xff] %v3964
        %3997 = vst [vmem:[#allocation3 + $0x58] sm:$0xff] %v3965
        %3998 = vst [vmem:[#allocation3 + $0x60] sm:$0xff] %v3966
        %3999 = vst [vmem:[#allocation3 + $0x68] sm:$0xff] %v3967
        %4000 = vst [vmem:[#allocation3 + $0x70] sm:$0xff] %v3968
        %4001 = vst [vmem:[#allocation3 + $0x78] sm:$0xff] %v3969
        %4002 = vst [vmem:[#allocation3 + $0x80] sm:$0xff] %v3970
        %4003 = vst [vmem:[#allocation3 + $0x88] sm:$0xff] %v3971
        %4004 = vst [vmem:[#allocation3 + $0x90] sm:$0xff] %v3972
        %4005 = vst [vmem:[#allocation3 + $0x98] sm:$0xff] %v3973
        %4006 = vst [vmem:[#allocation3 + $0xa0] sm:$0xff] %v3974
        %4007 = vst [vmem:[#allocation3 + $0xa8] sm:$0xff] %v3975
        %4008 = vst [vmem:[#allocation3 + $0xb0] sm:$0xff] %v3976
        %4009 = vst [vmem:[#allocation3 + $0xb8] sm:$0xff] %v3977
        %4010 = vst [vmem:[#allocation3 + $0xc0] sm:$0xff] %v3978
        %4011 = vst [vmem:[#allocation3 + $0xc8] sm:$0xff] %v3979
        %4012 = vst [vmem:[#allocation3 + $0xd0] sm:$0xff] %v3980
        %4013 = vst [vmem:[#allocation3 + $0xd8] sm:$0xff] %v3981
        %4014 = vst [vmem:[#allocation3 + $0xe0] sm:$0xff] %v3982
        %4015 = vst [vmem:[#allocation3 + $0xe8] sm:$0xff] %v3983
        %4016 = vst [vmem:[#allocation3 + $0xf0] sm:$0xff] %v3984
        %4017 = vst [vmem:[#allocation3 + $0xf8] sm:$0xff] %v3985
        %v4018 = vld [vmem:[#allocation3] sm:$0xff]
        %v4019 = vld [vmem:[#allocation3 + $0x8] sm:$0xff]
        %v4020 = vld [vmem:[#allocation3 + $0x10] sm:$0xff]
        %v4021 = vld [vmem:[#allocation3 + $0x18] sm:$0xff]
        %v4022 = vld [vmem:[#allocation3 + $0x20] sm:$0xff]
        %v4023 = vld [vmem:[#allocation3 + $0x28] sm:$0xff]
        %v4024 = vld [vmem:[#allocation3 + $0x30] sm:$0xff]
        %v4025 = vld [vmem:[#allocation3 + $0x38] sm:$0xff]
        %v4026 = vld [vmem:[#allocation3 + $0x40] sm:$0xff]
        %v4027 = vld [vmem:[#allocation3 + $0x48] sm:$0xff]
        %v4028 = vld [vmem:[#allocation3 + $0x50] sm:$0xff]
        %v4029 = vld [vmem:[#allocation3 + $0x58] sm:$0xff]
        %v4030 = vld [vmem:[#allocation3 + $0x60] sm:$0xff]
        %v4031 = vld [vmem:[#allocation3 + $0x68] sm:$0xff]
        %v4032 = vld [vmem:[#allocation3 + $0x70] sm:$0xff]
        %v4033 = vld [vmem:[#allocation3 + $0x78] sm:$0xff]
        %v4034 = vld [vmem:[#allocation3 + $0x80] sm:$0xff]
        %v4035 = vld [vmem:[#allocation3 + $0x88] sm:$0xff]
        %v4036 = vld [vmem:[#allocation3 + $0x90] sm:$0xff]
        %v4037 = vld [vmem:[#allocation3 + $0x98] sm:$0xff]
        %v4038 = vld [vmem:[#allocation3 + $0xa0] sm:$0xff]
        %v4039 = vld [vmem:[#allocation3 + $0xa8] sm:$0xff]
        %v4040 = vld [vmem:[#allocation3 + $0xb0] sm:$0xff]
        %v4041 = vld [vmem:[#allocation3 + $0xb8] sm:$0xff]
        %v4042 = vld [vmem:[#allocation3 + $0xc0] sm:$0xff]
        %v4043 = vld [vmem:[#allocation3 + $0xc8] sm:$0xff]
        %v4044 = vld [vmem:[#allocation3 + $0xd0] sm:$0xff]
        %v4045 = vld [vmem:[#allocation3 + $0xd8] sm:$0xff]
        %v4046 = vld [vmem:[#allocation3 + $0xe0] sm:$0xff]
        %v4047 = vld [vmem:[#allocation3 + $0xe8] sm:$0xff]
        %v4048 = vld [vmem:[#allocation3 + $0xf0] sm:$0xff]
        %v4049 = vld [vmem:[#allocation3 + $0xf8] sm:$0xff]
        %v4050 = vld [vmem:[%s4] sm:$0x1]
        %v4052 = vlaneseq
        %v4053 = vshrl.u32 %v4052, 7
        %v4054 = vsub.s32 0, %v4053
        %v4055 = vrot.slane %v4050, %v4054
        %v4057 = vadd.f32 %v4018, %v4055
        %v4058 = vadd.f32 %v4019, %v4055
        %v4059 = vadd.f32 %v4020, %v4055
        %v4060 = vadd.f32 %v4021, %v4055
        %v4061 = vadd.f32 %v4022, %v4055
        %v4062 = vadd.f32 %v4023, %v4055
        %v4063 = vadd.f32 %v4024, %v4055
        %v4064 = vadd.f32 %v4025, %v4055
        %v4065 = vadd.f32 %v4026, %v4055
        %v4066 = vadd.f32 %v4027, %v4055
        %v4067 = vadd.f32 %v4028, %v4055
        %v4068 = vadd.f32 %v4029, %v4055
        %v4069 = vadd.f32 %v4030, %v4055
        %v4070 = vadd.f32 %v4031, %v4055
        %v4071 = vadd.f32 %v4032, %v4055
        %v4072 = vadd.f32 %v4033, %v4055
        %v4073 = vadd.f32 %v4034, %v4055
        %v4074 = vadd.f32 %v4035, %v4055
        %v4075 = vadd.f32 %v4036, %v4055
        %v4076 = vadd.f32 %v4037, %v4055
        %v4077 = vadd.f32 %v4038, %v4055
        %v4078 = vadd.f32 %v4039, %v4055
        %v4079 = vadd.f32 %v4040, %v4055
        %v4080 = vadd.f32 %v4041, %v4055
        %v4081 = vadd.f32 %v4042, %v4055
        %v4082 = vadd.f32 %v4043, %v4055
        %v4083 = vadd.f32 %v4044, %v4055
        %v4084 = vadd.f32 %v4045, %v4055
        %v4085 = vadd.f32 %v4046, %v4055
        %v4086 = vadd.f32 %v4047, %v4055
        %v4087 = vadd.f32 %v4048, %v4055
        %v4088 = vadd.f32 %v4049, %v4055
        %v4089 = vmax.f32 %v4057, 0.0
        %v4090 = vmax.f32 %v4058, 0.0
        %v4091 = vmax.f32 %v4059, 0.0
        %v4092 = vmax.f32 %v4060, 0.0
        %v4093 = vmax.f32 %v4061, 0.0
        %v4094 = vmax.f32 %v4062, 0.0
        %v4095 = vmax.f32 %v4063, 0.0
        %v4096 = vmax.f32 %v4064, 0.0
        %v4097 = vmax.f32 %v4065, 0.0
        %v4098 = vmax.f32 %v4066, 0.0
        %v4099 = vmax.f32 %v4067, 0.0
        %v4100 = vmax.f32 %v4068, 0.0
        %v4101 = vmax.f32 %v4069, 0.0
        %v4102 = vmax.f32 %v4070, 0.0
        %v4103 = vmax.f32 %v4071, 0.0
        %v4104 = vmax.f32 %v4072, 0.0
        %v4105 = vmax.f32 %v4073, 0.0
        %v4106 = vmax.f32 %v4074, 0.0
        %v4107 = vmax.f32 %v4075, 0.0
        %v4108 = vmax.f32 %v4076, 0.0
        %v4109 = vmax.f32 %v4077, 0.0
        %v4110 = vmax.f32 %v4078, 0.0
        %v4111 = vmax.f32 %v4079, 0.0
        %v4112 = vmax.f32 %v4080, 0.0
        %v4113 = vmax.f32 %v4081, 0.0
        %v4114 = vmax.f32 %v4082, 0.0
        %v4115 = vmax.f32 %v4083, 0.0
        %v4116 = vmax.f32 %v4084, 0.0
        %v4117 = vmax.f32 %v4085, 0.0
        %v4118 = vmax.f32 %v4086, 0.0
        %v4119 = vmax.f32 %v4087, 0.0
        %v4120 = vmax.f32 %v4088, 0.0
        %4121 = vst [vmem:[%s271] sm:$0xff] %v4089
        %4122 = vst [vmem:[%s271 + $0x8] sm:$0xff] %v4090
        %4123 = vst [vmem:[%s271 + $0x10] sm:$0xff] %v4091
        %4124 = vst [vmem:[%s271 + $0x18] sm:$0xff] %v4092
        %4125 = vst [vmem:[%s271 + $0x20] sm:$0xff] %v4093
        %4126 = vst [vmem:[%s271 + $0x28] sm:$0xff] %v4094
        %4127 = vst [vmem:[%s271 + $0x30] sm:$0xff] %v4095
        %4128 = vst [vmem:[%s271 + $0x38] sm:$0xff] %v4096
        %4129 = vst [vmem:[%s271 + $0x40] sm:$0xff] %v4097
        %4130 = vst [vmem:[%s271 + $0x48] sm:$0xff] %v4098
        %4131 = vst [vmem:[%s271 + $0x50] sm:$0xff] %v4099
        %4132 = vst [vmem:[%s271 + $0x58] sm:$0xff] %v4100
        %4133 = vst [vmem:[%s271 + $0x60] sm:$0xff] %v4101
        %4134 = vst [vmem:[%s271 + $0x68] sm:$0xff] %v4102
        %4135 = vst [vmem:[%s271 + $0x70] sm:$0xff] %v4103
        %4136 = vst [vmem:[%s271 + $0x78] sm:$0xff] %v4104
        %4137 = vst [vmem:[%s271 + $0x80] sm:$0xff] %v4105
        %4138 = vst [vmem:[%s271 + $0x88] sm:$0xff] %v4106
        %4139 = vst [vmem:[%s271 + $0x90] sm:$0xff] %v4107
        %4140 = vst [vmem:[%s271 + $0x98] sm:$0xff] %v4108
        %4141 = vst [vmem:[%s271 + $0xa0] sm:$0xff] %v4109
        %4142 = vst [vmem:[%s271 + $0xa8] sm:$0xff] %v4110
        %4143 = vst [vmem:[%s271 + $0xb0] sm:$0xff] %v4111
        %4144 = vst [vmem:[%s271 + $0xb8] sm:$0xff] %v4112
        %4145 = vst [vmem:[%s271 + $0xc0] sm:$0xff] %v4113
        %4146 = vst [vmem:[%s271 + $0xc8] sm:$0xff] %v4114
        %4147 = vst [vmem:[%s271 + $0xd0] sm:$0xff] %v4115
        %4148 = vst [vmem:[%s271 + $0xd8] sm:$0xff] %v4116
        %4149 = vst [vmem:[%s271 + $0xe0] sm:$0xff] %v4117
        %4150 = vst [vmem:[%s271 + $0xe8] sm:$0xff] %v4118
        %4151 = vst [vmem:[%s271 + $0xf0] sm:$0xff] %v4119
        %4152 = vst [vmem:[%s271 + $0xf8] sm:$0xff] %v4120
        %s4153 = sand.u32 %s141, 1
        %s4154 = scalar_lea.sflag [#allocation6], %s4153
        %s4155 = sand.u32 %s141, 1
        %s4156 = smul.addr %s4155, 256
        %s4157 = scalar_lea.vmem [#allocation10], %s4156
        // Predicated region
        $region53: #{tpu_custom_call.1} parent=39 // pred_check
          %p4158 = pneg %p151
        $region54: #{tpu_custom_call.1} parent=39 // pred_check_branch
          %4160 = sbr.rel (%p4158) target = $region56
        $region55: #{tpu_custom_call.1} parent=39 // pred_region
          %s4162 = ssub.s32 4096, 4096
          %4163 = vsyncadd %s4154, %s4162
          %s4164 = smul.addr %s23, 32
          %s4165 = smul.addr %s4164, 128
          %s4166 = scalar_lea.hbm %s5, %s4165
          %s4167 = sshll.u32 %s4157, 4
          %s4168 = int_to_ptr.vmem [resolvable:$true] %s4167
          %4173 = dma.vmem_to_hbm [thread:$0]  %s4168, 4096, %s4166, %s4154, 128, 128, 8
        $region56: #{tpu_custom_call.1} parent=39 // pred_fallthru
          _
      $region40: #{tpu_custom_call.1} parent=5 // pred_fallthru
        _
      %p4174 = scmp.le.s32.totalorder 2, %s18
      // Predicated region
      $region57: #{tpu_custom_call.1} parent=5 // pred_check
        %p4175 = pneg %p4174
      $region58: #{tpu_custom_call.1} parent=5 // pred_check_branch
        %4177 = sbr.rel (%p4175) target = $region60
      $region59: #{tpu_custom_call.1} parent=5 // pred_region
        %s4178 = ssub.s32 %s18, 2
        // Predicated region
        $region61: #{tpu_custom_call.1} parent=59 // pred_check
          %p4179 = pneg %p157
        $region62: #{tpu_custom_call.1} parent=59 // pred_check_branch
          %4181 = sbr.rel (%p4179) target = $region64
        $region63: #{tpu_custom_call.1} parent=59 // pred_region
          %s4182 = sand.u32 %s142, 1
          %s4183 = scalar_lea.sflag [#allocation6], %s4182
          %s4184 = sand.u32 %s142, 1
          %s4185 = smul.addr %s4184, 256
          %s4186 = scalar_lea.vmem [#allocation10], %s4185
          %4187 = dma.done %s4183, 4096
        $region64: #{tpu_custom_call.1} parent=59 // pred_fallthru
          _
      $region60: #{tpu_custom_call.1} parent=5 // pred_fallthru
        _
    $region6: #{tpu_custom_call.1} parent=1 // loop_footer
      %s22 = sadd.s32 1, %s18
    $region7: #{tpu_custom_call.1} parent=1 // loop_footer_branch
      %17 = sbr.rel target = $region3
    $region8: #{tpu_custom_call.1} parent=1 // loop_exit
      _
    %4188 = vsyncpa [#allocation5], 1
    %s4189 = scalar_lea.sflag [#allocation5], 1
    %4190 = vsyncpa %s4189, 1
    %4191 = vsyncpa [#allocation8], 1
    %4192 = vsyncpa [#allocation6], 1
    %s4193 = scalar_lea.sflag [#allocation6], 1
    %4194 = vsyncpa %s4193, 1

</llo_original>
